<compile_context>
chip_gen: v7x
topology: tpu7x:2x2x1
jax: 0.10.0
libtpu: 0.0.40
codegen_flags: <defaults>
</compile_context>

<pallas_src>
import jax
import jax.numpy as jnp
from jax.experimental import pallas as pl
from jax.experimental.pallas import tpu as pltpu

HIDDEN = 64
NUM_ACTIONS = 19
NUM_LAYERS = 2


def _round_up(n, m):
    return (n + m - 1) // m * m


# --------------------------------------------------------------------------
# Pallas kernel: one bidirectional GRU layer, full sequence, one batch tile.
#
# Lane layout of the "gate" axis (6H = 384 lanes):
#   [ r_f(0:64) r_b(64:128) | z_f(128:192) z_b(192:256) | n_f(256:320) n_b(320:384) ]
# Hidden state h is kept as (TB, 2H) = [h_fwd | h_bwd].
# --------------------------------------------------------------------------
def bigru_layer_kernel(x_ref, wih_ref, whh_ref, bgi_ref, bhn_ref, out_ref,
                       gi_ref, hist_ref):
    # x_ref:    (T, TB, D_in)  bf16  layer input, time-major
    # wih_ref:  (D_in, 6H)     bf16  input-projection weights (gate-interleaved)
    # whh_ref:  (2H, 6H)       bf16  block-diagonal recurrent weights (fwd|bwd)
    # bgi_ref:  (1, 6H)        f32   b_ih (+ b_hh for r,z gates) folded
    # bhn_ref:  (1, 2H)        f32   b_hh of the n gate (applied under r*)
    # out_ref:  (T, TB, 2H)          fwd hidden in lanes [:H], bwd in [H:2H]
    # gi_ref:   (T, TB, 6H)    f32   VMEM scratch: precomputed input projection
    # hist_ref: (T, TB, 2H)    f32   VMEM scratch: per-step hidden states
    T, TB, D = x_ref.shape
    H2 = out_ref.shape[-1]            # 2H = 128
    H = H2 // 2
    G = 3 * H2                        # 6H = 384

    # ---- Phase 1: input projection for ALL timesteps in one MXU pass. ------
    # (T*TB, D) @ (D, 6H): fills the MXU M dimension, pushes W_ih once, and is
    # completely off the serial recurrence chain.
    x2d = x_ref[...].reshape(T * TB, D)
    gi_ref[...] = (
        jnp.dot(x2d, wih_ref[...], preferred_element_type=jnp.float32)
        + bgi_ref[...]
    ).reshape(T, TB, G)

    # ---- Phase 1.5: direction-align gi in place (schedulable filler). ------
    # After this pass, gi_ref[t] holds fwd gate lanes from input time t and
    # bwd gate lanes from input time T-1-t, so Phase 2 reads gi_ref[t] only.
    lane_g = jax.lax.broadcasted_iota(jnp.int32, (TB, G), 1)
    is_fwd_gate_lane = (lane_g % H2) < H
    for t in range(T // 2):
        tr = T - 1 - t
        a = gi_ref[t]
        b = gi_ref[tr]
        gi_ref[t] = jnp.where(is_fwd_gate_lane, a, b)
        gi_ref[tr] = jnp.where(is_fwd_gate_lane, b, a)
        # (middle step of odd T needs no swap: both directions read the same t)

    # ---- Phase 2: serial recurrence, both directions interleaved. ----------
    whh = whh_ref[...]
    bhn = jnp.broadcast_to(bhn_ref[...], (TB, H2))      # hoisted broadcast

    # t == 0: h == 0  =>  h @ W_hh == 0, skip the recurrent matmul entirely.
    # (b_hh for r,z is folded into bgi; b_hh_n enters under the r* multiply.)
    r = jax.nn.sigmoid(gi_ref[0, :, 0:H2])
    z = jax.nn.sigmoid(gi_ref[0, :, H2:2 * H2])
    n = jnp.tanh(gi_ref[0, :, 2 * H2:3 * H2] + r * bhn)
    h = (1.0 - z) * n
    hist_ref[0] = h

    for t in range(1, T):                               # fully unrolled (T static, small)
        gh = jnp.dot(h.astype(jnp.bfloat16), whh,
                     preferred_element_type=jnp.float32)            # (TB, 6H)
        # 128-lane aligned gate slices, loaded right where each gate needs them.
        r = jax.nn.sigmoid(gi_ref[t, :, 0:H2] + gh[:, 0:H2])
        z = jax.nn.sigmoid(gi_ref[t, :, H2:2 * H2] + gh[:, H2:2 * H2])
        n = jnp.tanh(gi_ref[t, :, 2 * H2:3 * H2]
                     + r * (gh[:, 2 * H2:3 * H2] + bhn))
        h = (1.0 - z) * n + z * h
        hist_ref[t] = h                                 # full-width 128-lane store

    # ---- Phase 3: epilogue, time re-alignment with lane-dense stores. ------
    # out[t] = [fwd hidden after consuming time t | bwd hidden after consuming
    # time t] = [fwd lanes of hist[t] | bwd lanes of hist[T-1-t]].
    lane_o = jax.lax.broadcasted_iota(jnp.int32, (TB, H2), 1)
    is_fwd_out_lane = lane_o < H
    for t in range(T):
        tr = T - 1 - t
        out_ref[t] = jnp.where(is_fwd_out_lane, hist_ref[t],
                               hist_ref[tr]).astype(out_ref.dtype)


# --------------------------------------------------------------------------
# Weight repacking: PyTorch GRU layout -> fused bidirectional kernel layout.
# Called ONCE at setup (outside the jitted forward).
# --------------------------------------------------------------------------
def pack_bigru_layer(layer_params):
    w_ih_f, w_hh_f, b_ih_f, b_hh_f = layer_params["fwd"]
    w_ih_b, w_hh_b, b_ih_b, b_hh_b = layer_params["bwd"]
    H = w_hh_f.shape[1]
    wih_cols, bgi_parts = [], []
    for g in range(3):                            # PyTorch gate order: r, z, n
        sl = slice(g * H, (g + 1) * H)
        wih_cols += [w_ih_f[sl].T, w_ih_b[sl].T]
        if g < 2:                                 # r, z: fold both biases
            bgi_parts += [b_ih_f[sl] + b_hh_f[sl], b_ih_b[sl] + b_hh_b[sl]]
        else:                                     # n: b_hh_n stays in the loop
            bgi_parts += [b_ih_f[sl], b_ih_b[sl]]
    wih = jnp.concatenate(wih_cols, axis=1)                        # (D_in, 6H)
    bgi = jnp.concatenate(bgi_parts)[None, :]                      # (1, 6H)
    whh = jnp.zeros((2 * H, 6 * H), jnp.float32)                   # block-diag
    for g in range(3):
        sl = slice(g * H, (g + 1) * H)
        whh = whh.at[0:H, 2 * g * H:(2 * g + 1) * H].set(w_hh_f[sl].T)
        whh = whh.at[H:2 * H, (2 * g + 1) * H:(2 * g + 2) * H].set(w_hh_b[sl].T)
    bhn = jnp.concatenate([b_hh_f[2 * H:], b_hh_b[2 * H:]])[None, :]  # (1, 2H)
    return dict(wih=wih.astype(jnp.bfloat16), whh=whh.astype(jnp.bfloat16),
                bgi=bgi.astype(jnp.float32), bhn=bhn.astype(jnp.float32))


def pack_params(params):
    return {
        "embedding": params["embedding"],
        "layers": [pack_bigru_layer(params[f"layer{l}"])
                   for l in range(NUM_LAYERS)],
    }


# --------------------------------------------------------------------------
# Batch-tile selection: padding-aware, megacore-aware, T-aware VMEM budget.
# --------------------------------------------------------------------------
def _choose_batch_tile(Bf, T, d_in, *, max_tile=128, vmem_budget=32 << 20):
    # Per-batch-row VMEM bytes that scale with T: gi + hist scratch plus
    # double-buffered in/out tiles.  Keeps large-T cases inside v7x's VMEM.
    per_row = T * (6 * HIDDEN * 4          # gi scratch (f32)
                   + 2 * HIDDEN * 4        # hist scratch (f32)
                   + 2 * d_in * 2          # double-buffered bf16 input tile
                   + 2 * 2 * HIDDEN * 4)   # double-buffered output tile (f32 worst)
    cap = max(16, min(max_tile, (vmem_budget // per_row) // 16 * 16))
    Bp16 = _round_up(Bf, 16)               # 16: keeps bf16 sublane packing aligned
    best_key, best_tile = None, 16
    for t in range(16, min(cap, Bp16) + 1, 16):
        Bp = _round_up(Bf, t)
        waste = Bp - Bf
        grid = Bp // t
        # minimize padded dead work, then keep >=2 grid steps (2 TCs on v7x),
        # then prefer the largest tile (MXU row fill / per-step overhead).
        key = (waste, 0 if grid >= 2 else 1, -t)
        if best_key is None or key < best_key:
            best_key, best_tile = key, t
    return best_tile


# --------------------------------------------------------------------------
# pallas_call wrapper for one fused bidirectional GRU layer.
# --------------------------------------------------------------------------
def bigru_layer_pallas(x_tbd, packed, *, out_dtype, batch_tile):
    T, B, D = x_tbd.shape
    wih, whh, bgi, bhn = packed["wih"], packed["whh"], packed["bgi"], packed["bhn"]
    H2, G = whh.shape
    assert B % batch_tile == 0 and batch_tile % 16 == 0
    grid = (B // batch_tile,)

    return pl.pallas_call(
        bigru_layer_kernel,
        out_shape=jax.ShapeDtypeStruct((T, B, H2), out_dtype),
        grid_spec=pltpu.PrefetchScalarGridSpec(
            num_scalar_prefetch=0,
            grid=grid,
            in_specs=[
                pl.BlockSpec((T, batch_tile, D), lambda b: (0, b, 0)),
                pl.BlockSpec((D, G), lambda b: (0, 0)),
                pl.BlockSpec((H2, G), lambda b: (0, 0)),
                pl.BlockSpec((1, G), lambda b: (0, 0)),
                pl.BlockSpec((1, H2), lambda b: (0, 0)),
            ],
            out_specs=pl.BlockSpec((T, batch_tile, H2), lambda b: (0, b, 0)),
            scratch_shapes=[
                pltpu.VMEM((T, batch_tile, G), jnp.float32),   # gi
                pltpu.VMEM((T, batch_tile, H2), jnp.float32),  # hist
            ],
        ),
        compiler_params=pltpu.CompilerParams(
            dimension_semantics=("parallel",)),      # megacore over batch tiles
    )(x_tbd.astype(jnp.bfloat16), wih, whh, bgi, bhn)


# --------------------------------------------------------------------------
# Full module forward (mirrors ActionHistoryEncoder.forward).
# `packed_params` comes from pack_params(params) (one-time repack).
# --------------------------------------------------------------------------
def action_history_encoder(x, packed_params, *, max_batch_tile=128):
    xs = x.shape                                   # (..., T), ints in [0, 19)
    T = xs[-1]
    # TODO(synk): embedding gather, batch flatten/pad and the (B,T)<->(T,B)
    # transposes remain XLA glue; layer-0's gather could be folded into the
    # kernel as a one-hot @ (embedding @ W_ih) MXU op if it ever dominates.
    emb = jnp.take(packed_params["embedding"], x, axis=0)     # (..., T, 64)
    h = emb.reshape(-1, T, HIDDEN)                            # (Bf, T, 64)
    Bf = h.shape[0]

    batch_tile = _choose_batch_tile(Bf, T, 2 * HIDDEN, max_tile=max_batch_tile)
    Bp = _round_up(Bf, batch_tile)
    if Bp != Bf:
        h = jnp.pad(h, ((0, Bp - Bf), (0, 0), (0, 0)))
    h = jnp.transpose(h, (1, 0, 2)).astype(jnp.bfloat16)      # (T, Bp, 64)

    for layer, packed in enumerate(packed_params["layers"]):
        out_dtype = jnp.bfloat16 if layer + 1 < NUM_LAYERS else jnp.float32
        h = bigru_layer_pallas(h, packed, out_dtype=out_dtype,
                               batch_tile=batch_tile)         # (T, Bp, 128)

    out = jnp.transpose(h, (1, 0, 2))[:Bf]                    # (Bf, T, 128)
    return out.reshape(*xs, 2 * HIDDEN)                       # (..., T, 128)


# --------------------------------------------------------------------------
# Pure-JAX reference (PyTorch semantics).  emulate_bf16=True mirrors the
# kernel's bf16-in / f32-accumulate matmul precision for a tight check.
# --------------------------------------------------------------------------
def gru_layer_ref(x_tbd, w_ih, w_hh, b_ih, b_hh, *, emulate_bf16):
    H = w_hh.shape[1]
    B = x_tbd.shape[1]

    def mm(a, w):
        if emulate_bf16:
            return jnp.dot(a.astype(jnp.bfloat16), w.T.astype(jnp.bfloat16),
                           preferred_element_type=jnp.float32)
        return jnp.dot(a, w.T, precision=jax.lax.Precision.HIGHEST)

    def step(h, x_t):
        gi = mm(x_t, w_ih) + b_ih
        gh = mm(h, w_hh) + b_hh
        r = jax.nn.sigmoid(gi[:, :H] + gh[:, :H])
        z = jax.nn.sigmoid(gi[:, H:2 * H] + gh[:, H:2 * H])
        n = jnp.tanh(gi[:, 2 * H:] + r * gh[:, 2 * H:])
        h_new = (1.0 - z) * n + z * h
        return h_new, h_new

    h0 = jnp.zeros((B, H), jnp.float32)
    _, ys = jax.lax.scan(step, h0, x_tbd.astype(jnp.float32))
    return ys                                                  # (T, B, H)


def action_history_encoder_ref(x, params, *, emulate_bf16):
    xs = x.shape
    T = xs[-1]
    h = jnp.take(params["embedding"], x, axis=0).reshape(-1, T, HIDDEN)
    h = jnp.transpose(h, (1, 0, 2)).astype(jnp.float32)
    for layer in range(NUM_LAYERS):
        p = params[f"layer{layer}"]
        fwd = gru_layer_ref(h, *p["fwd"], emulate_bf16=emulate_bf16)
        bwd = gru_layer_ref(h[::-1], *p["bwd"], emulate_bf16=emulate_bf16)[::-1]
        h = jnp.concatenate([fwd, bwd], axis=-1)
    out = jnp.transpose(h, (1, 0, 2))
    return out.reshape(*xs, 2 * HIDDEN)


# --------------------------------------------------------------------------
# Deterministic parameter init (shapes from the nn.Module __init__)
# --------------------------------------------------------------------------
def init_params(key):
    k = 1.0 / jnp.sqrt(HIDDEN)
    keys = jax.random.split(key, 1 + NUM_LAYERS * 2 * 4)
    params = {"embedding": jax.random.normal(keys[0], (NUM_ACTIONS, HIDDEN),
                                             jnp.float32)}
    idx = 1
    for layer in range(NUM_LAYERS):
        in_size = HIDDEN if layer == 0 else 2 * HIDDEN      # bidirectional stack
        layer_p = {}
        for direction in ("fwd", "bwd"):
            w_ih = jax.random.uniform(keys[idx + 0], (3 * HIDDEN, in_size),
                                      jnp.float32, -k, k)
            w_hh = jax.random.uniform(keys[idx + 1], (3 * HIDDEN, HIDDEN),
                                      jnp.float32, -k, k)
            b_ih = jax.random.uniform(keys[idx + 2], (3 * HIDDEN,),
                                      jnp.float32, -k, k)
            b_hh = jax.random.uniform(keys[idx + 3], (3 * HIDDEN,),
                                      jnp.float32, -k, k)
            layer_p[direction] = (w_ih, w_hh, b_ih, b_hh)
            idx += 4
        params[f"layer{layer}"] = layer_p
    return params


if __name__ == "__main__":
    root = jax.random.PRNGKey(0)
    k_params, k_x = jax.random.split(root)

    params = init_params(k_params)
    packed = pack_params(params)        # one-time weight repack, outside jit
    # x: action-id history with extra leading dims to exercise the view logic.
    x = jax.random.randint(k_x, (2, 3, 8), 0, NUM_ACTIONS, dtype=jnp.int32)

    fwd = jax.jit(action_history_encoder)
    y = fwd(x, packed)
    jax.block_until_ready(y)
    assert y.shape == (2, 3, 8, 2 * HIDDEN), y.shape

    # Tight check against a reference running the same bf16-in / f32-acc
    # matmul precision as the kernel.
    y_ref = action_history_encoder_ref(x, params, emulate_bf16=True)
    err = float(jnp.max(jnp.abs(y - y_ref)))
    assert jnp.allclose(y, y_ref, atol=2e-3, rtol=2e-3), err

    # Loose sanity check against the full-f32 PyTorch-semantics reference
    # (bf16 matmuls introduce small, bounded deviations).
    y_ref32 = action_history_encoder_ref(x, params, emulate_bf16=False)
    err32 = float(jnp.max(jnp.abs(y - y_ref32)))
    assert jnp.allclose(y, y_ref32, atol=1e-1, rtol=1e-1), err32

    print("KERNEL_OK")
</pallas_src>

<mosaic_0001>
module attributes {stable_mosaic.version = 11 : i64} {
  func.func @bigru_layer_kernel(%arg0: i32, %arg1: memref<8x16x64xbf16, #tpu.memory_space<vmem>>, %arg2: memref<64x384xbf16, #tpu.memory_space<vmem>>, %arg3: memref<128x384xbf16, #tpu.memory_space<vmem>>, %arg4: memref<1x384xf32, #tpu.memory_space<vmem>>, %arg5: memref<1x128xf32, #tpu.memory_space<vmem>>, %arg6: memref<8x16x128xbf16, #tpu.memory_space<vmem>>, %arg7: memref<8x16x384xf32, #tpu.memory_space<vmem>>, %arg8: memref<8x16x128xf32, #tpu.memory_space<vmem>>) attributes {dimension_semantics = [#tpu.dimension_semantics<parallel>], iteration_bounds = array<i64: 1>, scalar_prefetch = 0 : i64, scratch_operands = 2 : i64, tpu.core_type = #tpu.core_type<tc>, window_params = [{transform_indices = @transform_0, window_bounds = array<i64: 8, 16, 64>}, {pipeline_mode = #tpu.pipeline_mode<synchronous>, transform_indices = @transform_1, window_bounds = array<i64: 64, 384>}, {pipeline_mode = #tpu.pipeline_mode<synchronous>, transform_indices = @transform_2, window_bounds = array<i64: 128, 384>}, {pipeline_mode = #tpu.pipeline_mode<synchronous>, transform_indices = @transform_3, window_bounds = array<i64: 1, 384>}, {pipeline_mode = #tpu.pipeline_mode<synchronous>, transform_indices = @transform_4, window_bounds = array<i64: 1, 128>}, {transform_indices = @transform_5, window_bounds = array<i64: 8, 16, 128>}]} {
    %c0 = arith.constant 0 : index
    %c0_0 = arith.constant 0 : index
    %c0_1 = arith.constant 0 : index
    %0 = vector.load %arg1[%c0, %c0_0, %c0_1] : memref<8x16x64xbf16, #tpu.memory_space<vmem>>, vector<8x16x64xbf16>
    %1 = vector.shape_cast %0 : vector<8x16x64xbf16> to vector<128x64xbf16>
    %c0_2 = arith.constant 0 : index
    %c0_3 = arith.constant 0 : index
    %2 = vector.load %arg2[%c0_2, %c0_3] : memref<64x384xbf16, #tpu.memory_space<vmem>>, vector<64x384xbf16>
    %cst = arith.constant dense<0.000000e+00> : vector<128x384xf32>
    %3 = tpu.matmul %1, %2, %cst {dimension_numbers = #tpu.dot_dimension_numbers<[1], [0], [0], [1], [0, 0, 1, 1], [], []>} : vector<128x64xbf16>, vector<64x384xbf16>, vector<128x384xf32> -> vector<128x384xf32>
    %c0_4 = arith.constant 0 : index
    %c0_5 = arith.constant 0 : index
    %4 = vector.load %arg4[%c0_4, %c0_5] : memref<1x384xf32, #tpu.memory_space<vmem>>, vector<1x384xf32>
    %5 = vector.broadcast %4 : vector<1x384xf32> to vector<128x384xf32>
    %6 = arith.addf %3, %5 : vector<128x384xf32>
    %7 = vector.shape_cast %6 : vector<128x384xf32> to vector<8x16x384xf32>
    %c0_6 = arith.constant 0 : index
    %c0_7 = arith.constant 0 : index
    %c0_8 = arith.constant 0 : index
    %8 = vector.load %arg7[%c0_6, %c0_7, %c0_8] : memref<8x16x384xf32, #tpu.memory_space<vmem>>, vector<8x16x384xf32>
    tpu.vector_store %arg7[%c0_6, %c0_7, %c0_8], %7 {strides = array<i32>} : memref<8x16x384xf32, #tpu.memory_space<vmem>>, vector<8x16x384xf32>,
    %9 = tpu.iota {dimensions = array<i32: 1>} : vector<16x384xi32>
    %c128_i32 = arith.constant 128 : i32
    %c0_i32 = arith.constant 0 : i32
    %10 = arith.cmpi eq, %c128_i32, %c0_i32 : i32
    %c1_i32 = arith.constant 1 : i32
    %11 = arith.select %10, %c1_i32, %c128_i32 : i32
    %12 = vector.broadcast %11 : i32 to vector<16x384xi32>
    %13 = arith.remsi %9, %12 : vector<16x384xi32>
    %c0_i32_9 = arith.constant 0 : i32
    %14 = vector.broadcast %c0_i32_9 : i32 to vector<16x384xi32>
    %15 = arith.cmpi ne, %13, %14 : vector<16x384xi32>
    %c0_i32_10 = arith.constant 0 : i32
    %16 = vector.broadcast %c0_i32_10 : i32 to vector<16x384xi32>
    %17 = arith.cmpi slt, %13, %16 : vector<16x384xi32>
    %c0_i32_11 = arith.constant 0 : i32
    %18 = arith.cmpi slt, %11, %c0_i32_11 : i32
    %19 = vector.broadcast %18 : i1 to vector<16x384xi1>
    %20 = vector.broadcast %19 : vector<16x384xi1> to vector<16x384xi1>
    %21 = arith.xori %17, %20 : vector<16x384xi1>
    %22 = arith.andi %21, %15 : vector<16x384xi1>
    %23 = vector.broadcast %11 : i32 to vector<16x384xi32>
    %24 = arith.addi %13, %23 : vector<16x384xi32>
    %25 = arith.select %22, %24, %13 : vector<16x384xi1>, vector<16x384xi32>
    %c64_i32 = arith.constant 64 : i32
    %26 = vector.broadcast %c64_i32 : i32 to vector<16x384xi32>
    %27 = arith.cmpi slt, %25, %26 : vector<16x384xi32>
    %c0_12 = arith.constant 0 : index
    %c0_13 = arith.constant 0 : index
    %c0_14 = arith.constant 0 : index
    %28 = vector.load %arg7[%c0_12, %c0_13, %c0_14] : memref<8x16x384xf32, #tpu.memory_space<vmem>>, vector<1x16x384xf32>
    %29 = vector.shape_cast %28 : vector<1x16x384xf32> to vector<16x384xf32>
    %c7 = arith.constant 7 : index
    %c0_15 = arith.constant 0 : index
    %c0_16 = arith.constant 0 : index
    %30 = vector.load %arg7[%c7, %c0_15, %c0_16] : memref<8x16x384xf32, #tpu.memory_space<vmem>>, vector<1x16x384xf32>
    %31 = vector.shape_cast %30 : vector<1x16x384xf32> to vector<16x384xf32>
    %32 = arith.select %27, %29, %31 : vector<16x384xi1>, vector<16x384xf32>
    %c0_17 = arith.constant 0 : index
    %c0_18 = arith.constant 0 : index
    %c0_19 = arith.constant 0 : index
    %33 = vector.load %arg7[%c0_17, %c0_18, %c0_19] : memref<8x16x384xf32, #tpu.memory_space<vmem>>, vector<1x16x384xf32>
    %34 = vector.shape_cast %33 : vector<1x16x384xf32> to vector<16x384xf32>
    %35 = vector.shape_cast %32 : vector<16x384xf32> to vector<1x16x384xf32>
    tpu.vector_store %arg7[%c0_17, %c0_18, %c0_19], %35 {strides = array<i32>} : memref<8x16x384xf32, #tpu.memory_space<vmem>>, vector<1x16x384xf32>,
    %36 = arith.select %27, %31, %29 : vector<16x384xi1>, vector<16x384xf32>
    %c7_20 = arith.constant 7 : index
    %c0_21 = arith.constant 0 : index
    %c0_22 = arith.constant 0 : index
    %37 = vector.load %arg7[%c7_20, %c0_21, %c0_22] : memref<8x16x384xf32, #tpu.memory_space<vmem>>, vector<1x16x384xf32>
    %38 = vector.shape_cast %37 : vector<1x16x384xf32> to vector<16x384xf32>
    %39 = vector.shape_cast %36 : vector<16x384xf32> to vector<1x16x384xf32>
    tpu.vector_store %arg7[%c7_20, %c0_21, %c0_22], %39 {strides = array<i32>} : memref<8x16x384xf32, #tpu.memory_space<vmem>>, vector<1x16x384xf32>,
    %c1 = arith.constant 1 : index
    %c0_23 = arith.constant 0 : index
    %c0_24 = arith.constant 0 : index
    %40 = vector.load %arg7[%c1, %c0_23, %c0_24] : memref<8x16x384xf32, #tpu.memory_space<vmem>>, vector<1x16x384xf32>
    %41 = vector.shape_cast %40 : vector<1x16x384xf32> to vector<16x384xf32>
    %c6 = arith.constant 6 : index
    %c0_25 = arith.constant 0 : index
    %c0_26 = arith.constant 0 : index
    %42 = vector.load %arg7[%c6, %c0_25, %c0_26] : memref<8x16x384xf32, #tpu.memory_space<vmem>>, vector<1x16x384xf32>
    %43 = vector.shape_cast %42 : vector<1x16x384xf32> to vector<16x384xf32>
    %44 = arith.select %27, %41, %43 : vector<16x384xi1>, vector<16x384xf32>
    %c1_27 = arith.constant 1 : index
    %c0_28 = arith.constant 0 : index
    %c0_29 = arith.constant 0 : index
    %45 = vector.load %arg7[%c1_27, %c0_28, %c0_29] : memref<8x16x384xf32, #tpu.memory_space<vmem>>, vector<1x16x384xf32>
    %46 = vector.shape_cast %45 : vector<1x16x384xf32> to vector<16x384xf32>
    %47 = vector.shape_cast %44 : vector<16x384xf32> to vector<1x16x384xf32>
    tpu.vector_store %arg7[%c1_27, %c0_28, %c0_29], %47 {strides = array<i32>} : memref<8x16x384xf32, #tpu.memory_space<vmem>>, vector<1x16x384xf32>,
    %48 = arith.select %27, %43, %41 : vector<16x384xi1>, vector<16x384xf32>
    %c6_30 = arith.constant 6 : index
    %c0_31 = arith.constant 0 : index
    %c0_32 = arith.constant 0 : index
    %49 = vector.load %arg7[%c6_30, %c0_31, %c0_32] : memref<8x16x384xf32, #tpu.memory_space<vmem>>, vector<1x16x384xf32>
    %50 = vector.shape_cast %49 : vector<1x16x384xf32> to vector<16x384xf32>
    %51 = vector.shape_cast %48 : vector<16x384xf32> to vector<1x16x384xf32>
    tpu.vector_store %arg7[%c6_30, %c0_31, %c0_32], %51 {strides = array<i32>} : memref<8x16x384xf32, #tpu.memory_space<vmem>>, vector<1x16x384xf32>,
    %c2 = arith.constant 2 : index
    %c0_33 = arith.constant 0 : index
    %c0_34 = arith.constant 0 : index
    %52 = vector.load %arg7[%c2, %c0_33, %c0_34] : memref<8x16x384xf32, #tpu.memory_space<vmem>>, vector<1x16x384xf32>
    %53 = vector.shape_cast %52 : vector<1x16x384xf32> to vector<16x384xf32>
    %c5 = arith.constant 5 : index
    %c0_35 = arith.constant 0 : index
    %c0_36 = arith.constant 0 : index
    %54 = vector.load %arg7[%c5, %c0_35, %c0_36] : memref<8x16x384xf32, #tpu.memory_space<vmem>>, vector<1x16x384xf32>
    %55 = vector.shape_cast %54 : vector<1x16x384xf32> to vector<16x384xf32>
    %56 = arith.select %27, %53, %55 : vector<16x384xi1>, vector<16x384xf32>
    %c2_37 = arith.constant 2 : index
    %c0_38 = arith.constant 0 : index
    %c0_39 = arith.constant 0 : index
    %57 = vector.load %arg7[%c2_37, %c0_38, %c0_39] : memref<8x16x384xf32, #tpu.memory_space<vmem>>, vector<1x16x384xf32>
    %58 = vector.shape_cast %57 : vector<1x16x384xf32> to vector<16x384xf32>
    %59 = vector.shape_cast %56 : vector<16x384xf32> to vector<1x16x384xf32>
    tpu.vector_store %arg7[%c2_37, %c0_38, %c0_39], %59 {strides = array<i32>} : memref<8x16x384xf32, #tpu.memory_space<vmem>>, vector<1x16x384xf32>,
    %60 = arith.select %27, %55, %53 : vector<16x384xi1>, vector<16x384xf32>
    %c5_40 = arith.constant 5 : index
    %c0_41 = arith.constant 0 : index
    %c0_42 = arith.constant 0 : index
    %61 = vector.load %arg7[%c5_40, %c0_41, %c0_42] : memref<8x16x384xf32, #tpu.memory_space<vmem>>, vector<1x16x384xf32>
    %62 = vector.shape_cast %61 : vector<1x16x384xf32> to vector<16x384xf32>
    %63 = vector.shape_cast %60 : vector<16x384xf32> to vector<1x16x384xf32>
    tpu.vector_store %arg7[%c5_40, %c0_41, %c0_42], %63 {strides = array<i32>} : memref<8x16x384xf32, #tpu.memory_space<vmem>>, vector<1x16x384xf32>,
    %c3 = arith.constant 3 : index
    %c0_43 = arith.constant 0 : index
    %c0_44 = arith.constant 0 : index
    %64 = vector.load %arg7[%c3, %c0_43, %c0_44] : memref<8x16x384xf32, #tpu.memory_space<vmem>>, vector<1x16x384xf32>
    %65 = vector.shape_cast %64 : vector<1x16x384xf32> to vector<16x384xf32>
    %c4 = arith.constant 4 : index
    %c0_45 = arith.constant 0 : index
    %c0_46 = arith.constant 0 : index
    %66 = vector.load %arg7[%c4, %c0_45, %c0_46] : memref<8x16x384xf32, #tpu.memory_space<vmem>>, vector<1x16x384xf32>
    %67 = vector.shape_cast %66 : vector<1x16x384xf32> to vector<16x384xf32>
    %68 = arith.select %27, %65, %67 : vector<16x384xi1>, vector<16x384xf32>
    %c3_47 = arith.constant 3 : index
    %c0_48 = arith.constant 0 : index
    %c0_49 = arith.constant 0 : index
    %69 = vector.load %arg7[%c3_47, %c0_48, %c0_49] : memref<8x16x384xf32, #tpu.memory_space<vmem>>, vector<1x16x384xf32>
    %70 = vector.shape_cast %69 : vector<1x16x384xf32> to vector<16x384xf32>
    %71 = vector.shape_cast %68 : vector<16x384xf32> to vector<1x16x384xf32>
    tpu.vector_store %arg7[%c3_47, %c0_48, %c0_49], %71 {strides = array<i32>} : memref<8x16x384xf32, #tpu.memory_space<vmem>>, vector<1x16x384xf32>,
    %72 = arith.select %27, %67, %65 : vector<16x384xi1>, vector<16x384xf32>
    %c4_50 = arith.constant 4 : index
    %c0_51 = arith.constant 0 : index
    %c0_52 = arith.constant 0 : index
    %73 = vector.load %arg7[%c4_50, %c0_51, %c0_52] : memref<8x16x384xf32, #tpu.memory_space<vmem>>, vector<1x16x384xf32>
    %74 = vector.shape_cast %73 : vector<1x16x384xf32> to vector<16x384xf32>
    %75 = vector.shape_cast %72 : vector<16x384xf32> to vector<1x16x384xf32>
    tpu.vector_store %arg7[%c4_50, %c0_51, %c0_52], %75 {strides = array<i32>} : memref<8x16x384xf32, #tpu.memory_space<vmem>>, vector<1x16x384xf32>,
    %c0_53 = arith.constant 0 : index
    %c0_54 = arith.constant 0 : index
    %76 = vector.load %arg3[%c0_53, %c0_54] : memref<128x384xbf16, #tpu.memory_space<vmem>>, vector<128x384xbf16>
    %c0_55 = arith.constant 0 : index
    %c0_56 = arith.constant 0 : index
    %77 = vector.load %arg5[%c0_55, %c0_56] : memref<1x128xf32, #tpu.memory_space<vmem>>, vector<1x128xf32>
    %78 = vector.shape_cast %77 : vector<1x128xf32> to vector<1x128xf32>
    %79 = vector.broadcast %78 : vector<1x128xf32> to vector<16x128xf32>
    %c0_57 = arith.constant 0 : index
    %c0_58 = arith.constant 0 : index
    %c0_59 = arith.constant 0 : index
    %80 = vector.load %arg7[%c0_57, %c0_58, %c0_59] : memref<8x16x384xf32, #tpu.memory_space<vmem>>, vector<1x16x128xf32>
    %81 = vector.shape_cast %80 : vector<1x16x128xf32> to vector<16x128xf32>
    %82 = arith.negf %81 : vector<16x128xf32>
    %83 = math.exp %82 : vector<16x128xf32>
    %cst_60 = arith.constant 1.000000e+00 : f32
    %84 = vector.broadcast %cst_60 : f32 to vector<16x128xf32>
    %85 = arith.addf %84, %83 : vector<16x128xf32>
    %86 = arith.divf %84, %85 : vector<16x128xf32>
    %c0_61 = arith.constant 0 : index
    %c0_62 = arith.constant 0 : index
    %c128 = arith.constant 128 : index
    %87 = vector.load %arg7[%c0_61, %c0_62, %c128] : memref<8x16x384xf32, #tpu.memory_space<vmem>>, vector<1x16x128xf32>
    %88 = vector.shape_cast %87 : vector<1x16x128xf32> to vector<16x128xf32>
    %89 = arith.negf %88 : vector<16x128xf32>
    %90 = math.exp %89 : vector<16x128xf32>
    %cst_63 = arith.constant 1.000000e+00 : f32
    %91 = vector.broadcast %cst_63 : f32 to vector<16x128xf32>
    %92 = arith.addf %91, %90 : vector<16x128xf32>
    %93 = arith.divf %91, %92 : vector<16x128xf32>
    %c0_64 = arith.constant 0 : index
    %c0_65 = arith.constant 0 : index
    %c256 = arith.constant 256 : index
    %94 = vector.load %arg7[%c0_64, %c0_65, %c256] : memref<8x16x384xf32, #tpu.memory_space<vmem>>, vector<1x16x128xf32>
    %95 = vector.shape_cast %94 : vector<1x16x128xf32> to vector<16x128xf32>
    %96 = arith.mulf %86, %79 : vector<16x128xf32>
    %97 = arith.addf %95, %96 : vector<16x128xf32>
    %98 = math.tanh %97 : vector<16x128xf32>
    %cst_66 = arith.constant 1.000000e+00 : f32
    %99 = vector.broadcast %cst_66 : f32 to vector<16x128xf32>
    %100 = arith.subf %99, %93 : vector<16x128xf32>
    %101 = arith.mulf %100, %98 : vector<16x128xf32>
    %c0_67 = arith.constant 0 : index
    %c0_68 = arith.constant 0 : index
    %c0_69 = arith.constant 0 : index
    %102 = vector.load %arg8[%c0_67, %c0_68, %c0_69] : memref<8x16x128xf32, #tpu.memory_space<vmem>>, vector<1x16x128xf32>
    %103 = vector.shape_cast %102 : vector<1x16x128xf32> to vector<16x128xf32>
    %104 = vector.shape_cast %101 : vector<16x128xf32> to vector<1x16x128xf32>
    tpu.vector_store %arg8[%c0_67, %c0_68, %c0_69], %104 {strides = array<i32>} : memref<8x16x128xf32, #tpu.memory_space<vmem>>, vector<1x16x128xf32>,
    %105 = arith.truncf %101 : vector<16x128xf32> to vector<16x128xbf16>
    %cst_70 = arith.constant dense<0.000000e+00> : vector<16x384xf32>
    %106 = tpu.matmul %105, %76, %cst_70 {dimension_numbers = #tpu.dot_dimension_numbers<[1], [0], [0], [1], [0, 0, 1, 1], [], []>} : vector<16x128xbf16>, vector<128x384xbf16>, vector<16x384xf32> -> vector<16x384xf32>
    %c1_71 = arith.constant 1 : index
    %c0_72 = arith.constant 0 : index
    %c0_73 = arith.constant 0 : index
    %107 = vector.load %arg7[%c1_71, %c0_72, %c0_73] : memref<8x16x384xf32, #tpu.memory_space<vmem>>, vector<1x16x128xf32>
    %108 = vector.shape_cast %107 : vector<1x16x128xf32> to vector<16x128xf32>
    %109 = vector.extract_strided_slice %106 {offsets = [0, 0], sizes = [16, 128], strides = [1, 1]} : vector<16x384xf32> to vector<16x128xf32>
    %110 = arith.addf %108, %109 : vector<16x128xf32>
    %111 = arith.negf %110 : vector<16x128xf32>
    %112 = math.exp %111 : vector<16x128xf32>
    %cst_74 = arith.constant 1.000000e+00 : f32
    %113 = vector.broadcast %cst_74 : f32 to vector<16x128xf32>
    %114 = arith.addf %113, %112 : vector<16x128xf32>
    %115 = arith.divf %113, %114 : vector<16x128xf32>
    %c1_75 = arith.constant 1 : index
    %c0_76 = arith.constant 0 : index
    %c128_77 = arith.constant 128 : index
    %116 = vector.load %arg7[%c1_75, %c0_76, %c128_77] : memref<8x16x384xf32, #tpu.memory_space<vmem>>, vector<1x16x128xf32>
    %117 = vector.shape_cast %116 : vector<1x16x128xf32> to vector<16x128xf32>
    %118 = vector.extract_strided_slice %106 {offsets = [0, 128], sizes = [16, 128], strides = [1, 1]} : vector<16x384xf32> to vector<16x128xf32>
    %119 = arith.addf %117, %118 : vector<16x128xf32>
    %120 = arith.negf %119 : vector<16x128xf32>
    %121 = math.exp %120 : vector<16x128xf32>
    %cst_78 = arith.constant 1.000000e+00 : f32
    %122 = vector.broadcast %cst_78 : f32 to vector<16x128xf32>
    %123 = arith.addf %122, %121 : vector<16x128xf32>
    %124 = arith.divf %122, %123 : vector<16x128xf32>
    %c1_79 = arith.constant 1 : index
    %c0_80 = arith.constant 0 : index
    %c256_81 = arith.constant 256 : index
    %125 = vector.load %arg7[%c1_79, %c0_80, %c256_81] : memref<8x16x384xf32, #tpu.memory_space<vmem>>, vector<1x16x128xf32>
    %126 = vector.shape_cast %125 : vector<1x16x128xf32> to vector<16x128xf32>
    %127 = vector.extract_strided_slice %106 {offsets = [0, 256], sizes = [16, 128], strides = [1, 1]} : vector<16x384xf32> to vector<16x128xf32>
    %128 = arith.addf %127, %79 : vector<16x128xf32>
    %129 = arith.mulf %115, %128 : vector<16x128xf32>
    %130 = arith.addf %126, %129 : vector<16x128xf32>
    %131 = math.tanh %130 : vector<16x128xf32>
    %cst_82 = arith.constant 1.000000e+00 : f32
    %132 = vector.broadcast %cst_82 : f32 to vector<16x128xf32>
    %133 = arith.subf %132, %124 : vector<16x128xf32>
    %134 = arith.mulf %133, %131 : vector<16x128xf32>
    %135 = arith.mulf %124, %101 : vector<16x128xf32>
    %136 = arith.addf %134, %135 : vector<16x128xf32>
    %c1_83 = arith.constant 1 : index
    %c0_84 = arith.constant 0 : index
    %c0_85 = arith.constant 0 : index
    %137 = vector.load %arg8[%c1_83, %c0_84, %c0_85] : memref<8x16x128xf32, #tpu.memory_space<vmem>>, vector<1x16x128xf32>
    %138 = vector.shape_cast %137 : vector<1x16x128xf32> to vector<16x128xf32>
    %139 = vector.shape_cast %136 : vector<16x128xf32> to vector<1x16x128xf32>
    tpu.vector_store %arg8[%c1_83, %c0_84, %c0_85], %139 {strides = array<i32>} : memref<8x16x128xf32, #tpu.memory_space<vmem>>, vector<1x16x128xf32>,
    %140 = arith.truncf %136 : vector<16x128xf32> to vector<16x128xbf16>
    %cst_86 = arith.constant dense<0.000000e+00> : vector<16x384xf32>
    %141 = tpu.matmul %140, %76, %cst_86 {dimension_numbers = #tpu.dot_dimension_numbers<[1], [0], [0], [1], [0, 0, 1, 1], [], []>} : vector<16x128xbf16>, vector<128x384xbf16>, vector<16x384xf32> -> vector<16x384xf32>
    %c2_87 = arith.constant 2 : index
    %c0_88 = arith.constant 0 : index
    %c0_89 = arith.constant 0 : index
    %142 = vector.load %arg7[%c2_87, %c0_88, %c0_89] : memref<8x16x384xf32, #tpu.memory_space<vmem>>, vector<1x16x128xf32>
    %143 = vector.shape_cast %142 : vector<1x16x128xf32> to vector<16x128xf32>
    %144 = vector.extract_strided_slice %141 {offsets = [0, 0], sizes = [16, 128], strides = [1, 1]} : vector<16x384xf32> to vector<16x128xf32>
    %145 = arith.addf %143, %144 : vector<16x128xf32>
    %146 = arith.negf %145 : vector<16x128xf32>
    %147 = math.exp %146 : vector<16x128xf32>
    %cst_90 = arith.constant 1.000000e+00 : f32
    %148 = vector.broadcast %cst_90 : f32 to vector<16x128xf32>
    %149 = arith.addf %148, %147 : vector<16x128xf32>
    %150 = arith.divf %148, %149 : vector<16x128xf32>
    %c2_91 = arith.constant 2 : index
    %c0_92 = arith.constant 0 : index
    %c128_93 = arith.constant 128 : index
    %151 = vector.load %arg7[%c2_91, %c0_92, %c128_93] : memref<8x16x384xf32, #tpu.memory_space<vmem>>, vector<1x16x128xf32>
    %152 = vector.shape_cast %151 : vector<1x16x128xf32> to vector<16x128xf32>
    %153 = vector.extract_strided_slice %141 {offsets = [0, 128], sizes = [16, 128], strides = [1, 1]} : vector<16x384xf32> to vector<16x128xf32>
    %154 = arith.addf %152, %153 : vector<16x128xf32>
    %155 = arith.negf %154 : vector<16x128xf32>
    %156 = math.exp %155 : vector<16x128xf32>
    %cst_94 = arith.constant 1.000000e+00 : f32
    %157 = vector.broadcast %cst_94 : f32 to vector<16x128xf32>
    %158 = arith.addf %157, %156 : vector<16x128xf32>
    %159 = arith.divf %157, %158 : vector<16x128xf32>
    %c2_95 = arith.constant 2 : index
    %c0_96 = arith.constant 0 : index
    %c256_97 = arith.constant 256 : index
    %160 = vector.load %arg7[%c2_95, %c0_96, %c256_97] : memref<8x16x384xf32, #tpu.memory_space<vmem>>, vector<1x16x128xf32>
    %161 = vector.shape_cast %160 : vector<1x16x128xf32> to vector<16x128xf32>
    %162 = vector.extract_strided_slice %141 {offsets = [0, 256], sizes = [16, 128], strides = [1, 1]} : vector<16x384xf32> to vector<16x128xf32>
    %163 = arith.addf %162, %79 : vector<16x128xf32>
    %164 = arith.mulf %150, %163 : vector<16x128xf32>
    %165 = arith.addf %161, %164 : vector<16x128xf32>
    %166 = math.tanh %165 : vector<16x128xf32>
    %cst_98 = arith.constant 1.000000e+00 : f32
    %167 = vector.broadcast %cst_98 : f32 to vector<16x128xf32>
    %168 = arith.subf %167, %159 : vector<16x128xf32>
    %169 = arith.mulf %168, %166 : vector<16x128xf32>
    %170 = arith.mulf %159, %136 : vector<16x128xf32>
    %171 = arith.addf %169, %170 : vector<16x128xf32>
    %c2_99 = arith.constant 2 : index
    %c0_100 = arith.constant 0 : index
    %c0_101 = arith.constant 0 : index
    %172 = vector.load %arg8[%c2_99, %c0_100, %c0_101] : memref<8x16x128xf32, #tpu.memory_space<vmem>>, vector<1x16x128xf32>
    %173 = vector.shape_cast %172 : vector<1x16x128xf32> to vector<16x128xf32>
    %174 = vector.shape_cast %171 : vector<16x128xf32> to vector<1x16x128xf32>
    tpu.vector_store %arg8[%c2_99, %c0_100, %c0_101], %174 {strides = array<i32>} : memref<8x16x128xf32, #tpu.memory_space<vmem>>, vector<1x16x128xf32>,
    %175 = arith.truncf %171 : vector<16x128xf32> to vector<16x128xbf16>
    %cst_102 = arith.constant dense<0.000000e+00> : vector<16x384xf32>
    %176 = tpu.matmul %175, %76, %cst_102 {dimension_numbers = #tpu.dot_dimension_numbers<[1], [0], [0], [1], [0, 0, 1, 1], [], []>} : vector<16x128xbf16>, vector<128x384xbf16>, vector<16x384xf32> -> vector<16x384xf32>
    %c3_103 = arith.constant 3 : index
    %c0_104 = arith.constant 0 : index
    %c0_105 = arith.constant 0 : index
    %177 = vector.load %arg7[%c3_103, %c0_104, %c0_105] : memref<8x16x384xf32, #tpu.memory_space<vmem>>, vector<1x16x128xf32>
    %178 = vector.shape_cast %177 : vector<1x16x128xf32> to vector<16x128xf32>
    %179 = vector.extract_strided_slice %176 {offsets = [0, 0], sizes = [16, 128], strides = [1, 1]} : vector<16x384xf32> to vector<16x128xf32>
    %180 = arith.addf %178, %179 : vector<16x128xf32>
    %181 = arith.negf %180 : vector<16x128xf32>
    %182 = math.exp %181 : vector<16x128xf32>
    %cst_106 = arith.constant 1.000000e+00 : f32
    %183 = vector.broadcast %cst_106 : f32 to vector<16x128xf32>
    %184 = arith.addf %183, %182 : vector<16x128xf32>
    %185 = arith.divf %183, %184 : vector<16x128xf32>
    %c3_107 = arith.constant 3 : index
    %c0_108 = arith.constant 0 : index
    %c128_109 = arith.constant 128 : index
    %186 = vector.load %arg7[%c3_107, %c0_108, %c128_109] : memref<8x16x384xf32, #tpu.memory_space<vmem>>, vector<1x16x128xf32>
    %187 = vector.shape_cast %186 : vector<1x16x128xf32> to vector<16x128xf32>
    %188 = vector.extract_strided_slice %176 {offsets = [0, 128], sizes = [16, 128], strides = [1, 1]} : vector<16x384xf32> to vector<16x128xf32>
    %189 = arith.addf %187, %188 : vector<16x128xf32>
    %190 = arith.negf %189 : vector<16x128xf32>
    %191 = math.exp %190 : vector<16x128xf32>
    %cst_110 = arith.constant 1.000000e+00 : f32
    %192 = vector.broadcast %cst_110 : f32 to vector<16x128xf32>
    %193 = arith.addf %192, %191 : vector<16x128xf32>
    %194 = arith.divf %192, %193 : vector<16x128xf32>
    %c3_111 = arith.constant 3 : index
    %c0_112 = arith.constant 0 : index
    %c256_113 = arith.constant 256 : index
    %195 = vector.load %arg7[%c3_111, %c0_112, %c256_113] : memref<8x16x384xf32, #tpu.memory_space<vmem>>, vector<1x16x128xf32>
    %196 = vector.shape_cast %195 : vector<1x16x128xf32> to vector<16x128xf32>
    %197 = vector.extract_strided_slice %176 {offsets = [0, 256], sizes = [16, 128], strides = [1, 1]} : vector<16x384xf32> to vector<16x128xf32>
    %198 = arith.addf %197, %79 : vector<16x128xf32>
    %199 = arith.mulf %185, %198 : vector<16x128xf32>
    %200 = arith.addf %196, %199 : vector<16x128xf32>
    %201 = math.tanh %200 : vector<16x128xf32>
    %cst_114 = arith.constant 1.000000e+00 : f32
    %202 = vector.broadcast %cst_114 : f32 to vector<16x128xf32>
    %203 = arith.subf %202, %194 : vector<16x128xf32>
    %204 = arith.mulf %203, %201 : vector<16x128xf32>
    %205 = arith.mulf %194, %171 : vector<16x128xf32>
    %206 = arith.addf %204, %205 : vector<16x128xf32>
    %c3_115 = arith.constant 3 : index
    %c0_116 = arith.constant 0 : index
    %c0_117 = arith.constant 0 : index
    %207 = vector.load %arg8[%c3_115, %c0_116, %c0_117] : memref<8x16x128xf32, #tpu.memory_space<vmem>>, vector<1x16x128xf32>
    %208 = vector.shape_cast %207 : vector<1x16x128xf32> to vector<16x128xf32>
    %209 = vector.shape_cast %206 : vector<16x128xf32> to vector<1x16x128xf32>
    tpu.vector_store %arg8[%c3_115, %c0_116, %c0_117], %209 {strides = array<i32>} : memref<8x16x128xf32, #tpu.memory_space<vmem>>, vector<1x16x128xf32>,
    %210 = arith.truncf %206 : vector<16x128xf32> to vector<16x128xbf16>
    %cst_118 = arith.constant dense<0.000000e+00> : vector<16x384xf32>
    %211 = tpu.matmul %210, %76, %cst_118 {dimension_numbers = #tpu.dot_dimension_numbers<[1], [0], [0], [1], [0, 0, 1, 1], [], []>} : vector<16x128xbf16>, vector<128x384xbf16>, vector<16x384xf32> -> vector<16x384xf32>
    %c4_119 = arith.constant 4 : index
    %c0_120 = arith.constant 0 : index
    %c0_121 = arith.constant 0 : index
    %212 = vector.load %arg7[%c4_119, %c0_120, %c0_121] : memref<8x16x384xf32, #tpu.memory_space<vmem>>, vector<1x16x128xf32>
    %213 = vector.shape_cast %212 : vector<1x16x128xf32> to vector<16x128xf32>
    %214 = vector.extract_strided_slice %211 {offsets = [0, 0], sizes = [16, 128], strides = [1, 1]} : vector<16x384xf32> to vector<16x128xf32>
    %215 = arith.addf %213, %214 : vector<16x128xf32>
    %216 = arith.negf %215 : vector<16x128xf32>
    %217 = math.exp %216 : vector<16x128xf32>
    %cst_122 = arith.constant 1.000000e+00 : f32
    %218 = vector.broadcast %cst_122 : f32 to vector<16x128xf32>
    %219 = arith.addf %218, %217 : vector<16x128xf32>
    %220 = arith.divf %218, %219 : vector<16x128xf32>
    %c4_123 = arith.constant 4 : index
    %c0_124 = arith.constant 0 : index
    %c128_125 = arith.constant 128 : index
    %221 = vector.load %arg7[%c4_123, %c0_124, %c128_125] : memref<8x16x384xf32, #tpu.memory_space<vmem>>, vector<1x16x128xf32>
    %222 = vector.shape_cast %221 : vector<1x16x128xf32> to vector<16x128xf32>
    %223 = vector.extract_strided_slice %211 {offsets = [0, 128], sizes = [16, 128], strides = [1, 1]} : vector<16x384xf32> to vector<16x128xf32>
    %224 = arith.addf %222, %223 : vector<16x128xf32>
    %225 = arith.negf %224 : vector<16x128xf32>
    %226 = math.exp %225 : vector<16x128xf32>
    %cst_126 = arith.constant 1.000000e+00 : f32
    %227 = vector.broadcast %cst_126 : f32 to vector<16x128xf32>
    %228 = arith.addf %227, %226 : vector<16x128xf32>
    %229 = arith.divf %227, %228 : vector<16x128xf32>
    %c4_127 = arith.constant 4 : index
    %c0_128 = arith.constant 0 : index
    %c256_129 = arith.constant 256 : index
    %230 = vector.load %arg7[%c4_127, %c0_128, %c256_129] : memref<8x16x384xf32, #tpu.memory_space<vmem>>, vector<1x16x128xf32>
    %231 = vector.shape_cast %230 : vector<1x16x128xf32> to vector<16x128xf32>
    %232 = vector.extract_strided_slice %211 {offsets = [0, 256], sizes = [16, 128], strides = [1, 1]} : vector<16x384xf32> to vector<16x128xf32>
    %233 = arith.addf %232, %79 : vector<16x128xf32>
    %234 = arith.mulf %220, %233 : vector<16x128xf32>
    %235 = arith.addf %231, %234 : vector<16x128xf32>
    %236 = math.tanh %235 : vector<16x128xf32>
    %cst_130 = arith.constant 1.000000e+00 : f32
    %237 = vector.broadcast %cst_130 : f32 to vector<16x128xf32>
    %238 = arith.subf %237, %229 : vector<16x128xf32>
    %239 = arith.mulf %238, %236 : vector<16x128xf32>
    %240 = arith.mulf %229, %206 : vector<16x128xf32>
    %241 = arith.addf %239, %240 : vector<16x128xf32>
    %c4_131 = arith.constant 4 : index
    %c0_132 = arith.constant 0 : index
    %c0_133 = arith.constant 0 : index
    %242 = vector.load %arg8[%c4_131, %c0_132, %c0_133] : memref<8x16x128xf32, #tpu.memory_space<vmem>>, vector<1x16x128xf32>
    %243 = vector.shape_cast %242 : vector<1x16x128xf32> to vector<16x128xf32>
    %244 = vector.shape_cast %241 : vector<16x128xf32> to vector<1x16x128xf32>
    tpu.vector_store %arg8[%c4_131, %c0_132, %c0_133], %244 {strides = array<i32>} : memref<8x16x128xf32, #tpu.memory_space<vmem>>, vector<1x16x128xf32>,
    %245 = arith.truncf %241 : vector<16x128xf32> to vector<16x128xbf16>
    %cst_134 = arith.constant dense<0.000000e+00> : vector<16x384xf32>
    %246 = tpu.matmul %245, %76, %cst_134 {dimension_numbers = #tpu.dot_dimension_numbers<[1], [0], [0], [1], [0, 0, 1, 1], [], []>} : vector<16x128xbf16>, vector<128x384xbf16>, vector<16x384xf32> -> vector<16x384xf32>
    %c5_135 = arith.constant 5 : index
    %c0_136 = arith.constant 0 : index
    %c0_137 = arith.constant 0 : index
    %247 = vector.load %arg7[%c5_135, %c0_136, %c0_137] : memref<8x16x384xf32, #tpu.memory_space<vmem>>, vector<1x16x128xf32>
    %248 = vector.shape_cast %247 : vector<1x16x128xf32> to vector<16x128xf32>
    %249 = vector.extract_strided_slice %246 {offsets = [0, 0], sizes = [16, 128], strides = [1, 1]} : vector<16x384xf32> to vector<16x128xf32>
    %250 = arith.addf %248, %249 : vector<16x128xf32>
    %251 = arith.negf %250 : vector<16x128xf32>
    %252 = math.exp %251 : vector<16x128xf32>
    %cst_138 = arith.constant 1.000000e+00 : f32
    %253 = vector.broadcast %cst_138 : f32 to vector<16x128xf32>
    %254 = arith.addf %253, %252 : vector<16x128xf32>
    %255 = arith.divf %253, %254 : vector<16x128xf32>
    %c5_139 = arith.constant 5 : index
    %c0_140 = arith.constant 0 : index
    %c128_141 = arith.constant 128 : index
    %256 = vector.load %arg7[%c5_139, %c0_140, %c128_141] : memref<8x16x384xf32, #tpu.memory_space<vmem>>, vector<1x16x128xf32>
    %257 = vector.shape_cast %256 : vector<1x16x128xf32> to vector<16x128xf32>
    %258 = vector.extract_strided_slice %246 {offsets = [0, 128], sizes = [16, 128], strides = [1, 1]} : vector<16x384xf32> to vector<16x128xf32>
    %259 = arith.addf %257, %258 : vector<16x128xf32>
    %260 = arith.negf %259 : vector<16x128xf32>
    %261 = math.exp %260 : vector<16x128xf32>
    %cst_142 = arith.constant 1.000000e+00 : f32
    %262 = vector.broadcast %cst_142 : f32 to vector<16x128xf32>
    %263 = arith.addf %262, %261 : vector<16x128xf32>
    %264 = arith.divf %262, %263 : vector<16x128xf32>
    %c5_143 = arith.constant 5 : index
    %c0_144 = arith.constant 0 : index
    %c256_145 = arith.constant 256 : index
    %265 = vector.load %arg7[%c5_143, %c0_144, %c256_145] : memref<8x16x384xf32, #tpu.memory_space<vmem>>, vector<1x16x128xf32>
    %266 = vector.shape_cast %265 : vector<1x16x128xf32> to vector<16x128xf32>
    %267 = vector.extract_strided_slice %246 {offsets = [0, 256], sizes = [16, 128], strides = [1, 1]} : vector<16x384xf32> to vector<16x128xf32>
    %268 = arith.addf %267, %79 : vector<16x128xf32>
    %269 = arith.mulf %255, %268 : vector<16x128xf32>
    %270 = arith.addf %266, %269 : vector<16x128xf32>
    %271 = math.tanh %270 : vector<16x128xf32>
    %cst_146 = arith.constant 1.000000e+00 : f32
    %272 = vector.broadcast %cst_146 : f32 to vector<16x128xf32>
    %273 = arith.subf %272, %264 : vector<16x128xf32>
    %274 = arith.mulf %273, %271 : vector<16x128xf32>
    %275 = arith.mulf %264, %241 : vector<16x128xf32>
    %276 = arith.addf %274, %275 : vector<16x128xf32>
    %c5_147 = arith.constant 5 : index
    %c0_148 = arith.constant 0 : index
    %c0_149 = arith.constant 0 : index
    %277 = vector.load %arg8[%c5_147, %c0_148, %c0_149] : memref<8x16x128xf32, #tpu.memory_space<vmem>>, vector<1x16x128xf32>
    %278 = vector.shape_cast %277 : vector<1x16x128xf32> to vector<16x128xf32>
    %279 = vector.shape_cast %276 : vector<16x128xf32> to vector<1x16x128xf32>
    tpu.vector_store %arg8[%c5_147, %c0_148, %c0_149], %279 {strides = array<i32>} : memref<8x16x128xf32, #tpu.memory_space<vmem>>, vector<1x16x128xf32>,
    %280 = arith.truncf %276 : vector<16x128xf32> to vector<16x128xbf16>
    %cst_150 = arith.constant dense<0.000000e+00> : vector<16x384xf32>
    %281 = tpu.matmul %280, %76, %cst_150 {dimension_numbers = #tpu.dot_dimension_numbers<[1], [0], [0], [1], [0, 0, 1, 1], [], []>} : vector<16x128xbf16>, vector<128x384xbf16>, vector<16x384xf32> -> vector<16x384xf32>
    %c6_151 = arith.constant 6 : index
    %c0_152 = arith.constant 0 : index
    %c0_153 = arith.constant 0 : index
    %282 = vector.load %arg7[%c6_151, %c0_152, %c0_153] : memref<8x16x384xf32, #tpu.memory_space<vmem>>, vector<1x16x128xf32>
    %283 = vector.shape_cast %282 : vector<1x16x128xf32> to vector<16x128xf32>
    %284 = vector.extract_strided_slice %281 {offsets = [0, 0], sizes = [16, 128], strides = [1, 1]} : vector<16x384xf32> to vector<16x128xf32>
    %285 = arith.addf %283, %284 : vector<16x128xf32>
    %286 = arith.negf %285 : vector<16x128xf32>
    %287 = math.exp %286 : vector<16x128xf32>
    %cst_154 = arith.constant 1.000000e+00 : f32
    %288 = vector.broadcast %cst_154 : f32 to vector<16x128xf32>
    %289 = arith.addf %288, %287 : vector<16x128xf32>
    %290 = arith.divf %288, %289 : vector<16x128xf32>
    %c6_155 = arith.constant 6 : index
    %c0_156 = arith.constant 0 : index
    %c128_157 = arith.constant 128 : index
    %291 = vector.load %arg7[%c6_155, %c0_156, %c128_157] : memref<8x16x384xf32, #tpu.memory_space<vmem>>, vector<1x16x128xf32>
    %292 = vector.shape_cast %291 : vector<1x16x128xf32> to vector<16x128xf32>
    %293 = vector.extract_strided_slice %281 {offsets = [0, 128], sizes = [16, 128], strides = [1, 1]} : vector<16x384xf32> to vector<16x128xf32>
    %294 = arith.addf %292, %293 : vector<16x128xf32>
    %295 = arith.negf %294 : vector<16x128xf32>
    %296 = math.exp %295 : vector<16x128xf32>
    %cst_158 = arith.constant 1.000000e+00 : f32
    %297 = vector.broadcast %cst_158 : f32 to vector<16x128xf32>
    %298 = arith.addf %297, %296 : vector<16x128xf32>
    %299 = arith.divf %297, %298 : vector<16x128xf32>
    %c6_159 = arith.constant 6 : index
    %c0_160 = arith.constant 0 : index
    %c256_161 = arith.constant 256 : index
    %300 = vector.load %arg7[%c6_159, %c0_160, %c256_161] : memref<8x16x384xf32, #tpu.memory_space<vmem>>, vector<1x16x128xf32>
    %301 = vector.shape_cast %300 : vector<1x16x128xf32> to vector<16x128xf32>
    %302 = vector.extract_strided_slice %281 {offsets = [0, 256], sizes = [16, 128], strides = [1, 1]} : vector<16x384xf32> to vector<16x128xf32>
    %303 = arith.addf %302, %79 : vector<16x128xf32>
    %304 = arith.mulf %290, %303 : vector<16x128xf32>
    %305 = arith.addf %301, %304 : vector<16x128xf32>
    %306 = math.tanh %305 : vector<16x128xf32>
    %cst_162 = arith.constant 1.000000e+00 : f32
    %307 = vector.broadcast %cst_162 : f32 to vector<16x128xf32>
    %308 = arith.subf %307, %299 : vector<16x128xf32>
    %309 = arith.mulf %308, %306 : vector<16x128xf32>
    %310 = arith.mulf %299, %276 : vector<16x128xf32>
    %311 = arith.addf %309, %310 : vector<16x128xf32>
    %c6_163 = arith.constant 6 : index
    %c0_164 = arith.constant 0 : index
    %c0_165 = arith.constant 0 : index
    %312 = vector.load %arg8[%c6_163, %c0_164, %c0_165] : memref<8x16x128xf32, #tpu.memory_space<vmem>>, vector<1x16x128xf32>
    %313 = vector.shape_cast %312 : vector<1x16x128xf32> to vector<16x128xf32>
    %314 = vector.shape_cast %311 : vector<16x128xf32> to vector<1x16x128xf32>
    tpu.vector_store %arg8[%c6_163, %c0_164, %c0_165], %314 {strides = array<i32>} : memref<8x16x128xf32, #tpu.memory_space<vmem>>, vector<1x16x128xf32>,
    %315 = arith.truncf %311 : vector<16x128xf32> to vector<16x128xbf16>
    %cst_166 = arith.constant dense<0.000000e+00> : vector<16x384xf32>
    %316 = tpu.matmul %315, %76, %cst_166 {dimension_numbers = #tpu.dot_dimension_numbers<[1], [0], [0], [1], [0, 0, 1, 1], [], []>} : vector<16x128xbf16>, vector<128x384xbf16>, vector<16x384xf32> -> vector<16x384xf32>
    %c7_167 = arith.constant 7 : index
    %c0_168 = arith.constant 0 : index
    %c0_169 = arith.constant 0 : index
    %317 = vector.load %arg7[%c7_167, %c0_168, %c0_169] : memref<8x16x384xf32, #tpu.memory_space<vmem>>, vector<1x16x128xf32>
    %318 = vector.shape_cast %317 : vector<1x16x128xf32> to vector<16x128xf32>
    %319 = vector.extract_strided_slice %316 {offsets = [0, 0], sizes = [16, 128], strides = [1, 1]} : vector<16x384xf32> to vector<16x128xf32>
    %320 = arith.addf %318, %319 : vector<16x128xf32>
    %321 = arith.negf %320 : vector<16x128xf32>
    %322 = math.exp %321 : vector<16x128xf32>
    %cst_170 = arith.constant 1.000000e+00 : f32
    %323 = vector.broadcast %cst_170 : f32 to vector<16x128xf32>
    %324 = arith.addf %323, %322 : vector<16x128xf32>
    %325 = arith.divf %323, %324 : vector<16x128xf32>
    %c7_171 = arith.constant 7 : index
    %c0_172 = arith.constant 0 : index
    %c128_173 = arith.constant 128 : index
    %326 = vector.load %arg7[%c7_171, %c0_172, %c128_173] : memref<8x16x384xf32, #tpu.memory_space<vmem>>, vector<1x16x128xf32>
    %327 = vector.shape_cast %326 : vector<1x16x128xf32> to vector<16x128xf32>
    %328 = vector.extract_strided_slice %316 {offsets = [0, 128], sizes = [16, 128], strides = [1, 1]} : vector<16x384xf32> to vector<16x128xf32>
    %329 = arith.addf %327, %328 : vector<16x128xf32>
    %330 = arith.negf %329 : vector<16x128xf32>
    %331 = math.exp %330 : vector<16x128xf32>
    %cst_174 = arith.constant 1.000000e+00 : f32
    %332 = vector.broadcast %cst_174 : f32 to vector<16x128xf32>
    %333 = arith.addf %332, %331 : vector<16x128xf32>
    %334 = arith.divf %332, %333 : vector<16x128xf32>
    %c7_175 = arith.constant 7 : index
    %c0_176 = arith.constant 0 : index
    %c256_177 = arith.constant 256 : index
    %335 = vector.load %arg7[%c7_175, %c0_176, %c256_177] : memref<8x16x384xf32, #tpu.memory_space<vmem>>, vector<1x16x128xf32>
    %336 = vector.shape_cast %335 : vector<1x16x128xf32> to vector<16x128xf32>
    %337 = vector.extract_strided_slice %316 {offsets = [0, 256], sizes = [16, 128], strides = [1, 1]} : vector<16x384xf32> to vector<16x128xf32>
    %338 = arith.addf %337, %79 : vector<16x128xf32>
    %339 = arith.mulf %325, %338 : vector<16x128xf32>
    %340 = arith.addf %336, %339 : vector<16x128xf32>
    %341 = math.tanh %340 : vector<16x128xf32>
    %cst_178 = arith.constant 1.000000e+00 : f32
    %342 = vector.broadcast %cst_178 : f32 to vector<16x128xf32>
    %343 = arith.subf %342, %334 : vector<16x128xf32>
    %344 = arith.mulf %343, %341 : vector<16x128xf32>
    %345 = arith.mulf %334, %311 : vector<16x128xf32>
    %346 = arith.addf %344, %345 : vector<16x128xf32>
    %c7_179 = arith.constant 7 : index
    %c0_180 = arith.constant 0 : index
    %c0_181 = arith.constant 0 : index
    %347 = vector.load %arg8[%c7_179, %c0_180, %c0_181] : memref<8x16x128xf32, #tpu.memory_space<vmem>>, vector<1x16x128xf32>
    %348 = vector.shape_cast %347 : vector<1x16x128xf32> to vector<16x128xf32>
    %349 = vector.shape_cast %346 : vector<16x128xf32> to vector<1x16x128xf32>
    tpu.vector_store %arg8[%c7_179, %c0_180, %c0_181], %349 {strides = array<i32>} : memref<8x16x128xf32, #tpu.memory_space<vmem>>, vector<1x16x128xf32>,
    %350 = tpu.iota {dimensions = array<i32: 1>} : vector<16x128xi32>
    %c64_i32_182 = arith.constant 64 : i32
    %351 = vector.broadcast %c64_i32_182 : i32 to vector<16x128xi32>
    %352 = arith.cmpi slt, %350, %351 : vector<16x128xi32>
    %c0_183 = arith.constant 0 : index
    %c0_184 = arith.constant 0 : index
    %c0_185 = arith.constant 0 : index
    %353 = vector.load %arg8[%c0_183, %c0_184, %c0_185] : memref<8x16x128xf32, #tpu.memory_space<vmem>>, vector<1x16x128xf32>
    %354 = vector.shape_cast %353 : vector<1x16x128xf32> to vector<16x128xf32>
    %c7_186 = arith.constant 7 : index
    %c0_187 = arith.constant 0 : index
    %c0_188 = arith.constant 0 : index
    %355 = vector.load %arg8[%c7_186, %c0_187, %c0_188] : memref<8x16x128xf32, #tpu.memory_space<vmem>>, vector<1x16x128xf32>
    %356 = vector.shape_cast %355 : vector<1x16x128xf32> to vector<16x128xf32>
    %357 = arith.select %352, %354, %356 : vector<16x128xi1>, vector<16x128xf32>
    %358 = arith.truncf %357 : vector<16x128xf32> to vector<16x128xbf16>
    %c0_189 = arith.constant 0 : index
    %c0_190 = arith.constant 0 : index
    %c0_191 = arith.constant 0 : index
    %359 = vector.load %arg6[%c0_189, %c0_190, %c0_191] : memref<8x16x128xbf16, #tpu.memory_space<vmem>>, vector<1x16x128xbf16>
    %360 = vector.shape_cast %359 : vector<1x16x128xbf16> to vector<16x128xbf16>
    %361 = vector.shape_cast %358 : vector<16x128xbf16> to vector<1x16x128xbf16>
    tpu.vector_store %arg6[%c0_189, %c0_190, %c0_191], %361 {strides = array<i32>} : memref<8x16x128xbf16, #tpu.memory_space<vmem>>, vector<1x16x128xbf16>,
    %c1_192 = arith.constant 1 : index
    %c0_193 = arith.constant 0 : index
    %c0_194 = arith.constant 0 : index
    %362 = vector.load %arg8[%c1_192, %c0_193, %c0_194] : memref<8x16x128xf32, #tpu.memory_space<vmem>>, vector<1x16x128xf32>
    %363 = vector.shape_cast %362 : vector<1x16x128xf32> to vector<16x128xf32>
    %c6_195 = arith.constant 6 : index
    %c0_196 = arith.constant 0 : index
    %c0_197 = arith.constant 0 : index
    %364 = vector.load %arg8[%c6_195, %c0_196, %c0_197] : memref<8x16x128xf32, #tpu.memory_space<vmem>>, vector<1x16x128xf32>
    %365 = vector.shape_cast %364 : vector<1x16x128xf32> to vector<16x128xf32>
    %366 = arith.select %352, %363, %365 : vector<16x128xi1>, vector<16x128xf32>
    %367 = arith.truncf %366 : vector<16x128xf32> to vector<16x128xbf16>
    %c1_198 = arith.constant 1 : index
    %c0_199 = arith.constant 0 : index
    %c0_200 = arith.constant 0 : index
    %368 = vector.load %arg6[%c1_198, %c0_199, %c0_200] : memref<8x16x128xbf16, #tpu.memory_space<vmem>>, vector<1x16x128xbf16>
    %369 = vector.shape_cast %368 : vector<1x16x128xbf16> to vector<16x128xbf16>
    %370 = vector.shape_cast %367 : vector<16x128xbf16> to vector<1x16x128xbf16>
    tpu.vector_store %arg6[%c1_198, %c0_199, %c0_200], %370 {strides = array<i32>} : memref<8x16x128xbf16, #tpu.memory_space<vmem>>, vector<1x16x128xbf16>,
    %c2_201 = arith.constant 2 : index
    %c0_202 = arith.constant 0 : index
    %c0_203 = arith.constant 0 : index
    %371 = vector.load %arg8[%c2_201, %c0_202, %c0_203] : memref<8x16x128xf32, #tpu.memory_space<vmem>>, vector<1x16x128xf32>
    %372 = vector.shape_cast %371 : vector<1x16x128xf32> to vector<16x128xf32>
    %c5_204 = arith.constant 5 : index
    %c0_205 = arith.constant 0 : index
    %c0_206 = arith.constant 0 : index
    %373 = vector.load %arg8[%c5_204, %c0_205, %c0_206] : memref<8x16x128xf32, #tpu.memory_space<vmem>>, vector<1x16x128xf32>
    %374 = vector.shape_cast %373 : vector<1x16x128xf32> to vector<16x128xf32>
    %375 = arith.select %352, %372, %374 : vector<16x128xi1>, vector<16x128xf32>
    %376 = arith.truncf %375 : vector<16x128xf32> to vector<16x128xbf16>
    %c2_207 = arith.constant 2 : index
    %c0_208 = arith.constant 0 : index
    %c0_209 = arith.constant 0 : index
    %377 = vector.load %arg6[%c2_207, %c0_208, %c0_209] : memref<8x16x128xbf16, #tpu.memory_space<vmem>>, vector<1x16x128xbf16>
    %378 = vector.shape_cast %377 : vector<1x16x128xbf16> to vector<16x128xbf16>
    %379 = vector.shape_cast %376 : vector<16x128xbf16> to vector<1x16x128xbf16>
    tpu.vector_store %arg6[%c2_207, %c0_208, %c0_209], %379 {strides = array<i32>} : memref<8x16x128xbf16, #tpu.memory_space<vmem>>, vector<1x16x128xbf16>,
    %c3_210 = arith.constant 3 : index
    %c0_211 = arith.constant 0 : index
    %c0_212 = arith.constant 0 : index
    %380 = vector.load %arg8[%c3_210, %c0_211, %c0_212] : memref<8x16x128xf32, #tpu.memory_space<vmem>>, vector<1x16x128xf32>
    %381 = vector.shape_cast %380 : vector<1x16x128xf32> to vector<16x128xf32>
    %c4_213 = arith.constant 4 : index
    %c0_214 = arith.constant 0 : index
    %c0_215 = arith.constant 0 : index
    %382 = vector.load %arg8[%c4_213, %c0_214, %c0_215] : memref<8x16x128xf32, #tpu.memory_space<vmem>>, vector<1x16x128xf32>
    %383 = vector.shape_cast %382 : vector<1x16x128xf32> to vector<16x128xf32>
    %384 = arith.select %352, %381, %383 : vector<16x128xi1>, vector<16x128xf32>
    %385 = arith.truncf %384 : vector<16x128xf32> to vector<16x128xbf16>
    %c3_216 = arith.constant 3 : index
    %c0_217 = arith.constant 0 : index
    %c0_218 = arith.constant 0 : index
    %386 = vector.load %arg6[%c3_216, %c0_217, %c0_218] : memref<8x16x128xbf16, #tpu.memory_space<vmem>>, vector<1x16x128xbf16>
    %387 = vector.shape_cast %386 : vector<1x16x128xbf16> to vector<16x128xbf16>
    %388 = vector.shape_cast %385 : vector<16x128xbf16> to vector<1x16x128xbf16>
    tpu.vector_store %arg6[%c3_216, %c0_217, %c0_218], %388 {strides = array<i32>} : memref<8x16x128xbf16, #tpu.memory_space<vmem>>, vector<1x16x128xbf16>,
    %c4_219 = arith.constant 4 : index
    %c0_220 = arith.constant 0 : index
    %c0_221 = arith.constant 0 : index
    %389 = vector.load %arg8[%c4_219, %c0_220, %c0_221] : memref<8x16x128xf32, #tpu.memory_space<vmem>>, vector<1x16x128xf32>
    %390 = vector.shape_cast %389 : vector<1x16x128xf32> to vector<16x128xf32>
    %c3_222 = arith.constant 3 : index
    %c0_223 = arith.constant 0 : index
    %c0_224 = arith.constant 0 : index
    %391 = vector.load %arg8[%c3_222, %c0_223, %c0_224] : memref<8x16x128xf32, #tpu.memory_space<vmem>>, vector<1x16x128xf32>
    %392 = vector.shape_cast %391 : vector<1x16x128xf32> to vector<16x128xf32>
    %393 = arith.select %352, %390, %392 : vector<16x128xi1>, vector<16x128xf32>
    %394 = arith.truncf %393 : vector<16x128xf32> to vector<16x128xbf16>
    %c4_225 = arith.constant 4 : index
    %c0_226 = arith.constant 0 : index
    %c0_227 = arith.constant 0 : index
    %395 = vector.load %arg6[%c4_225, %c0_226, %c0_227] : memref<8x16x128xbf16, #tpu.memory_space<vmem>>, vector<1x16x128xbf16>
    %396 = vector.shape_cast %395 : vector<1x16x128xbf16> to vector<16x128xbf16>
    %397 = vector.shape_cast %394 : vector<16x128xbf16> to vector<1x16x128xbf16>
    tpu.vector_store %arg6[%c4_225, %c0_226, %c0_227], %397 {strides = array<i32>} : memref<8x16x128xbf16, #tpu.memory_space<vmem>>, vector<1x16x128xbf16>,
    %c5_228 = arith.constant 5 : index
    %c0_229 = arith.constant 0 : index
    %c0_230 = arith.constant 0 : index
    %398 = vector.load %arg8[%c5_228, %c0_229, %c0_230] : memref<8x16x128xf32, #tpu.memory_space<vmem>>, vector<1x16x128xf32>
    %399 = vector.shape_cast %398 : vector<1x16x128xf32> to vector<16x128xf32>
    %c2_231 = arith.constant 2 : index
    %c0_232 = arith.constant 0 : index
    %c0_233 = arith.constant 0 : index
    %400 = vector.load %arg8[%c2_231, %c0_232, %c0_233] : memref<8x16x128xf32, #tpu.memory_space<vmem>>, vector<1x16x128xf32>
    %401 = vector.shape_cast %400 : vector<1x16x128xf32> to vector<16x128xf32>
    %402 = arith.select %352, %399, %401 : vector<16x128xi1>, vector<16x128xf32>
    %403 = arith.truncf %402 : vector<16x128xf32> to vector<16x128xbf16>
    %c5_234 = arith.constant 5 : index
    %c0_235 = arith.constant 0 : index
    %c0_236 = arith.constant 0 : index
    %404 = vector.load %arg6[%c5_234, %c0_235, %c0_236] : memref<8x16x128xbf16, #tpu.memory_space<vmem>>, vector<1x16x128xbf16>
    %405 = vector.shape_cast %404 : vector<1x16x128xbf16> to vector<16x128xbf16>
    %406 = vector.shape_cast %403 : vector<16x128xbf16> to vector<1x16x128xbf16>
    tpu.vector_store %arg6[%c5_234, %c0_235, %c0_236], %406 {strides = array<i32>} : memref<8x16x128xbf16, #tpu.memory_space<vmem>>, vector<1x16x128xbf16>,
    %c6_237 = arith.constant 6 : index
    %c0_238 = arith.constant 0 : index
    %c0_239 = arith.constant 0 : index
    %407 = vector.load %arg8[%c6_237, %c0_238, %c0_239] : memref<8x16x128xf32, #tpu.memory_space<vmem>>, vector<1x16x128xf32>
    %408 = vector.shape_cast %407 : vector<1x16x128xf32> to vector<16x128xf32>
    %c1_240 = arith.constant 1 : index
    %c0_241 = arith.constant 0 : index
    %c0_242 = arith.constant 0 : index
    %409 = vector.load %arg8[%c1_240, %c0_241, %c0_242] : memref<8x16x128xf32, #tpu.memory_space<vmem>>, vector<1x16x128xf32>
    %410 = vector.shape_cast %409 : vector<1x16x128xf32> to vector<16x128xf32>
    %411 = arith.select %352, %408, %410 : vector<16x128xi1>, vector<16x128xf32>
    %412 = arith.truncf %411 : vector<16x128xf32> to vector<16x128xbf16>
    %c6_243 = arith.constant 6 : index
    %c0_244 = arith.constant 0 : index
    %c0_245 = arith.constant 0 : index
    %413 = vector.load %arg6[%c6_243, %c0_244, %c0_245] : memref<8x16x128xbf16, #tpu.memory_space<vmem>>, vector<1x16x128xbf16>
    %414 = vector.shape_cast %413 : vector<1x16x128xbf16> to vector<16x128xbf16>
    %415 = vector.shape_cast %412 : vector<16x128xbf16> to vector<1x16x128xbf16>
    tpu.vector_store %arg6[%c6_243, %c0_244, %c0_245], %415 {strides = array<i32>} : memref<8x16x128xbf16, #tpu.memory_space<vmem>>, vector<1x16x128xbf16>,
    %c7_246 = arith.constant 7 : index
    %c0_247 = arith.constant 0 : index
    %c0_248 = arith.constant 0 : index
    %416 = vector.load %arg8[%c7_246, %c0_247, %c0_248] : memref<8x16x128xf32, #tpu.memory_space<vmem>>, vector<1x16x128xf32>
    %417 = vector.shape_cast %416 : vector<1x16x128xf32> to vector<16x128xf32>
    %c0_249 = arith.constant 0 : index
    %c0_250 = arith.constant 0 : index
    %c0_251 = arith.constant 0 : index
    %418 = vector.load %arg8[%c0_249, %c0_250, %c0_251] : memref<8x16x128xf32, #tpu.memory_space<vmem>>, vector<1x16x128xf32>
    %419 = vector.shape_cast %418 : vector<1x16x128xf32> to vector<16x128xf32>
    %420 = arith.select %352, %417, %419 : vector<16x128xi1>, vector<16x128xf32>
    %421 = arith.truncf %420 : vector<16x128xf32> to vector<16x128xbf16>
    %c7_252 = arith.constant 7 : index
    %c0_253 = arith.constant 0 : index
    %c0_254 = arith.constant 0 : index
    %422 = vector.load %arg6[%c7_252, %c0_253, %c0_254] : memref<8x16x128xbf16, #tpu.memory_space<vmem>>, vector<1x16x128xbf16>
    %423 = vector.shape_cast %422 : vector<1x16x128xbf16> to vector<16x128xbf16>
    %424 = vector.shape_cast %421 : vector<16x128xbf16> to vector<1x16x128xbf16>
    tpu.vector_store %arg6[%c7_252, %c0_253, %c0_254], %424 {strides = array<i32>} : memref<8x16x128xbf16, #tpu.memory_space<vmem>>, vector<1x16x128xbf16>,
    return
  }
  func.func @transform_0(%arg0: i32) -> (i32, i32, i32) {
    %c0_i32 = arith.constant 0 : i32
    %c0_i32_0 = arith.constant 0 : i32
    %c0_i32_1 = arith.constant 0 : i32
    return %c0_i32, %arg0, %c0_i32_0 : i32, i32, i32
  }
  func.func @transform_1(%arg0: i32) -> (i32, i32) {
    %c0_i32 = arith.constant 0 : i32
    %c0_i32_0 = arith.constant 0 : i32
    %c0_i32_1 = arith.constant 0 : i32
    return %c0_i32, %c0_i32_0 : i32, i32
  }
  func.func @transform_2(%arg0: i32) -> (i32, i32) {
    %c0_i32 = arith.constant 0 : i32
    %c0_i32_0 = arith.constant 0 : i32
    %c0_i32_1 = arith.constant 0 : i32
    return %c0_i32, %c0_i32_0 : i32, i32
  }
  func.func @transform_3(%arg0: i32) -> (i32, i32) {
    %c0_i32 = arith.constant 0 : i32
    %c0_i32_0 = arith.constant 0 : i32
    %c0_i32_1 = arith.constant 0 : i32
    return %c0_i32, %c0_i32_0 : i32, i32
  }
  func.func @transform_4(%arg0: i32) -> (i32, i32) {
    %c0_i32 = arith.constant 0 : i32
    %c0_i32_0 = arith.constant 0 : i32
    %c0_i32_1 = arith.constant 0 : i32
    return %c0_i32, %c0_i32_0 : i32, i32
  }
  func.func @transform_5(%arg0: i32) -> (i32, i32, i32) {
    %c0_i32 = arith.constant 0 : i32
    %c0_i32_0 = arith.constant 0 : i32
    %c0_i32_1 = arith.constant 0 : i32
    return %c0_i32, %arg0, %c0_i32_0 : i32, i32, i32
  }
}

module attributes {stable_mosaic.version = 11 : i64} {
  func.func @bigru_layer_kernel(%arg0: i32, %arg1: memref<8x16x128xbf16, #tpu.memory_space<vmem>>, %arg2: memref<128x384xbf16, #tpu.memory_space<vmem>>, %arg3: memref<128x384xbf16, #tpu.memory_space<vmem>>, %arg4: memref<1x384xf32, #tpu.memory_space<vmem>>, %arg5: memref<1x128xf32, #tpu.memory_space<vmem>>, %arg6: memref<8x16x128xf32, #tpu.memory_space<vmem>>, %arg7: memref<8x16x384xf32, #tpu.memory_space<vmem>>, %arg8: memref<8x16x128xf32, #tpu.memory_space<vmem>>) attributes {dimension_semantics = [#tpu.dimension_semantics<parallel>], iteration_bounds = array<i64: 1>, scalar_prefetch = 0 : i64, scratch_operands = 2 : i64, tpu.core_type = #tpu.core_type<tc>, window_params = [{transform_indices = @transform_0, window_bounds = array<i64: 8, 16, 128>}, {pipeline_mode = #tpu.pipeline_mode<synchronous>, transform_indices = @transform_1, window_bounds = array<i64: 128, 384>}, {pipeline_mode = #tpu.pipeline_mode<synchronous>, transform_indices = @transform_2, window_bounds = array<i64: 128, 384>}, {pipeline_mode = #tpu.pipeline_mode<synchronous>, transform_indices = @transform_3, window_bounds = array<i64: 1, 384>}, {pipeline_mode = #tpu.pipeline_mode<synchronous>, transform_indices = @transform_4, window_bounds = array<i64: 1, 128>}, {transform_indices = @transform_5, window_bounds = array<i64: 8, 16, 128>}]} {
    %c0 = arith.constant 0 : index
    %c0_0 = arith.constant 0 : index
    %c0_1 = arith.constant 0 : index
    %0 = vector.load %arg1[%c0, %c0_0, %c0_1] : memref<8x16x128xbf16, #tpu.memory_space<vmem>>, vector<8x16x128xbf16>
    %1 = vector.shape_cast %0 : vector<8x16x128xbf16> to vector<128x128xbf16>
    %c0_2 = arith.constant 0 : index
    %c0_3 = arith.constant 0 : index
    %2 = vector.load %arg2[%c0_2, %c0_3] : memref<128x384xbf16, #tpu.memory_space<vmem>>, vector<128x384xbf16>
    %cst = arith.constant dense<0.000000e+00> : vector<128x384xf32>
    %3 = tpu.matmul %1, %2, %cst {dimension_numbers = #tpu.dot_dimension_numbers<[1], [0], [0], [1], [0, 0, 1, 1], [], []>} : vector<128x128xbf16>, vector<128x384xbf16>, vector<128x384xf32> -> vector<128x384xf32>
    %c0_4 = arith.constant 0 : index
    %c0_5 = arith.constant 0 : index
    %4 = vector.load %arg4[%c0_4, %c0_5] : memref<1x384xf32, #tpu.memory_space<vmem>>, vector<1x384xf32>
    %5 = vector.broadcast %4 : vector<1x384xf32> to vector<128x384xf32>
    %6 = arith.addf %3, %5 : vector<128x384xf32>
    %7 = vector.shape_cast %6 : vector<128x384xf32> to vector<8x16x384xf32>
    %c0_6 = arith.constant 0 : index
    %c0_7 = arith.constant 0 : index
    %c0_8 = arith.constant 0 : index
    %8 = vector.load %arg7[%c0_6, %c0_7, %c0_8] : memref<8x16x384xf32, #tpu.memory_space<vmem>>, vector<8x16x384xf32>
    tpu.vector_store %arg7[%c0_6, %c0_7, %c0_8], %7 {strides = array<i32>} : memref<8x16x384xf32, #tpu.memory_space<vmem>>, vector<8x16x384xf32>,
    %9 = tpu.iota {dimensions = array<i32: 1>} : vector<16x384xi32>
    %c128_i32 = arith.constant 128 : i32
    %c0_i32 = arith.constant 0 : i32
    %10 = arith.cmpi eq, %c128_i32, %c0_i32 : i32
    %c1_i32 = arith.constant 1 : i32
    %11 = arith.select %10, %c1_i32, %c128_i32 : i32
    %12 = vector.broadcast %11 : i32 to vector<16x384xi32>
    %13 = arith.remsi %9, %12 : vector<16x384xi32>
    %c0_i32_9 = arith.constant 0 : i32
    %14 = vector.broadcast %c0_i32_9 : i32 to vector<16x384xi32>
    %15 = arith.cmpi ne, %13, %14 : vector<16x384xi32>
    %c0_i32_10 = arith.constant 0 : i32
    %16 = vector.broadcast %c0_i32_10 : i32 to vector<16x384xi32>
    %17 = arith.cmpi slt, %13, %16 : vector<16x384xi32>
    %c0_i32_11 = arith.constant 0 : i32
    %18 = arith.cmpi slt, %11, %c0_i32_11 : i32
    %19 = vector.broadcast %18 : i1 to vector<16x384xi1>
    %20 = vector.broadcast %19 : vector<16x384xi1> to vector<16x384xi1>
    %21 = arith.xori %17, %20 : vector<16x384xi1>
    %22 = arith.andi %21, %15 : vector<16x384xi1>
    %23 = vector.broadcast %11 : i32 to vector<16x384xi32>
    %24 = arith.addi %13, %23 : vector<16x384xi32>
    %25 = arith.select %22, %24, %13 : vector<16x384xi1>, vector<16x384xi32>
    %c64_i32 = arith.constant 64 : i32
    %26 = vector.broadcast %c64_i32 : i32 to vector<16x384xi32>
    %27 = arith.cmpi slt, %25, %26 : vector<16x384xi32>
    %c0_12 = arith.constant 0 : index
    %c0_13 = arith.constant 0 : index
    %c0_14 = arith.constant 0 : index
    %28 = vector.load %arg7[%c0_12, %c0_13, %c0_14] : memref<8x16x384xf32, #tpu.memory_space<vmem>>, vector<1x16x384xf32>
    %29 = vector.shape_cast %28 : vector<1x16x384xf32> to vector<16x384xf32>
    %c7 = arith.constant 7 : index
    %c0_15 = arith.constant 0 : index
    %c0_16 = arith.constant 0 : index
    %30 = vector.load %arg7[%c7, %c0_15, %c0_16] : memref<8x16x384xf32, #tpu.memory_space<vmem>>, vector<1x16x384xf32>
    %31 = vector.shape_cast %30 : vector<1x16x384xf32> to vector<16x384xf32>
    %32 = arith.select %27, %29, %31 : vector<16x384xi1>, vector<16x384xf32>
    %c0_17 = arith.constant 0 : index
    %c0_18 = arith.constant 0 : index
    %c0_19 = arith.constant 0 : index
    %33 = vector.load %arg7[%c0_17, %c0_18, %c0_19] : memref<8x16x384xf32, #tpu.memory_space<vmem>>, vector<1x16x384xf32>
    %34 = vector.shape_cast %33 : vector<1x16x384xf32> to vector<16x384xf32>
    %35 = vector.shape_cast %32 : vector<16x384xf32> to vector<1x16x384xf32>
    tpu.vector_store %arg7[%c0_17, %c0_18, %c0_19], %35 {strides = array<i32>} : memref<8x16x384xf32, #tpu.memory_space<vmem>>, vector<1x16x384xf32>,
    %36 = arith.select %27, %31, %29 : vector<16x384xi1>, vector<16x384xf32>
    %c7_20 = arith.constant 7 : index
    %c0_21 = arith.constant 0 : index
    %c0_22 = arith.constant 0 : index
    %37 = vector.load %arg7[%c7_20, %c0_21, %c0_22] : memref<8x16x384xf32, #tpu.memory_space<vmem>>, vector<1x16x384xf32>
    %38 = vector.shape_cast %37 : vector<1x16x384xf32> to vector<16x384xf32>
    %39 = vector.shape_cast %36 : vector<16x384xf32> to vector<1x16x384xf32>
    tpu.vector_store %arg7[%c7_20, %c0_21, %c0_22], %39 {strides = array<i32>} : memref<8x16x384xf32, #tpu.memory_space<vmem>>, vector<1x16x384xf32>,
    %c1 = arith.constant 1 : index
    %c0_23 = arith.constant 0 : index
    %c0_24 = arith.constant 0 : index
    %40 = vector.load %arg7[%c1, %c0_23, %c0_24] : memref<8x16x384xf32, #tpu.memory_space<vmem>>, vector<1x16x384xf32>
    %41 = vector.shape_cast %40 : vector<1x16x384xf32> to vector<16x384xf32>
    %c6 = arith.constant 6 : index
    %c0_25 = arith.constant 0 : index
    %c0_26 = arith.constant 0 : index
    %42 = vector.load %arg7[%c6, %c0_25, %c0_26] : memref<8x16x384xf32, #tpu.memory_space<vmem>>, vector<1x16x384xf32>
    %43 = vector.shape_cast %42 : vector<1x16x384xf32> to vector<16x384xf32>
    %44 = arith.select %27, %41, %43 : vector<16x384xi1>, vector<16x384xf32>
    %c1_27 = arith.constant 1 : index
    %c0_28 = arith.constant 0 : index
    %c0_29 = arith.constant 0 : index
    %45 = vector.load %arg7[%c1_27, %c0_28, %c0_29] : memref<8x16x384xf32, #tpu.memory_space<vmem>>, vector<1x16x384xf32>
    %46 = vector.shape_cast %45 : vector<1x16x384xf32> to vector<16x384xf32>
    %47 = vector.shape_cast %44 : vector<16x384xf32> to vector<1x16x384xf32>
    tpu.vector_store %arg7[%c1_27, %c0_28, %c0_29], %47 {strides = array<i32>} : memref<8x16x384xf32, #tpu.memory_space<vmem>>, vector<1x16x384xf32>,
    %48 = arith.select %27, %43, %41 : vector<16x384xi1>, vector<16x384xf32>
    %c6_30 = arith.constant 6 : index
    %c0_31 = arith.constant 0 : index
    %c0_32 = arith.constant 0 : index
    %49 = vector.load %arg7[%c6_30, %c0_31, %c0_32] : memref<8x16x384xf32, #tpu.memory_space<vmem>>, vector<1x16x384xf32>
    %50 = vector.shape_cast %49 : vector<1x16x384xf32> to vector<16x384xf32>
    %51 = vector.shape_cast %48 : vector<16x384xf32> to vector<1x16x384xf32>
    tpu.vector_store %arg7[%c6_30, %c0_31, %c0_32], %51 {strides = array<i32>} : memref<8x16x384xf32, #tpu.memory_space<vmem>>, vector<1x16x384xf32>,
    %c2 = arith.constant 2 : index
    %c0_33 = arith.constant 0 : index
    %c0_34 = arith.constant 0 : index
    %52 = vector.load %arg7[%c2, %c0_33, %c0_34] : memref<8x16x384xf32, #tpu.memory_space<vmem>>, vector<1x16x384xf32>
    %53 = vector.shape_cast %52 : vector<1x16x384xf32> to vector<16x384xf32>
    %c5 = arith.constant 5 : index
    %c0_35 = arith.constant 0 : index
    %c0_36 = arith.constant 0 : index
    %54 = vector.load %arg7[%c5, %c0_35, %c0_36] : memref<8x16x384xf32, #tpu.memory_space<vmem>>, vector<1x16x384xf32>
    %55 = vector.shape_cast %54 : vector<1x16x384xf32> to vector<16x384xf32>
    %56 = arith.select %27, %53, %55 : vector<16x384xi1>, vector<16x384xf32>
    %c2_37 = arith.constant 2 : index
    %c0_38 = arith.constant 0 : index
    %c0_39 = arith.constant 0 : index
    %57 = vector.load %arg7[%c2_37, %c0_38, %c0_39] : memref<8x16x384xf32, #tpu.memory_space<vmem>>, vector<1x16x384xf32>
    %58 = vector.shape_cast %57 : vector<1x16x384xf32> to vector<16x384xf32>
    %59 = vector.shape_cast %56 : vector<16x384xf32> to vector<1x16x384xf32>
    tpu.vector_store %arg7[%c2_37, %c0_38, %c0_39], %59 {strides = array<i32>} : memref<8x16x384xf32, #tpu.memory_space<vmem>>, vector<1x16x384xf32>,
    %60 = arith.select %27, %55, %53 : vector<16x384xi1>, vector<16x384xf32>
    %c5_40 = arith.constant 5 : index
    %c0_41 = arith.constant 0 : index
    %c0_42 = arith.constant 0 : index
    %61 = vector.load %arg7[%c5_40, %c0_41, %c0_42] : memref<8x16x384xf32, #tpu.memory_space<vmem>>, vector<1x16x384xf32>
    %62 = vector.shape_cast %61 : vector<1x16x384xf32> to vector<16x384xf32>
    %63 = vector.shape_cast %60 : vector<16x384xf32> to vector<1x16x384xf32>
    tpu.vector_store %arg7[%c5_40, %c0_41, %c0_42], %63 {strides = array<i32>} : memref<8x16x384xf32, #tpu.memory_space<vmem>>, vector<1x16x384xf32>,
    %c3 = arith.constant 3 : index
    %c0_43 = arith.constant 0 : index
    %c0_44 = arith.constant 0 : index
    %64 = vector.load %arg7[%c3, %c0_43, %c0_44] : memref<8x16x384xf32, #tpu.memory_space<vmem>>, vector<1x16x384xf32>
    %65 = vector.shape_cast %64 : vector<1x16x384xf32> to vector<16x384xf32>
    %c4 = arith.constant 4 : index
    %c0_45 = arith.constant 0 : index
    %c0_46 = arith.constant 0 : index
    %66 = vector.load %arg7[%c4, %c0_45, %c0_46] : memref<8x16x384xf32, #tpu.memory_space<vmem>>, vector<1x16x384xf32>
    %67 = vector.shape_cast %66 : vector<1x16x384xf32> to vector<16x384xf32>
    %68 = arith.select %27, %65, %67 : vector<16x384xi1>, vector<16x384xf32>
    %c3_47 = arith.constant 3 : index
    %c0_48 = arith.constant 0 : index
    %c0_49 = arith.constant 0 : index
    %69 = vector.load %arg7[%c3_47, %c0_48, %c0_49] : memref<8x16x384xf32, #tpu.memory_space<vmem>>, vector<1x16x384xf32>
    %70 = vector.shape_cast %69 : vector<1x16x384xf32> to vector<16x384xf32>
    %71 = vector.shape_cast %68 : vector<16x384xf32> to vector<1x16x384xf32>
    tpu.vector_store %arg7[%c3_47, %c0_48, %c0_49], %71 {strides = array<i32>} : memref<8x16x384xf32, #tpu.memory_space<vmem>>, vector<1x16x384xf32>,
    %72 = arith.select %27, %67, %65 : vector<16x384xi1>, vector<16x384xf32>
    %c4_50 = arith.constant 4 : index
    %c0_51 = arith.constant 0 : index
    %c0_52 = arith.constant 0 : index
    %73 = vector.load %arg7[%c4_50, %c0_51, %c0_52] : memref<8x16x384xf32, #tpu.memory_space<vmem>>, vector<1x16x384xf32>
    %74 = vector.shape_cast %73 : vector<1x16x384xf32> to vector<16x384xf32>
    %75 = vector.shape_cast %72 : vector<16x384xf32> to vector<1x16x384xf32>
    tpu.vector_store %arg7[%c4_50, %c0_51, %c0_52], %75 {strides = array<i32>} : memref<8x16x384xf32, #tpu.memory_space<vmem>>, vector<1x16x384xf32>,
    %c0_53 = arith.constant 0 : index
    %c0_54 = arith.constant 0 : index
    %76 = vector.load %arg3[%c0_53, %c0_54] : memref<128x384xbf16, #tpu.memory_space<vmem>>, vector<128x384xbf16>
    %c0_55 = arith.constant 0 : index
    %c0_56 = arith.constant 0 : index
    %77 = vector.load %arg5[%c0_55, %c0_56] : memref<1x128xf32, #tpu.memory_space<vmem>>, vector<1x128xf32>
    %78 = vector.shape_cast %77 : vector<1x128xf32> to vector<1x128xf32>
    %79 = vector.broadcast %78 : vector<1x128xf32> to vector<16x128xf32>
    %c0_57 = arith.constant 0 : index
    %c0_58 = arith.constant 0 : index
    %c0_59 = arith.constant 0 : index
    %80 = vector.load %arg7[%c0_57, %c0_58, %c0_59] : memref<8x16x384xf32, #tpu.memory_space<vmem>>, vector<1x16x128xf32>
    %81 = vector.shape_cast %80 : vector<1x16x128xf32> to vector<16x128xf32>
    %82 = arith.negf %81 : vector<16x128xf32>
    %83 = math.exp %82 : vector<16x128xf32>
    %cst_60 = arith.constant 1.000000e+00 : f32
    %84 = vector.broadcast %cst_60 : f32 to vector<16x128xf32>
    %85 = arith.addf %84, %83 : vector<16x128xf32>
    %86 = arith.divf %84, %85 : vector<16x128xf32>
    %c0_61 = arith.constant 0 : index
    %c0_62 = arith.constant 0 : index
    %c128 = arith.constant 128 : index
    %87 = vector.load %arg7[%c0_61, %c0_62, %c128] : memref<8x16x384xf32, #tpu.memory_space<vmem>>, vector<1x16x128xf32>
    %88 = vector.shape_cast %87 : vector<1x16x128xf32> to vector<16x128xf32>
    %89 = arith.negf %88 : vector<16x128xf32>
    %90 = math.exp %89 : vector<16x128xf32>
    %cst_63 = arith.constant 1.000000e+00 : f32
    %91 = vector.broadcast %cst_63 : f32 to vector<16x128xf32>
    %92 = arith.addf %91, %90 : vector<16x128xf32>
    %93 = arith.divf %91, %92 : vector<16x128xf32>
    %c0_64 = arith.constant 0 : index
    %c0_65 = arith.constant 0 : index
    %c256 = arith.constant 256 : index
    %94 = vector.load %arg7[%c0_64, %c0_65, %c256] : memref<8x16x384xf32, #tpu.memory_space<vmem>>, vector<1x16x128xf32>
    %95 = vector.shape_cast %94 : vector<1x16x128xf32> to vector<16x128xf32>
    %96 = arith.mulf %86, %79 : vector<16x128xf32>
    %97 = arith.addf %95, %96 : vector<16x128xf32>
    %98 = math.tanh %97 : vector<16x128xf32>
    %cst_66 = arith.constant 1.000000e+00 : f32
    %99 = vector.broadcast %cst_66 : f32 to vector<16x128xf32>
    %100 = arith.subf %99, %93 : vector<16x128xf32>
    %101 = arith.mulf %100, %98 : vector<16x128xf32>
    %c0_67 = arith.constant 0 : index
    %c0_68 = arith.constant 0 : index
    %c0_69 = arith.constant 0 : index
    %102 = vector.load %arg8[%c0_67, %c0_68, %c0_69] : memref<8x16x128xf32, #tpu.memory_space<vmem>>, vector<1x16x128xf32>
    %103 = vector.shape_cast %102 : vector<1x16x128xf32> to vector<16x128xf32>
    %104 = vector.shape_cast %101 : vector<16x128xf32> to vector<1x16x128xf32>
    tpu.vector_store %arg8[%c0_67, %c0_68, %c0_69], %104 {strides = array<i32>} : memref<8x16x128xf32, #tpu.memory_space<vmem>>, vector<1x16x128xf32>,
    %105 = arith.truncf %101 : vector<16x128xf32> to vector<16x128xbf16>
    %cst_70 = arith.constant dense<0.000000e+00> : vector<16x384xf32>
    %106 = tpu.matmul %105, %76, %cst_70 {dimension_numbers = #tpu.dot_dimension_numbers<[1], [0], [0], [1], [0, 0, 1, 1], [], []>} : vector<16x128xbf16>, vector<128x384xbf16>, vector<16x384xf32> -> vector<16x384xf32>
    %c1_71 = arith.constant 1 : index
    %c0_72 = arith.constant 0 : index
    %c0_73 = arith.constant 0 : index
    %107 = vector.load %arg7[%c1_71, %c0_72, %c0_73] : memref<8x16x384xf32, #tpu.memory_space<vmem>>, vector<1x16x128xf32>
    %108 = vector.shape_cast %107 : vector<1x16x128xf32> to vector<16x128xf32>
    %109 = vector.extract_strided_slice %106 {offsets = [0, 0], sizes = [16, 128], strides = [1, 1]} : vector<16x384xf32> to vector<16x128xf32>
    %110 = arith.addf %108, %109 : vector<16x128xf32>
    %111 = arith.negf %110 : vector<16x128xf32>
    %112 = math.exp %111 : vector<16x128xf32>
    %cst_74 = arith.constant 1.000000e+00 : f32
    %113 = vector.broadcast %cst_74 : f32 to vector<16x128xf32>
    %114 = arith.addf %113, %112 : vector<16x128xf32>
    %115 = arith.divf %113, %114 : vector<16x128xf32>
    %c1_75 = arith.constant 1 : index
    %c0_76 = arith.constant 0 : index
    %c128_77 = arith.constant 128 : index
    %116 = vector.load %arg7[%c1_75, %c0_76, %c128_77] : memref<8x16x384xf32, #tpu.memory_space<vmem>>, vector<1x16x128xf32>
    %117 = vector.shape_cast %116 : vector<1x16x128xf32> to vector<16x128xf32>
    %118 = vector.extract_strided_slice %106 {offsets = [0, 128], sizes = [16, 128], strides = [1, 1]} : vector<16x384xf32> to vector<16x128xf32>
    %119 = arith.addf %117, %118 : vector<16x128xf32>
    %120 = arith.negf %119 : vector<16x128xf32>
    %121 = math.exp %120 : vector<16x128xf32>
    %cst_78 = arith.constant 1.000000e+00 : f32
    %122 = vector.broadcast %cst_78 : f32 to vector<16x128xf32>
    %123 = arith.addf %122, %121 : vector<16x128xf32>
    %124 = arith.divf %122, %123 : vector<16x128xf32>
    %c1_79 = arith.constant 1 : index
    %c0_80 = arith.constant 0 : index
    %c256_81 = arith.constant 256 : index
    %125 = vector.load %arg7[%c1_79, %c0_80, %c256_81] : memref<8x16x384xf32, #tpu.memory_space<vmem>>, vector<1x16x128xf32>
    %126 = vector.shape_cast %125 : vector<1x16x128xf32> to vector<16x128xf32>
    %127 = vector.extract_strided_slice %106 {offsets = [0, 256], sizes = [16, 128], strides = [1, 1]} : vector<16x384xf32> to vector<16x128xf32>
    %128 = arith.addf %127, %79 : vector<16x128xf32>
    %129 = arith.mulf %115, %128 : vector<16x128xf32>
    %130 = arith.addf %126, %129 : vector<16x128xf32>
    %131 = math.tanh %130 : vector<16x128xf32>
    %cst_82 = arith.constant 1.000000e+00 : f32
    %132 = vector.broadcast %cst_82 : f32 to vector<16x128xf32>
    %133 = arith.subf %132, %124 : vector<16x128xf32>
    %134 = arith.mulf %133, %131 : vector<16x128xf32>
    %135 = arith.mulf %124, %101 : vector<16x128xf32>
    %136 = arith.addf %134, %135 : vector<16x128xf32>
    %c1_83 = arith.constant 1 : index
    %c0_84 = arith.constant 0 : index
    %c0_85 = arith.constant 0 : index
    %137 = vector.load %arg8[%c1_83, %c0_84, %c0_85] : memref<8x16x128xf32, #tpu.memory_space<vmem>>, vector<1x16x128xf32>
    %138 = vector.shape_cast %137 : vector<1x16x128xf32> to vector<16x128xf32>
    %139 = vector.shape_cast %136 : vector<16x128xf32> to vector<1x16x128xf32>
    tpu.vector_store %arg8[%c1_83, %c0_84, %c0_85], %139 {strides = array<i32>} : memref<8x16x128xf32, #tpu.memory_space<vmem>>, vector<1x16x128xf32>,
    %140 = arith.truncf %136 : vector<16x128xf32> to vector<16x128xbf16>
    %cst_86 = arith.constant dense<0.000000e+00> : vector<16x384xf32>
    %141 = tpu.matmul %140, %76, %cst_86 {dimension_numbers = #tpu.dot_dimension_numbers<[1], [0], [0], [1], [0, 0, 1, 1], [], []>} : vector<16x128xbf16>, vector<128x384xbf16>, vector<16x384xf32> -> vector<16x384xf32>
    %c2_87 = arith.constant 2 : index
    %c0_88 = arith.constant 0 : index
    %c0_89 = arith.constant 0 : index
    %142 = vector.load %arg7[%c2_87, %c0_88, %c0_89] : memref<8x16x384xf32, #tpu.memory_space<vmem>>, vector<1x16x128xf32>
    %143 = vector.shape_cast %142 : vector<1x16x128xf32> to vector<16x128xf32>
    %144 = vector.extract_strided_slice %141 {offsets = [0, 0], sizes = [16, 128], strides = [1, 1]} : vector<16x384xf32> to vector<16x128xf32>
    %145 = arith.addf %143, %144 : vector<16x128xf32>
    %146 = arith.negf %145 : vector<16x128xf32>
    %147 = math.exp %146 : vector<16x128xf32>
    %cst_90 = arith.constant 1.000000e+00 : f32
    %148 = vector.broadcast %cst_90 : f32 to vector<16x128xf32>
    %149 = arith.addf %148, %147 : vector<16x128xf32>
    %150 = arith.divf %148, %149 : vector<16x128xf32>
    %c2_91 = arith.constant 2 : index
    %c0_92 = arith.constant 0 : index
    %c128_93 = arith.constant 128 : index
    %151 = vector.load %arg7[%c2_91, %c0_92, %c128_93] : memref<8x16x384xf32, #tpu.memory_space<vmem>>, vector<1x16x128xf32>
    %152 = vector.shape_cast %151 : vector<1x16x128xf32> to vector<16x128xf32>
    %153 = vector.extract_strided_slice %141 {offsets = [0, 128], sizes = [16, 128], strides = [1, 1]} : vector<16x384xf32> to vector<16x128xf32>
    %154 = arith.addf %152, %153 : vector<16x128xf32>
    %155 = arith.negf %154 : vector<16x128xf32>
    %156 = math.exp %155 : vector<16x128xf32>
    %cst_94 = arith.constant 1.000000e+00 : f32
    %157 = vector.broadcast %cst_94 : f32 to vector<16x128xf32>
    %158 = arith.addf %157, %156 : vector<16x128xf32>
    %159 = arith.divf %157, %158 : vector<16x128xf32>
    %c2_95 = arith.constant 2 : index
    %c0_96 = arith.constant 0 : index
    %c256_97 = arith.constant 256 : index
    %160 = vector.load %arg7[%c2_95, %c0_96, %c256_97] : memref<8x16x384xf32, #tpu.memory_space<vmem>>, vector<1x16x128xf32>
    %161 = vector.shape_cast %160 : vector<1x16x128xf32> to vector<16x128xf32>
    %162 = vector.extract_strided_slice %141 {offsets = [0, 256], sizes = [16, 128], strides = [1, 1]} : vector<16x384xf32> to vector<16x128xf32>
    %163 = arith.addf %162, %79 : vector<16x128xf32>
    %164 = arith.mulf %150, %163 : vector<16x128xf32>
    %165 = arith.addf %161, %164 : vector<16x128xf32>
    %166 = math.tanh %165 : vector<16x128xf32>
    %cst_98 = arith.constant 1.000000e+00 : f32
    %167 = vector.broadcast %cst_98 : f32 to vector<16x128xf32>
    %168 = arith.subf %167, %159 : vector<16x128xf32>
    %169 = arith.mulf %168, %166 : vector<16x128xf32>
    %170 = arith.mulf %159, %136 : vector<16x128xf32>
    %171 = arith.addf %169, %170 : vector<16x128xf32>
    %c2_99 = arith.constant 2 : index
    %c0_100 = arith.constant 0 : index
    %c0_101 = arith.constant 0 : index
    %172 = vector.load %arg8[%c2_99, %c0_100, %c0_101] : memref<8x16x128xf32, #tpu.memory_space<vmem>>, vector<1x16x128xf32>
    %173 = vector.shape_cast %172 : vector<1x16x128xf32> to vector<16x128xf32>
    %174 = vector.shape_cast %171 : vector<16x128xf32> to vector<1x16x128xf32>
    tpu.vector_store %arg8[%c2_99, %c0_100, %c0_101], %174 {strides = array<i32>} : memref<8x16x128xf32, #tpu.memory_space<vmem>>, vector<1x16x128xf32>,
    %175 = arith.truncf %171 : vector<16x128xf32> to vector<16x128xbf16>
    %cst_102 = arith.constant dense<0.000000e+00> : vector<16x384xf32>
    %176 = tpu.matmul %175, %76, %cst_102 {dimension_numbers = #tpu.dot_dimension_numbers<[1], [0], [0], [1], [0, 0, 1, 1], [], []>} : vector<16x128xbf16>, vector<128x384xbf16>, vector<16x384xf32> -> vector<16x384xf32>
    %c3_103 = arith.constant 3 : index
    %c0_104 = arith.constant 0 : index
    %c0_105 = arith.constant 0 : index
    %177 = vector.load %arg7[%c3_103, %c0_104, %c0_105] : memref<8x16x384xf32, #tpu.memory_space<vmem>>, vector<1x16x128xf32>
    %178 = vector.shape_cast %177 : vector<1x16x128xf32> to vector<16x128xf32>
    %179 = vector.extract_strided_slice %176 {offsets = [0, 0], sizes = [16, 128], strides = [1, 1]} : vector<16x384xf32> to vector<16x128xf32>
    %180 = arith.addf %178, %179 : vector<16x128xf32>
    %181 = arith.negf %180 : vector<16x128xf32>
    %182 = math.exp %181 : vector<16x128xf32>
    %cst_106 = arith.constant 1.000000e+00 : f32
    %183 = vector.broadcast %cst_106 : f32 to vector<16x128xf32>
    %184 = arith.addf %183, %182 : vector<16x128xf32>
    %185 = arith.divf %183, %184 : vector<16x128xf32>
    %c3_107 = arith.constant 3 : index
    %c0_108 = arith.constant 0 : index
    %c128_109 = arith.constant 128 : index
    %186 = vector.load %arg7[%c3_107, %c0_108, %c128_109] : memref<8x16x384xf32, #tpu.memory_space<vmem>>, vector<1x16x128xf32>
    %187 = vector.shape_cast %186 : vector<1x16x128xf32> to vector<16x128xf32>
    %188 = vector.extract_strided_slice %176 {offsets = [0, 128], sizes = [16, 128], strides = [1, 1]} : vector<16x384xf32> to vector<16x128xf32>
    %189 = arith.addf %187, %188 : vector<16x128xf32>
    %190 = arith.negf %189 : vector<16x128xf32>
    %191 = math.exp %190 : vector<16x128xf32>
    %cst_110 = arith.constant 1.000000e+00 : f32
    %192 = vector.broadcast %cst_110 : f32 to vector<16x128xf32>
    %193 = arith.addf %192, %191 : vector<16x128xf32>
    %194 = arith.divf %192, %193 : vector<16x128xf32>
    %c3_111 = arith.constant 3 : index
    %c0_112 = arith.constant 0 : index
    %c256_113 = arith.constant 256 : index
    %195 = vector.load %arg7[%c3_111, %c0_112, %c256_113] : memref<8x16x384xf32, #tpu.memory_space<vmem>>, vector<1x16x128xf32>
    %196 = vector.shape_cast %195 : vector<1x16x128xf32> to vector<16x128xf32>
    %197 = vector.extract_strided_slice %176 {offsets = [0, 256], sizes = [16, 128], strides = [1, 1]} : vector<16x384xf32> to vector<16x128xf32>
    %198 = arith.addf %197, %79 : vector<16x128xf32>
    %199 = arith.mulf %185, %198 : vector<16x128xf32>
    %200 = arith.addf %196, %199 : vector<16x128xf32>
    %201 = math.tanh %200 : vector<16x128xf32>
    %cst_114 = arith.constant 1.000000e+00 : f32
    %202 = vector.broadcast %cst_114 : f32 to vector<16x128xf32>
    %203 = arith.subf %202, %194 : vector<16x128xf32>
    %204 = arith.mulf %203, %201 : vector<16x128xf32>
    %205 = arith.mulf %194, %171 : vector<16x128xf32>
    %206 = arith.addf %204, %205 : vector<16x128xf32>
    %c3_115 = arith.constant 3 : index
    %c0_116 = arith.constant 0 : index
    %c0_117 = arith.constant 0 : index
    %207 = vector.load %arg8[%c3_115, %c0_116, %c0_117] : memref<8x16x128xf32, #tpu.memory_space<vmem>>, vector<1x16x128xf32>
    %208 = vector.shape_cast %207 : vector<1x16x128xf32> to vector<16x128xf32>
    %209 = vector.shape_cast %206 : vector<16x128xf32> to vector<1x16x128xf32>
    tpu.vector_store %arg8[%c3_115, %c0_116, %c0_117], %209 {strides = array<i32>} : memref<8x16x128xf32, #tpu.memory_space<vmem>>, vector<1x16x128xf32>,
    %210 = arith.truncf %206 : vector<16x128xf32> to vector<16x128xbf16>
    %cst_118 = arith.constant dense<0.000000e+00> : vector<16x384xf32>
    %211 = tpu.matmul %210, %76, %cst_118 {dimension_numbers = #tpu.dot_dimension_numbers<[1], [0], [0], [1], [0, 0, 1, 1], [], []>} : vector<16x128xbf16>, vector<128x384xbf16>, vector<16x384xf32> -> vector<16x384xf32>
    %c4_119 = arith.constant 4 : index
    %c0_120 = arith.constant 0 : index
    %c0_121 = arith.constant 0 : index
    %212 = vector.load %arg7[%c4_119, %c0_120, %c0_121] : memref<8x16x384xf32, #tpu.memory_space<vmem>>, vector<1x16x128xf32>
    %213 = vector.shape_cast %212 : vector<1x16x128xf32> to vector<16x128xf32>
    %214 = vector.extract_strided_slice %211 {offsets = [0, 0], sizes = [16, 128], strides = [1, 1]} : vector<16x384xf32> to vector<16x128xf32>
    %215 = arith.addf %213, %214 : vector<16x128xf32>
    %216 = arith.negf %215 : vector<16x128xf32>
    %217 = math.exp %216 : vector<16x128xf32>
    %cst_122 = arith.constant 1.000000e+00 : f32
    %218 = vector.broadcast %cst_122 : f32 to vector<16x128xf32>
    %219 = arith.addf %218, %217 : vector<16x128xf32>
    %220 = arith.divf %218, %219 : vector<16x128xf32>
    %c4_123 = arith.constant 4 : index
    %c0_124 = arith.constant 0 : index
    %c128_125 = arith.constant 128 : index
    %221 = vector.load %arg7[%c4_123, %c0_124, %c128_125] : memref<8x16x384xf32, #tpu.memory_space<vmem>>, vector<1x16x128xf32>
    %222 = vector.shape_cast %221 : vector<1x16x128xf32> to vector<16x128xf32>
    %223 = vector.extract_strided_slice %211 {offsets = [0, 128], sizes = [16, 128], strides = [1, 1]} : vector<16x384xf32> to vector<16x128xf32>
    %224 = arith.addf %222, %223 : vector<16x128xf32>
    %225 = arith.negf %224 : vector<16x128xf32>
    %226 = math.exp %225 : vector<16x128xf32>
    %cst_126 = arith.constant 1.000000e+00 : f32
    %227 = vector.broadcast %cst_126 : f32 to vector<16x128xf32>
    %228 = arith.addf %227, %226 : vector<16x128xf32>
    %229 = arith.divf %227, %228 : vector<16x128xf32>
    %c4_127 = arith.constant 4 : index
    %c0_128 = arith.constant 0 : index
    %c256_129 = arith.constant 256 : index
    %230 = vector.load %arg7[%c4_127, %c0_128, %c256_129] : memref<8x16x384xf32, #tpu.memory_space<vmem>>, vector<1x16x128xf32>
    %231 = vector.shape_cast %230 : vector<1x16x128xf32> to vector<16x128xf32>
    %232 = vector.extract_strided_slice %211 {offsets = [0, 256], sizes = [16, 128], strides = [1, 1]} : vector<16x384xf32> to vector<16x128xf32>
    %233 = arith.addf %232, %79 : vector<16x128xf32>
    %234 = arith.mulf %220, %233 : vector<16x128xf32>
    %235 = arith.addf %231, %234 : vector<16x128xf32>
    %236 = math.tanh %235 : vector<16x128xf32>
    %cst_130 = arith.constant 1.000000e+00 : f32
    %237 = vector.broadcast %cst_130 : f32 to vector<16x128xf32>
    %238 = arith.subf %237, %229 : vector<16x128xf32>
    %239 = arith.mulf %238, %236 : vector<16x128xf32>
    %240 = arith.mulf %229, %206 : vector<16x128xf32>
    %241 = arith.addf %239, %240 : vector<16x128xf32>
    %c4_131 = arith.constant 4 : index
    %c0_132 = arith.constant 0 : index
    %c0_133 = arith.constant 0 : index
    %242 = vector.load %arg8[%c4_131, %c0_132, %c0_133] : memref<8x16x128xf32, #tpu.memory_space<vmem>>, vector<1x16x128xf32>
    %243 = vector.shape_cast %242 : vector<1x16x128xf32> to vector<16x128xf32>
    %244 = vector.shape_cast %241 : vector<16x128xf32> to vector<1x16x128xf32>
    tpu.vector_store %arg8[%c4_131, %c0_132, %c0_133], %244 {strides = array<i32>} : memref<8x16x128xf32, #tpu.memory_space<vmem>>, vector<1x16x128xf32>,
    %245 = arith.truncf %241 : vector<16x128xf32> to vector<16x128xbf16>
    %cst_134 = arith.constant dense<0.000000e+00> : vector<16x384xf32>
    %246 = tpu.matmul %245, %76, %cst_134 {dimension_numbers = #tpu.dot_dimension_numbers<[1], [0], [0], [1], [0, 0, 1, 1], [], []>} : vector<16x128xbf16>, vector<128x384xbf16>, vector<16x384xf32> -> vector<16x384xf32>
    %c5_135 = arith.constant 5 : index
    %c0_136 = arith.constant 0 : index
    %c0_137 = arith.constant 0 : index
    %247 = vector.load %arg7[%c5_135, %c0_136, %c0_137] : memref<8x16x384xf32, #tpu.memory_space<vmem>>, vector<1x16x128xf32>
    %248 = vector.shape_cast %247 : vector<1x16x128xf32> to vector<16x128xf32>
    %249 = vector.extract_strided_slice %246 {offsets = [0, 0], sizes = [16, 128], strides = [1, 1]} : vector<16x384xf32> to vector<16x128xf32>
    %250 = arith.addf %248, %249 : vector<16x128xf32>
    %251 = arith.negf %250 : vector<16x128xf32>
    %252 = math.exp %251 : vector<16x128xf32>
    %cst_138 = arith.constant 1.000000e+00 : f32
    %253 = vector.broadcast %cst_138 : f32 to vector<16x128xf32>
    %254 = arith.addf %253, %252 : vector<16x128xf32>
    %255 = arith.divf %253, %254 : vector<16x128xf32>
    %c5_139 = arith.constant 5 : index
    %c0_140 = arith.constant 0 : index
    %c128_141 = arith.constant 128 : index
    %256 = vector.load %arg7[%c5_139, %c0_140, %c128_141] : memref<8x16x384xf32, #tpu.memory_space<vmem>>, vector<1x16x128xf32>
    %257 = vector.shape_cast %256 : vector<1x16x128xf32> to vector<16x128xf32>
    %258 = vector.extract_strided_slice %246 {offsets = [0, 128], sizes = [16, 128], strides = [1, 1]} : vector<16x384xf32> to vector<16x128xf32>
    %259 = arith.addf %257, %258 : vector<16x128xf32>
    %260 = arith.negf %259 : vector<16x128xf32>
    %261 = math.exp %260 : vector<16x128xf32>
    %cst_142 = arith.constant 1.000000e+00 : f32
    %262 = vector.broadcast %cst_142 : f32 to vector<16x128xf32>
    %263 = arith.addf %262, %261 : vector<16x128xf32>
    %264 = arith.divf %262, %263 : vector<16x128xf32>
    %c5_143 = arith.constant 5 : index
    %c0_144 = arith.constant 0 : index
    %c256_145 = arith.constant 256 : index
    %265 = vector.load %arg7[%c5_143, %c0_144, %c256_145] : memref<8x16x384xf32, #tpu.memory_space<vmem>>, vector<1x16x128xf32>
    %266 = vector.shape_cast %265 : vector<1x16x128xf32> to vector<16x128xf32>
    %267 = vector.extract_strided_slice %246 {offsets = [0, 256], sizes = [16, 128], strides = [1, 1]} : vector<16x384xf32> to vector<16x128xf32>
    %268 = arith.addf %267, %79 : vector<16x128xf32>
    %269 = arith.mulf %255, %268 : vector<16x128xf32>
    %270 = arith.addf %266, %269 : vector<16x128xf32>
    %271 = math.tanh %270 : vector<16x128xf32>
    %cst_146 = arith.constant 1.000000e+00 : f32
    %272 = vector.broadcast %cst_146 : f32 to vector<16x128xf32>
    %273 = arith.subf %272, %264 : vector<16x128xf32>
    %274 = arith.mulf %273, %271 : vector<16x128xf32>
    %275 = arith.mulf %264, %241 : vector<16x128xf32>
    %276 = arith.addf %274, %275 : vector<16x128xf32>
    %c5_147 = arith.constant 5 : index
    %c0_148 = arith.constant 0 : index
    %c0_149 = arith.constant 0 : index
    %277 = vector.load %arg8[%c5_147, %c0_148, %c0_149] : memref<8x16x128xf32, #tpu.memory_space<vmem>>, vector<1x16x128xf32>
    %278 = vector.shape_cast %277 : vector<1x16x128xf32> to vector<16x128xf32>
    %279 = vector.shape_cast %276 : vector<16x128xf32> to vector<1x16x128xf32>
    tpu.vector_store %arg8[%c5_147, %c0_148, %c0_149], %279 {strides = array<i32>} : memref<8x16x128xf32, #tpu.memory_space<vmem>>, vector<1x16x128xf32>,
    %280 = arith.truncf %276 : vector<16x128xf32> to vector<16x128xbf16>
    %cst_150 = arith.constant dense<0.000000e+00> : vector<16x384xf32>
    %281 = tpu.matmul %280, %76, %cst_150 {dimension_numbers = #tpu.dot_dimension_numbers<[1], [0], [0], [1], [0, 0, 1, 1], [], []>} : vector<16x128xbf16>, vector<128x384xbf16>, vector<16x384xf32> -> vector<16x384xf32>
    %c6_151 = arith.constant 6 : index
    %c0_152 = arith.constant 0 : index
    %c0_153 = arith.constant 0 : index
    %282 = vector.load %arg7[%c6_151, %c0_152, %c0_153] : memref<8x16x384xf32, #tpu.memory_space<vmem>>, vector<1x16x128xf32>
    %283 = vector.shape_cast %282 : vector<1x16x128xf32> to vector<16x128xf32>
    %284 = vector.extract_strided_slice %281 {offsets = [0, 0], sizes = [16, 128], strides = [1, 1]} : vector<16x384xf32> to vector<16x128xf32>
    %285 = arith.addf %283, %284 : vector<16x128xf32>
    %286 = arith.negf %285 : vector<16x128xf32>
    %287 = math.exp %286 : vector<16x128xf32>
    %cst_154 = arith.constant 1.000000e+00 : f32
    %288 = vector.broadcast %cst_154 : f32 to vector<16x128xf32>
    %289 = arith.addf %288, %287 : vector<16x128xf32>
    %290 = arith.divf %288, %289 : vector<16x128xf32>
    %c6_155 = arith.constant 6 : index
    %c0_156 = arith.constant 0 : index
    %c128_157 = arith.constant 128 : index
    %291 = vector.load %arg7[%c6_155, %c0_156, %c128_157] : memref<8x16x384xf32, #tpu.memory_space<vmem>>, vector<1x16x128xf32>
    %292 = vector.shape_cast %291 : vector<1x16x128xf32> to vector<16x128xf32>
    %293 = vector.extract_strided_slice %281 {offsets = [0, 128], sizes = [16, 128], strides = [1, 1]} : vector<16x384xf32> to vector<16x128xf32>
    %294 = arith.addf %292, %293 : vector<16x128xf32>
    %295 = arith.negf %294 : vector<16x128xf32>
    %296 = math.exp %295 : vector<16x128xf32>
    %cst_158 = arith.constant 1.000000e+00 : f32
    %297 = vector.broadcast %cst_158 : f32 to vector<16x128xf32>
    %298 = arith.addf %297, %296 : vector<16x128xf32>
    %299 = arith.divf %297, %298 : vector<16x128xf32>
    %c6_159 = arith.constant 6 : index
    %c0_160 = arith.constant 0 : index
    %c256_161 = arith.constant 256 : index
    %300 = vector.load %arg7[%c6_159, %c0_160, %c256_161] : memref<8x16x384xf32, #tpu.memory_space<vmem>>, vector<1x16x128xf32>
    %301 = vector.shape_cast %300 : vector<1x16x128xf32> to vector<16x128xf32>
    %302 = vector.extract_strided_slice %281 {offsets = [0, 256], sizes = [16, 128], strides = [1, 1]} : vector<16x384xf32> to vector<16x128xf32>
    %303 = arith.addf %302, %79 : vector<16x128xf32>
    %304 = arith.mulf %290, %303 : vector<16x128xf32>
    %305 = arith.addf %301, %304 : vector<16x128xf32>
    %306 = math.tanh %305 : vector<16x128xf32>
    %cst_162 = arith.constant 1.000000e+00 : f32
    %307 = vector.broadcast %cst_162 : f32 to vector<16x128xf32>
    %308 = arith.subf %307, %299 : vector<16x128xf32>
    %309 = arith.mulf %308, %306 : vector<16x128xf32>
    %310 = arith.mulf %299, %276 : vector<16x128xf32>
    %311 = arith.addf %309, %310 : vector<16x128xf32>
    %c6_163 = arith.constant 6 : index
    %c0_164 = arith.constant 0 : index
    %c0_165 = arith.constant 0 : index
    %312 = vector.load %arg8[%c6_163, %c0_164, %c0_165] : memref<8x16x128xf32, #tpu.memory_space<vmem>>, vector<1x16x128xf32>
    %313 = vector.shape_cast %312 : vector<1x16x128xf32> to vector<16x128xf32>
    %314 = vector.shape_cast %311 : vector<16x128xf32> to vector<1x16x128xf32>
    tpu.vector_store %arg8[%c6_163, %c0_164, %c0_165], %314 {strides = array<i32>} : memref<8x16x128xf32, #tpu.memory_space<vmem>>, vector<1x16x128xf32>,
    %315 = arith.truncf %311 : vector<16x128xf32> to vector<16x128xbf16>
    %cst_166 = arith.constant dense<0.000000e+00> : vector<16x384xf32>
    %316 = tpu.matmul %315, %76, %cst_166 {dimension_numbers = #tpu.dot_dimension_numbers<[1], [0], [0], [1], [0, 0, 1, 1], [], []>} : vector<16x128xbf16>, vector<128x384xbf16>, vector<16x384xf32> -> vector<16x384xf32>
    %c7_167 = arith.constant 7 : index
    %c0_168 = arith.constant 0 : index
    %c0_169 = arith.constant 0 : index
    %317 = vector.load %arg7[%c7_167, %c0_168, %c0_169] : memref<8x16x384xf32, #tpu.memory_space<vmem>>, vector<1x16x128xf32>
    %318 = vector.shape_cast %317 : vector<1x16x128xf32> to vector<16x128xf32>
    %319 = vector.extract_strided_slice %316 {offsets = [0, 0], sizes = [16, 128], strides = [1, 1]} : vector<16x384xf32> to vector<16x128xf32>
    %320 = arith.addf %318, %319 : vector<16x128xf32>
    %321 = arith.negf %320 : vector<16x128xf32>
    %322 = math.exp %321 : vector<16x128xf32>
    %cst_170 = arith.constant 1.000000e+00 : f32
    %323 = vector.broadcast %cst_170 : f32 to vector<16x128xf32>
    %324 = arith.addf %323, %322 : vector<16x128xf32>
    %325 = arith.divf %323, %324 : vector<16x128xf32>
    %c7_171 = arith.constant 7 : index
    %c0_172 = arith.constant 0 : index
    %c128_173 = arith.constant 128 : index
    %326 = vector.load %arg7[%c7_171, %c0_172, %c128_173] : memref<8x16x384xf32, #tpu.memory_space<vmem>>, vector<1x16x128xf32>
    %327 = vector.shape_cast %326 : vector<1x16x128xf32> to vector<16x128xf32>
    %328 = vector.extract_strided_slice %316 {offsets = [0, 128], sizes = [16, 128], strides = [1, 1]} : vector<16x384xf32> to vector<16x128xf32>
    %329 = arith.addf %327, %328 : vector<16x128xf32>
    %330 = arith.negf %329 : vector<16x128xf32>
    %331 = math.exp %330 : vector<16x128xf32>
    %cst_174 = arith.constant 1.000000e+00 : f32
    %332 = vector.broadcast %cst_174 : f32 to vector<16x128xf32>
    %333 = arith.addf %332, %331 : vector<16x128xf32>
    %334 = arith.divf %332, %333 : vector<16x128xf32>
    %c7_175 = arith.constant 7 : index
    %c0_176 = arith.constant 0 : index
    %c256_177 = arith.constant 256 : index
    %335 = vector.load %arg7[%c7_175, %c0_176, %c256_177] : memref<8x16x384xf32, #tpu.memory_space<vmem>>, vector<1x16x128xf32>
    %336 = vector.shape_cast %335 : vector<1x16x128xf32> to vector<16x128xf32>
    %337 = vector.extract_strided_slice %316 {offsets = [0, 256], sizes = [16, 128], strides = [1, 1]} : vector<16x384xf32> to vector<16x128xf32>
    %338 = arith.addf %337, %79 : vector<16x128xf32>
    %339 = arith.mulf %325, %338 : vector<16x128xf32>
    %340 = arith.addf %336, %339 : vector<16x128xf32>
    %341 = math.tanh %340 : vector<16x128xf32>
    %cst_178 = arith.constant 1.000000e+00 : f32
    %342 = vector.broadcast %cst_178 : f32 to vector<16x128xf32>
    %343 = arith.subf %342, %334 : vector<16x128xf32>
    %344 = arith.mulf %343, %341 : vector<16x128xf32>
    %345 = arith.mulf %334, %311 : vector<16x128xf32>
    %346 = arith.addf %344, %345 : vector<16x128xf32>
    %c7_179 = arith.constant 7 : index
    %c0_180 = arith.constant 0 : index
    %c0_181 = arith.constant 0 : index
    %347 = vector.load %arg8[%c7_179, %c0_180, %c0_181] : memref<8x16x128xf32, #tpu.memory_space<vmem>>, vector<1x16x128xf32>
    %348 = vector.shape_cast %347 : vector<1x16x128xf32> to vector<16x128xf32>
    %349 = vector.shape_cast %346 : vector<16x128xf32> to vector<1x16x128xf32>
    tpu.vector_store %arg8[%c7_179, %c0_180, %c0_181], %349 {strides = array<i32>} : memref<8x16x128xf32, #tpu.memory_space<vmem>>, vector<1x16x128xf32>,
    %350 = tpu.iota {dimensions = array<i32: 1>} : vector<16x128xi32>
    %c64_i32_182 = arith.constant 64 : i32
    %351 = vector.broadcast %c64_i32_182 : i32 to vector<16x128xi32>
    %352 = arith.cmpi slt, %350, %351 : vector<16x128xi32>
    %c0_183 = arith.constant 0 : index
    %c0_184 = arith.constant 0 : index
    %c0_185 = arith.constant 0 : index
    %353 = vector.load %arg8[%c0_183, %c0_184, %c0_185] : memref<8x16x128xf32, #tpu.memory_space<vmem>>, vector<1x16x128xf32>
    %354 = vector.shape_cast %353 : vector<1x16x128xf32> to vector<16x128xf32>
    %c7_186 = arith.constant 7 : index
    %c0_187 = arith.constant 0 : index
    %c0_188 = arith.constant 0 : index
    %355 = vector.load %arg8[%c7_186, %c0_187, %c0_188] : memref<8x16x128xf32, #tpu.memory_space<vmem>>, vector<1x16x128xf32>
    %356 = vector.shape_cast %355 : vector<1x16x128xf32> to vector<16x128xf32>
    %357 = arith.select %352, %354, %356 : vector<16x128xi1>, vector<16x128xf32>
    %c0_189 = arith.constant 0 : index
    %c0_190 = arith.constant 0 : index
    %c0_191 = arith.constant 0 : index
    %358 = vector.load %arg6[%c0_189, %c0_190, %c0_191] : memref<8x16x128xf32, #tpu.memory_space<vmem>>, vector<1x16x128xf32>
    %359 = vector.shape_cast %358 : vector<1x16x128xf32> to vector<16x128xf32>
    %360 = vector.shape_cast %357 : vector<16x128xf32> to vector<1x16x128xf32>
    tpu.vector_store %arg6[%c0_189, %c0_190, %c0_191], %360 {strides = array<i32>} : memref<8x16x128xf32, #tpu.memory_space<vmem>>, vector<1x16x128xf32>,
    %c1_192 = arith.constant 1 : index
    %c0_193 = arith.constant 0 : index
    %c0_194 = arith.constant 0 : index
    %361 = vector.load %arg8[%c1_192, %c0_193, %c0_194] : memref<8x16x128xf32, #tpu.memory_space<vmem>>, vector<1x16x128xf32>
    %362 = vector.shape_cast %361 : vector<1x16x128xf32> to vector<16x128xf32>
    %c6_195 = arith.constant 6 : index
    %c0_196 = arith.constant 0 : index
    %c0_197 = arith.constant 0 : index
    %363 = vector.load %arg8[%c6_195, %c0_196, %c0_197] : memref<8x16x128xf32, #tpu.memory_space<vmem>>, vector<1x16x128xf32>
    %364 = vector.shape_cast %363 : vector<1x16x128xf32> to vector<16x128xf32>
    %365 = arith.select %352, %362, %364 : vector<16x128xi1>, vector<16x128xf32>
    %c1_198 = arith.constant 1 : index
    %c0_199 = arith.constant 0 : index
    %c0_200 = arith.constant 0 : index
    %366 = vector.load %arg6[%c1_198, %c0_199, %c0_200] : memref<8x16x128xf32, #tpu.memory_space<vmem>>, vector<1x16x128xf32>
    %367 = vector.shape_cast %366 : vector<1x16x128xf32> to vector<16x128xf32>
    %368 = vector.shape_cast %365 : vector<16x128xf32> to vector<1x16x128xf32>
    tpu.vector_store %arg6[%c1_198, %c0_199, %c0_200], %368 {strides = array<i32>} : memref<8x16x128xf32, #tpu.memory_space<vmem>>, vector<1x16x128xf32>,
    %c2_201 = arith.constant 2 : index
    %c0_202 = arith.constant 0 : index
    %c0_203 = arith.constant 0 : index
    %369 = vector.load %arg8[%c2_201, %c0_202, %c0_203] : memref<8x16x128xf32, #tpu.memory_space<vmem>>, vector<1x16x128xf32>
    %370 = vector.shape_cast %369 : vector<1x16x128xf32> to vector<16x128xf32>
    %c5_204 = arith.constant 5 : index
    %c0_205 = arith.constant 0 : index
    %c0_206 = arith.constant 0 : index
    %371 = vector.load %arg8[%c5_204, %c0_205, %c0_206] : memref<8x16x128xf32, #tpu.memory_space<vmem>>, vector<1x16x128xf32>
    %372 = vector.shape_cast %371 : vector<1x16x128xf32> to vector<16x128xf32>
    %373 = arith.select %352, %370, %372 : vector<16x128xi1>, vector<16x128xf32>
    %c2_207 = arith.constant 2 : index
    %c0_208 = arith.constant 0 : index
    %c0_209 = arith.constant 0 : index
    %374 = vector.load %arg6[%c2_207, %c0_208, %c0_209] : memref<8x16x128xf32, #tpu.memory_space<vmem>>, vector<1x16x128xf32>
    %375 = vector.shape_cast %374 : vector<1x16x128xf32> to vector<16x128xf32>
    %376 = vector.shape_cast %373 : vector<16x128xf32> to vector<1x16x128xf32>
    tpu.vector_store %arg6[%c2_207, %c0_208, %c0_209], %376 {strides = array<i32>} : memref<8x16x128xf32, #tpu.memory_space<vmem>>, vector<1x16x128xf32>,
    %c3_210 = arith.constant 3 : index
    %c0_211 = arith.constant 0 : index
    %c0_212 = arith.constant 0 : index
    %377 = vector.load %arg8[%c3_210, %c0_211, %c0_212] : memref<8x16x128xf32, #tpu.memory_space<vmem>>, vector<1x16x128xf32>
    %378 = vector.shape_cast %377 : vector<1x16x128xf32> to vector<16x128xf32>
    %c4_213 = arith.constant 4 : index
    %c0_214 = arith.constant 0 : index
    %c0_215 = arith.constant 0 : index
    %379 = vector.load %arg8[%c4_213, %c0_214, %c0_215] : memref<8x16x128xf32, #tpu.memory_space<vmem>>, vector<1x16x128xf32>
    %380 = vector.shape_cast %379 : vector<1x16x128xf32> to vector<16x128xf32>
    %381 = arith.select %352, %378, %380 : vector<16x128xi1>, vector<16x128xf32>
    %c3_216 = arith.constant 3 : index
    %c0_217 = arith.constant 0 : index
    %c0_218 = arith.constant 0 : index
    %382 = vector.load %arg6[%c3_216, %c0_217, %c0_218] : memref<8x16x128xf32, #tpu.memory_space<vmem>>, vector<1x16x128xf32>
    %383 = vector.shape_cast %382 : vector<1x16x128xf32> to vector<16x128xf32>
    %384 = vector.shape_cast %381 : vector<16x128xf32> to vector<1x16x128xf32>
    tpu.vector_store %arg6[%c3_216, %c0_217, %c0_218], %384 {strides = array<i32>} : memref<8x16x128xf32, #tpu.memory_space<vmem>>, vector<1x16x128xf32>,
    %c4_219 = arith.constant 4 : index
    %c0_220 = arith.constant 0 : index
    %c0_221 = arith.constant 0 : index
    %385 = vector.load %arg8[%c4_219, %c0_220, %c0_221] : memref<8x16x128xf32, #tpu.memory_space<vmem>>, vector<1x16x128xf32>
    %386 = vector.shape_cast %385 : vector<1x16x128xf32> to vector<16x128xf32>
    %c3_222 = arith.constant 3 : index
    %c0_223 = arith.constant 0 : index
    %c0_224 = arith.constant 0 : index
    %387 = vector.load %arg8[%c3_222, %c0_223, %c0_224] : memref<8x16x128xf32, #tpu.memory_space<vmem>>, vector<1x16x128xf32>
    %388 = vector.shape_cast %387 : vector<1x16x128xf32> to vector<16x128xf32>
    %389 = arith.select %352, %386, %388 : vector<16x128xi1>, vector<16x128xf32>
    %c4_225 = arith.constant 4 : index
    %c0_226 = arith.constant 0 : index
    %c0_227 = arith.constant 0 : index
    %390 = vector.load %arg6[%c4_225, %c0_226, %c0_227] : memref<8x16x128xf32, #tpu.memory_space<vmem>>, vector<1x16x128xf32>
    %391 = vector.shape_cast %390 : vector<1x16x128xf32> to vector<16x128xf32>
    %392 = vector.shape_cast %389 : vector<16x128xf32> to vector<1x16x128xf32>
    tpu.vector_store %arg6[%c4_225, %c0_226, %c0_227], %392 {strides = array<i32>} : memref<8x16x128xf32, #tpu.memory_space<vmem>>, vector<1x16x128xf32>,
    %c5_228 = arith.constant 5 : index
    %c0_229 = arith.constant 0 : index
    %c0_230 = arith.constant 0 : index
    %393 = vector.load %arg8[%c5_228, %c0_229, %c0_230] : memref<8x16x128xf32, #tpu.memory_space<vmem>>, vector<1x16x128xf32>
    %394 = vector.shape_cast %393 : vector<1x16x128xf32> to vector<16x128xf32>
    %c2_231 = arith.constant 2 : index
    %c0_232 = arith.constant 0 : index
    %c0_233 = arith.constant 0 : index
    %395 = vector.load %arg8[%c2_231, %c0_232, %c0_233] : memref<8x16x128xf32, #tpu.memory_space<vmem>>, vector<1x16x128xf32>
    %396 = vector.shape_cast %395 : vector<1x16x128xf32> to vector<16x128xf32>
    %397 = arith.select %352, %394, %396 : vector<16x128xi1>, vector<16x128xf32>
    %c5_234 = arith.constant 5 : index
    %c0_235 = arith.constant 0 : index
    %c0_236 = arith.constant 0 : index
    %398 = vector.load %arg6[%c5_234, %c0_235, %c0_236] : memref<8x16x128xf32, #tpu.memory_space<vmem>>, vector<1x16x128xf32>
    %399 = vector.shape_cast %398 : vector<1x16x128xf32> to vector<16x128xf32>
    %400 = vector.shape_cast %397 : vector<16x128xf32> to vector<1x16x128xf32>
    tpu.vector_store %arg6[%c5_234, %c0_235, %c0_236], %400 {strides = array<i32>} : memref<8x16x128xf32, #tpu.memory_space<vmem>>, vector<1x16x128xf32>,
    %c6_237 = arith.constant 6 : index
    %c0_238 = arith.constant 0 : index
    %c0_239 = arith.constant 0 : index
    %401 = vector.load %arg8[%c6_237, %c0_238, %c0_239] : memref<8x16x128xf32, #tpu.memory_space<vmem>>, vector<1x16x128xf32>
    %402 = vector.shape_cast %401 : vector<1x16x128xf32> to vector<16x128xf32>
    %c1_240 = arith.constant 1 : index
    %c0_241 = arith.constant 0 : index
    %c0_242 = arith.constant 0 : index
    %403 = vector.load %arg8[%c1_240, %c0_241, %c0_242] : memref<8x16x128xf32, #tpu.memory_space<vmem>>, vector<1x16x128xf32>
    %404 = vector.shape_cast %403 : vector<1x16x128xf32> to vector<16x128xf32>
    %405 = arith.select %352, %402, %404 : vector<16x128xi1>, vector<16x128xf32>
    %c6_243 = arith.constant 6 : index
    %c0_244 = arith.constant 0 : index
    %c0_245 = arith.constant 0 : index
    %406 = vector.load %arg6[%c6_243, %c0_244, %c0_245] : memref<8x16x128xf32, #tpu.memory_space<vmem>>, vector<1x16x128xf32>
    %407 = vector.shape_cast %406 : vector<1x16x128xf32> to vector<16x128xf32>
    %408 = vector.shape_cast %405 : vector<16x128xf32> to vector<1x16x128xf32>
    tpu.vector_store %arg6[%c6_243, %c0_244, %c0_245], %408 {strides = array<i32>} : memref<8x16x128xf32, #tpu.memory_space<vmem>>, vector<1x16x128xf32>,
    %c7_246 = arith.constant 7 : index
    %c0_247 = arith.constant 0 : index
    %c0_248 = arith.constant 0 : index
    %409 = vector.load %arg8[%c7_246, %c0_247, %c0_248] : memref<8x16x128xf32, #tpu.memory_space<vmem>>, vector<1x16x128xf32>
    %410 = vector.shape_cast %409 : vector<1x16x128xf32> to vector<16x128xf32>
    %c0_249 = arith.constant 0 : index
    %c0_250 = arith.constant 0 : index
    %c0_251 = arith.constant 0 : index
    %411 = vector.load %arg8[%c0_249, %c0_250, %c0_251] : memref<8x16x128xf32, #tpu.memory_space<vmem>>, vector<1x16x128xf32>
    %412 = vector.shape_cast %411 : vector<1x16x128xf32> to vector<16x128xf32>
    %413 = arith.select %352, %410, %412 : vector<16x128xi1>, vector<16x128xf32>
    %c7_252 = arith.constant 7 : index
    %c0_253 = arith.constant 0 : index
    %c0_254 = arith.constant 0 : index
    %414 = vector.load %arg6[%c7_252, %c0_253, %c0_254] : memref<8x16x128xf32, #tpu.memory_space<vmem>>, vector<1x16x128xf32>
    %415 = vector.shape_cast %414 : vector<1x16x128xf32> to vector<16x128xf32>
    %416 = vector.shape_cast %413 : vector<16x128xf32> to vector<1x16x128xf32>
    tpu.vector_store %arg6[%c7_252, %c0_253, %c0_254], %416 {strides = array<i32>} : memref<8x16x128xf32, #tpu.memory_space<vmem>>, vector<1x16x128xf32>,
    return
  }
  func.func @transform_0(%arg0: i32) -> (i32, i32, i32) {
    %c0_i32 = arith.constant 0 : i32
    %c0_i32_0 = arith.constant 0 : i32
    %c0_i32_1 = arith.constant 0 : i32
    return %c0_i32, %arg0, %c0_i32_0 : i32, i32, i32
  }
  func.func @transform_1(%arg0: i32) -> (i32, i32) {
    %c0_i32 = arith.constant 0 : i32
    %c0_i32_0 = arith.constant 0 : i32
    %c0_i32_1 = arith.constant 0 : i32
    return %c0_i32, %c0_i32_0 : i32, i32
  }
  func.func @transform_2(%arg0: i32) -> (i32, i32) {
    %c0_i32 = arith.constant 0 : i32
    %c0_i32_0 = arith.constant 0 : i32
    %c0_i32_1 = arith.constant 0 : i32
    return %c0_i32, %c0_i32_0 : i32, i32
  }
  func.func @transform_3(%arg0: i32) -> (i32, i32) {
    %c0_i32 = arith.constant 0 : i32
    %c0_i32_0 = arith.constant 0 : i32
    %c0_i32_1 = arith.constant 0 : i32
    return %c0_i32, %c0_i32_0 : i32, i32
  }
  func.func @transform_4(%arg0: i32) -> (i32, i32) {
    %c0_i32 = arith.constant 0 : i32
    %c0_i32_0 = arith.constant 0 : i32
    %c0_i32_1 = arith.constant 0 : i32
    return %c0_i32, %c0_i32_0 : i32, i32
  }
  func.func @transform_5(%arg0: i32) -> (i32, i32, i32) {
    %c0_i32 = arith.constant 0 : i32
    %c0_i32_0 = arith.constant 0 : i32
    %c0_i32_1 = arith.constant 0 : i32
    return %c0_i32, %arg0, %c0_i32_0 : i32, i32, i32
  }
}

</mosaic_0001>

<llo_original>
// kernel: action_history_encoder.3
$region0: #{action_history_encoder.3}
  #allocation0 [shape = 'u32[]', space=smem, size = 0x4, offset = 0x4, fixed_abs, tag = 'smem constant byte address 0x4 - core index']
  #allocation1 [shape = 'u32[144,128]{1,0:T(1,128)}', space=vmem, size = 0x12000, scoped, tag = 'internal scratch']
  #allocation2 [shape = 'f32[8,16,384]{2,1,0:T(8,128)}', space=vmem, size = 0x30000, scoped, tag = 'scratch operand']
  #allocation3 [shape = 'f32[8,16,128]{2,1,0:T(8,128)}', space=vmem, size = 0x10000, scoped, tag = 'scratch operand']
  %s0 = inlined_call_operand.vmem [shape: bf16[8,16,128], index: 0, kind: input, shape index: {}]
  %s1 = inlined_call_operand.vmem [shape: bf16[128,384], index: 1, kind: input, shape index: {}]
  %s2 = inlined_call_operand.vmem [shape: bf16[128,384], index: 2, kind: input, shape index: {}]
  %s3 = inlined_call_operand.vmem [shape: f32[1,384], index: 3, kind: input, shape index: {}]
  %s4 = inlined_call_operand.vmem [shape: f32[1,128], index: 4, kind: input, shape index: {}]
  %s5 = inlined_call_operand.vmem [shape: f32[8,16,128], index: 5, kind: output, shape index: {}]
  %s6 = sld [smem:[#allocation0]]
  $region30: #{action_history_encoder.3} parent=0
    _
  %s8 = ssub.s32 1, %s6
  %s9 = scalar_select 0, %s8, %s6
  // Predicated region
  $region2: #{action_history_encoder.3} parent=0 // pred_check
    _
  $region3: #{action_history_encoder.3} parent=0 // pred_check_branch
    %11 = sbr.rel (0) target = $region5
  $region4: #{action_history_encoder.3} parent=0 // pred_region
    _
  $region5: #{action_history_encoder.3} parent=0 // pred_fallthru
    _
  // Predicated region
  $region6: #{action_history_encoder.3} parent=0 // pred_check
    _
  $region7: #{action_history_encoder.3} parent=0 // pred_check_branch
    %13 = sbr.rel (0) target = $region9
  $region8: #{action_history_encoder.3} parent=0 // pred_region
    _
  $region9: #{action_history_encoder.3} parent=0 // pred_fallthru
    _
  // Predicated region
  $region10: #{action_history_encoder.3} parent=0 // pred_check
    _
  $region11: #{action_history_encoder.3} parent=0 // pred_check_branch
    %15 = sbr.rel (0) target = $region13
  $region12: #{action_history_encoder.3} parent=0 // pred_region
    _
  $region13: #{action_history_encoder.3} parent=0 // pred_fallthru
    _
  // Predicated region
  $region14: #{action_history_encoder.3} parent=0 // pred_check
    _
  $region15: #{action_history_encoder.3} parent=0 // pred_check_branch
    %17 = sbr.rel (0) target = $region17
  $region16: #{action_history_encoder.3} parent=0 // pred_region
    _
  $region17: #{action_history_encoder.3} parent=0 // pred_fallthru
    _
  // Predicated region
  $region18: #{action_history_encoder.3} parent=0 // pred_check
    _
  $region19: #{action_history_encoder.3} parent=0 // pred_check_branch
    %19 = sbr.rel (0) target = $region21
  $region20: #{action_history_encoder.3} parent=0 // pred_region
    _
  $region21: #{action_history_encoder.3} parent=0 // pred_fallthru
    _
  %v21 = vld [vmem:[%s0] sm:$0xf]
  %v22 = vld [vmem:[%s0 + $0x4] sm:$0xf]
  %v23 = vld [vmem:[%s0 + $0x8] sm:$0xf]
  %v24 = vld [vmem:[%s0 + $0xc] sm:$0xf]
  %v25 = vld [vmem:[%s0 + $0x10] sm:$0xf]
  %v26 = vld [vmem:[%s0 + $0x14] sm:$0xf]
  %v27 = vld [vmem:[%s0 + $0x18] sm:$0xf]
  %v28 = vld [vmem:[%s0 + $0x1c] sm:$0xf]
  %v29 = vld [vmem:[%s0 + $0x20] sm:$0xf]
  %v30 = vld [vmem:[%s0 + $0x24] sm:$0xf]
  %v31 = vld [vmem:[%s0 + $0x28] sm:$0xf]
  %v32 = vld [vmem:[%s0 + $0x2c] sm:$0xf]
  %v33 = vld [vmem:[%s0 + $0x30] sm:$0xf]
  %v34 = vld [vmem:[%s0 + $0x34] sm:$0xf]
  %v35 = vld [vmem:[%s0 + $0x38] sm:$0xf]
  %v36 = vld [vmem:[%s0 + $0x3c] sm:$0xf]
  %v37 = vld [vmem:[%s1] sm:$0xff]
  %v38 = vld [vmem:[%s1 + $0x8] sm:$0xf]
  %v39 = vld [vmem:[%s1 + $0xc] sm:$0xff]
  %v40 = vld [vmem:[%s1 + $0x14] sm:$0xf]
  %v41 = vld [vmem:[%s1 + $0x18] sm:$0xff]
  %v42 = vld [vmem:[%s1 + $0x20] sm:$0xf]
  %v43 = vld [vmem:[%s1 + $0x24] sm:$0xff]
  %v44 = vld [vmem:[%s1 + $0x2c] sm:$0xf]
  %v45 = vld [vmem:[%s1 + $0x30] sm:$0xff]
  %v46 = vld [vmem:[%s1 + $0x38] sm:$0xf]
  %v47 = vld [vmem:[%s1 + $0x3c] sm:$0xff]
  %v48 = vld [vmem:[%s1 + $0x44] sm:$0xf]
  %v49 = vld [vmem:[%s1 + $0x48] sm:$0xff]
  %v50 = vld [vmem:[%s1 + $0x50] sm:$0xf]
  %v51 = vld [vmem:[%s1 + $0x54] sm:$0xff]
  %v52 = vld [vmem:[%s1 + $0x5c] sm:$0xf]
  %v53 = vld [vmem:[%s1 + $0x60] sm:$0xff]
  %v54 = vld [vmem:[%s1 + $0x68] sm:$0xf]
  %v55 = vld [vmem:[%s1 + $0x6c] sm:$0xff]
  %v56 = vld [vmem:[%s1 + $0x74] sm:$0xf]
  %v57 = vld [vmem:[%s1 + $0x78] sm:$0xff]
  %v58 = vld [vmem:[%s1 + $0x80] sm:$0xf]
  %v59 = vld [vmem:[%s1 + $0x84] sm:$0xff]
  %v60 = vld [vmem:[%s1 + $0x8c] sm:$0xf]
  %v61 = vld [vmem:[%s1 + $0x90] sm:$0xff]
  %v62 = vld [vmem:[%s1 + $0x98] sm:$0xf]
  %v63 = vld [vmem:[%s1 + $0x9c] sm:$0xff]
  %v64 = vld [vmem:[%s1 + $0xa4] sm:$0xf]
  %v65 = vld [vmem:[%s1 + $0xa8] sm:$0xff]
  %v66 = vld [vmem:[%s1 + $0xb0] sm:$0xf]
  %v67 = vld [vmem:[%s1 + $0xb4] sm:$0xff]
  %v68 = vld [vmem:[%s1 + $0xbc] sm:$0xf]
  %v69 = vld [vmem:[%s3] sm:$0x7]
  %v71 = vlaneseq
  %v72 = vshrl.u32 %v71, 7
  %v73 = vsub.s32 0, %v72
  %v74 = vrot.slane %v69, %v73
  %v75 = vlaneseq
  %v76 = vshrl.u32 %v75, 7
  %v77 = vsub.s32 1, %v76
  %v78 = vrot.slane %v69, %v77
  %v79 = vlaneseq
  %v80 = vshrl.u32 %v79, 7
  %v81 = vsub.s32 2, %v80
  %v82 = vrot.slane %v69, %v81
  %v102 = vunpack.c.l.b16 %v21
  %v103 = vunpack.c.l.b16 %v22
  %v104 = vunpack.c.l.b16 %v23
  %v105 = vunpack.c.l.b16 %v24
  %v106 = vunpack.c.l.b16 %v25
  %v107 = vunpack.c.l.b16 %v26
  %v108 = vunpack.c.l.b16 %v27
  %v109 = vunpack.c.l.b16 %v28
  %v110 = vunpack.c.l.b16 %v29
  %v111 = vunpack.c.l.b16 %v30
  %v112 = vunpack.c.l.b16 %v31
  %v113 = vunpack.c.l.b16 %v32
  %v114 = vunpack.c.l.b16 %v33
  %v115 = vunpack.c.l.b16 %v34
  %v116 = vunpack.c.l.b16 %v35
  %v117 = vunpack.c.l.b16 %v36
  %v118 = vpack.c.b16 %v103, %v102
  %v119 = vpack.c.b16 %v105, %v104
  %v120 = vpack.c.b16 %v107, %v106
  %v121 = vpack.c.b16 %v109, %v108
  %v122 = vpack.c.b16 %v111, %v110
  %v123 = vpack.c.b16 %v113, %v112
  %v124 = vpack.c.b16 %v115, %v114
  %v125 = vpack.c.b16 %v117, %v116
  %v166 = vunpack.c.l.b16 %v37
  %v167 = vunpack.c.h.b16 %v37
  %v168 = vunpack.c.l.b16 %v38
  %v169 = vunpack.c.l.b16 %v39
  %v170 = vunpack.c.h.b16 %v39
  %v171 = vunpack.c.l.b16 %v40
  %v172 = vunpack.c.l.b16 %v41
  %v173 = vunpack.c.h.b16 %v41
  %v174 = vunpack.c.l.b16 %v42
  %v175 = vunpack.c.l.b16 %v43
  %v176 = vunpack.c.h.b16 %v43
  %v177 = vunpack.c.l.b16 %v44
  %v178 = vunpack.c.l.b16 %v45
  %v179 = vunpack.c.h.b16 %v45
  %v180 = vunpack.c.l.b16 %v46
  %v181 = vunpack.c.l.b16 %v47
  %v182 = vunpack.c.h.b16 %v47
  %v183 = vunpack.c.l.b16 %v48
  %v184 = vunpack.c.l.b16 %v49
  %v185 = vunpack.c.h.b16 %v49
  %v186 = vunpack.c.l.b16 %v50
  %v187 = vunpack.c.l.b16 %v51
  %v188 = vunpack.c.h.b16 %v51
  %v189 = vunpack.c.l.b16 %v52
  %v190 = vunpack.c.l.b16 %v53
  %v191 = vunpack.c.h.b16 %v53
  %v192 = vunpack.c.l.b16 %v54
  %v193 = vunpack.c.l.b16 %v55
  %v194 = vunpack.c.h.b16 %v55
  %v195 = vunpack.c.l.b16 %v56
  %v196 = vunpack.c.l.b16 %v57
  %v197 = vunpack.c.h.b16 %v57
  %v198 = vunpack.c.l.b16 %v58
  %v199 = vunpack.c.l.b16 %v59
  %v200 = vunpack.c.h.b16 %v59
  %v201 = vunpack.c.l.b16 %v60
  %v202 = vunpack.c.l.b16 %v61
  %v203 = vunpack.c.h.b16 %v61
  %v204 = vunpack.c.l.b16 %v62
  %v205 = vunpack.c.l.b16 %v63
  %v206 = vunpack.c.h.b16 %v63
  %v207 = vunpack.c.l.b16 %v64
  %v208 = vunpack.c.l.b16 %v65
  %v209 = vunpack.c.h.b16 %v65
  %v210 = vunpack.c.l.b16 %v66
  %v211 = vunpack.c.l.b16 %v67
  %v212 = vunpack.c.h.b16 %v67
  %v213 = vunpack.c.l.b16 %v68
  %v214 = vpack.c.b16 %v169, %v166
  %v215 = vpack.c.b16 %v170, %v167
  %v216 = vpack.c.b16 %v171, %v168
  %v217 = vpack.c.b16 %v175, %v172
  %v218 = vpack.c.b16 %v176, %v173
  %v219 = vpack.c.b16 %v177, %v174
  %v220 = vpack.c.b16 %v181, %v178
  %v221 = vpack.c.b16 %v182, %v179
  %v222 = vpack.c.b16 %v183, %v180
  %v223 = vpack.c.b16 %v187, %v184
  %v224 = vpack.c.b16 %v188, %v185
  %v225 = vpack.c.b16 %v189, %v186
  %v226 = vpack.c.b16 %v193, %v190
  %v227 = vpack.c.b16 %v194, %v191
  %v228 = vpack.c.b16 %v195, %v192
  %v229 = vpack.c.b16 %v199, %v196
  %v230 = vpack.c.b16 %v200, %v197
  %v231 = vpack.c.b16 %v201, %v198
  %v232 = vpack.c.b16 %v205, %v202
  %v233 = vpack.c.b16 %v206, %v203
  %v234 = vpack.c.b16 %v207, %v204
  %v235 = vpack.c.b16 %v211, %v208
  %v236 = vpack.c.b16 %v212, %v209
  %v237 = vpack.c.b16 %v213, %v210
  %262 = vmatprep.subr.bf16.mxu0 %v215
  %263 = vmatpush1.bf16.msra.mxu0 %v214
  %264 = vmatprep.subr.bf16.mxu0 %v218
  %265 = vmatpush1.bf16.msra.mxu0 %v217
  %266 = vmatprep.subr.bf16.mxu0 %v221
  %267 = vmatpush1.bf16.msra.mxu0 %v220
  %268 = vmatprep.subr.bf16.mxu0 %v224
  %269 = vmatpush1.bf16.msra.mxu0 %v223
  %270 = vmatprep.subr.bf16.mxu0 %v227
  %271 = vmatpush1.bf16.msra.mxu0 %v226
  %272 = vmatprep.subr.bf16.mxu0 %v230
  %273 = vmatpush1.bf16.msra.mxu0 %v229
  %274 = vmatprep.subr.bf16.mxu0 %v233
  %275 = vmatpush1.bf16.msra.mxu0 %v232
  %276 = vmatprep.subr.bf16.mxu0 %v236
  %277 = vmatpush1.bf16.msra.mxu0 %v235
  %278 = vmatprep.subr.bf16.mxu0 0
  %279 = vmatpush1.bf16.msra.mxu0 0
  %280 = vmatprep.subr.bf16.mxu0 0
  %281 = vmatpush1.bf16.msra.mxu0 0
  %282 = vmatprep.subr.bf16.mxu0 0
  %283 = vmatpush1.bf16.msra.mxu0 0
  %284 = vmatprep.subr.bf16.mxu0 0
  %285 = vmatpush1.bf16.msra.mxu0 0
  %286 = vmatprep.subr.bf16.mxu0 0
  %287 = vmatpush1.bf16.msra.mxu0 0
  %288 = vmatprep.subr.bf16.mxu0 0
  %289 = vmatpush1.bf16.msra.mxu0 0
  %290 = vmatprep.subr.bf16.mxu0 0
  %291 = vmatpush1.bf16.msra.mxu0 0
  %292 = vmatprep.subr.bf16.mxu0 0
  %293 = vmatpush1.bf16.msra.mxu0 0
  %294 = vmatprep.mubr.bf16.mxu0 0
  %295 = vmatmul.mubr.bf16.gmra.mrb[0].mxu0 %v118
  %v296 = vpop.f32.mrb[0].mxu0
  %v297 = vadd.f32 %v74, %v296
  %v298 = vpop.f32.mrb[0].mxu0
  %v299 = vadd.f32 %v78, %v298
  %v300 = vpop.f32.mrb[0].mxu0
  %v301 = vadd.f32 %v74, %v300
  %v302 = vpop.f32.mrb[0].mxu0
  %v303 = vadd.f32 %v78, %v302
  %304 = vmatprep.mubr.bf16.mxu0 0
  %305 = vmatmul.mubr.bf16.gmra.mrb[0].mxu0 %v119
  %v306 = vpop.f32.mrb[0].mxu0
  %v307 = vadd.f32 %v74, %v306
  %v308 = vpop.f32.mrb[0].mxu0
  %v309 = vadd.f32 %v78, %v308
  %v310 = vpop.f32.mrb[0].mxu0
  %v311 = vadd.f32 %v74, %v310
  %v312 = vpop.f32.mrb[0].mxu0
  %v313 = vadd.f32 %v78, %v312
  %314 = vmatprep.mubr.bf16.mxu0 0
  %315 = vmatmul.mubr.bf16.gmra.mrb[0].mxu0 %v120
  %v316 = vpop.f32.mrb[0].mxu0
  %v317 = vadd.f32 %v74, %v316
  %v318 = vpop.f32.mrb[0].mxu0
  %v319 = vadd.f32 %v78, %v318
  %v320 = vpop.f32.mrb[0].mxu0
  %v321 = vadd.f32 %v74, %v320
  %v322 = vpop.f32.mrb[0].mxu0
  %v323 = vadd.f32 %v78, %v322
  %324 = vmatprep.mubr.bf16.mxu0 0
  %325 = vmatmul.mubr.bf16.gmra.mrb[0].mxu0 %v121
  %v326 = vpop.f32.mrb[0].mxu0
  %v327 = vadd.f32 %v74, %v326
  %v328 = vpop.f32.mrb[0].mxu0
  %v329 = vadd.f32 %v78, %v328
  %v330 = vpop.f32.mrb[0].mxu0
  %v331 = vadd.f32 %v74, %v330
  %v332 = vpop.f32.mrb[0].mxu0
  %v333 = vadd.f32 %v78, %v332
  %334 = vmatprep.mubr.bf16.mxu0 0
  %335 = vmatmul.mubr.bf16.gmra.mrb[0].mxu0 %v122
  %v336 = vpop.f32.mrb[0].mxu0
  %v337 = vadd.f32 %v74, %v336
  %v338 = vpop.f32.mrb[0].mxu0
  %v339 = vadd.f32 %v78, %v338
  %v340 = vpop.f32.mrb[0].mxu0
  %v341 = vadd.f32 %v74, %v340
  %v342 = vpop.f32.mrb[0].mxu0
  %v343 = vadd.f32 %v78, %v342
  %344 = vmatprep.mubr.bf16.mxu0 0
  %345 = vmatmul.mubr.bf16.gmra.mrb[0].mxu0 %v123
  %v346 = vpop.f32.mrb[0].mxu0
  %v347 = vadd.f32 %v74, %v346
  %v348 = vpop.f32.mrb[0].mxu0
  %v349 = vadd.f32 %v78, %v348
  %v350 = vpop.f32.mrb[0].mxu0
  %v351 = vadd.f32 %v74, %v350
  %v352 = vpop.f32.mrb[0].mxu0
  %v353 = vadd.f32 %v78, %v352
  %354 = vmatprep.mubr.bf16.mxu0 0
  %355 = vmatmul.mubr.bf16.gmra.mrb[0].mxu0 %v124
  %v356 = vpop.f32.mrb[0].mxu0
  %v357 = vadd.f32 %v74, %v356
  %v358 = vpop.f32.mrb[0].mxu0
  %v359 = vadd.f32 %v78, %v358
  %v360 = vpop.f32.mrb[0].mxu0
  %v361 = vadd.f32 %v74, %v360
  %v362 = vpop.f32.mrb[0].mxu0
  %v363 = vadd.f32 %v78, %v362
  %364 = vmatprep.mubr.bf16.mxu0 0
  %365 = vmatmul.mubr.bf16.gmra.mrb[0].mxu0 %v125
  %v366 = vpop.f32.mrb[0].mxu0
  %v367 = vadd.f32 %v74, %v366
  %v368 = vpop.f32.mrb[0].mxu0
  %v369 = vadd.f32 %v78, %v368
  %v370 = vpop.f32.mrb[0].mxu0
  %v371 = vadd.f32 %v74, %v370
  %v372 = vpop.f32.mrb[0].mxu0
  %v373 = vadd.f32 %v78, %v372
  %374 = vdwg.mxu0
  %375 = vmatprep.subr.bf16.mxu0 0
  %376 = vmatpush1.bf16.msra.mxu0 %v216
  %377 = vmatprep.subr.bf16.mxu0 0
  %378 = vmatpush1.bf16.msra.mxu0 %v219
  %379 = vmatprep.subr.bf16.mxu0 0
  %380 = vmatpush1.bf16.msra.mxu0 %v222
  %381 = vmatprep.subr.bf16.mxu0 0
  %382 = vmatpush1.bf16.msra.mxu0 %v225
  %383 = vmatprep.subr.bf16.mxu0 0
  %384 = vmatpush1.bf16.msra.mxu0 %v228
  %385 = vmatprep.subr.bf16.mxu0 0
  %386 = vmatpush1.bf16.msra.mxu0 %v231
  %387 = vmatprep.subr.bf16.mxu0 0
  %388 = vmatpush1.bf16.msra.mxu0 %v234
  %389 = vmatprep.subr.bf16.mxu0 0
  %390 = vmatpush1.bf16.msra.mxu0 %v237
  %391 = vmatprep.subr.bf16.mxu0 0
  %392 = vmatpush1.bf16.msra.mxu0 0
  %393 = vmatprep.subr.bf16.mxu0 0
  %394 = vmatpush1.bf16.msra.mxu0 0
  %395 = vmatprep.subr.bf16.mxu0 0
  %396 = vmatpush1.bf16.msra.mxu0 0
  %397 = vmatprep.subr.bf16.mxu0 0
  %398 = vmatpush1.bf16.msra.mxu0 0
  %399 = vmatprep.subr.bf16.mxu0 0
  %400 = vmatpush1.bf16.msra.mxu0 0
  %401 = vmatprep.subr.bf16.mxu0 0
  %402 = vmatpush1.bf16.msra.mxu0 0
  %403 = vmatprep.subr.bf16.mxu0 0
  %404 = vmatpush1.bf16.msra.mxu0 0
  %405 = vmatprep.subr.bf16.mxu0 0
  %406 = vmatpush1.bf16.msra.mxu0 0
  %407 = vmatprep.mubr.bf16.mxu0 0
  %408 = vmatmul.mubr.bf16.gmra.mrb[0].mxu0 %v118
  %v409 = vpop.f32.mrb[0].mxu0
  %v410 = vadd.f32 %v82, %v409
  %v411 = vpop.f32.mrb[0].mxu0
  %v412 = vpop.f32.mrb[0].mxu0
  %v413 = vadd.f32 %v82, %v412
  %v414 = vpop.f32.mrb[0].mxu0
  %415 = vmatprep.mubr.bf16.mxu0 0
  %416 = vmatmul.mubr.bf16.gmra.mrb[0].mxu0 %v119
  %v417 = vpop.f32.mrb[0].mxu0
  %v418 = vadd.f32 %v82, %v417
  %v419 = vpop.f32.mrb[0].mxu0
  %v420 = vpop.f32.mrb[0].mxu0
  %v421 = vadd.f32 %v82, %v420
  %v422 = vpop.f32.mrb[0].mxu0
  %423 = vmatprep.mubr.bf16.mxu0 0
  %424 = vmatmul.mubr.bf16.gmra.mrb[0].mxu0 %v120
  %v425 = vpop.f32.mrb[0].mxu0
  %v426 = vadd.f32 %v82, %v425
  %v427 = vpop.f32.mrb[0].mxu0
  %v428 = vpop.f32.mrb[0].mxu0
  %v429 = vadd.f32 %v82, %v428
  %v430 = vpop.f32.mrb[0].mxu0
  %431 = vmatprep.mubr.bf16.mxu0 0
  %432 = vmatmul.mubr.bf16.gmra.mrb[0].mxu0 %v121
  %v433 = vpop.f32.mrb[0].mxu0
  %v434 = vadd.f32 %v82, %v433
  %v435 = vpop.f32.mrb[0].mxu0
  %v436 = vpop.f32.mrb[0].mxu0
  %v437 = vadd.f32 %v82, %v436
  %v438 = vpop.f32.mrb[0].mxu0
  %439 = vmatprep.mubr.bf16.mxu0 0
  %440 = vmatmul.mubr.bf16.gmra.mrb[0].mxu0 %v122
  %v441 = vpop.f32.mrb[0].mxu0
  %v442 = vadd.f32 %v82, %v441
  %v443 = vpop.f32.mrb[0].mxu0
  %v444 = vpop.f32.mrb[0].mxu0
  %v445 = vadd.f32 %v82, %v444
  %v446 = vpop.f32.mrb[0].mxu0
  %447 = vmatprep.mubr.bf16.mxu0 0
  %448 = vmatmul.mubr.bf16.gmra.mrb[0].mxu0 %v123
  %v449 = vpop.f32.mrb[0].mxu0
  %v450 = vadd.f32 %v82, %v449
  %v451 = vpop.f32.mrb[0].mxu0
  %v452 = vpop.f32.mrb[0].mxu0
  %v453 = vadd.f32 %v82, %v452
  %v454 = vpop.f32.mrb[0].mxu0
  %455 = vmatprep.mubr.bf16.mxu0 0
  %456 = vmatmul.mubr.bf16.gmra.mrb[0].mxu0 %v124
  %v457 = vpop.f32.mrb[0].mxu0
  %v458 = vadd.f32 %v82, %v457
  %v459 = vpop.f32.mrb[0].mxu0
  %v460 = vpop.f32.mrb[0].mxu0
  %v461 = vadd.f32 %v82, %v460
  %v462 = vpop.f32.mrb[0].mxu0
  %463 = vmatprep.mubr.bf16.mxu0 0
  %464 = vmatmul.mubr.bf16.gmra.mrb[0].mxu0 %v125
  %v465 = vpop.f32.mrb[0].mxu0
  %v466 = vadd.f32 %v82, %v465
  %v467 = vpop.f32.mrb[0].mxu0
  %v468 = vpop.f32.mrb[0].mxu0
  %v469 = vadd.f32 %v82, %v468
  %v470 = vpop.f32.mrb[0].mxu0
  %471 = vdwg.mxu0
  %472 = vst [vmem:[#allocation2] sm:$0xff] %v297
  %473 = vst [vmem:[#allocation2 + $0x8] sm:$0xff] %v299
  %474 = vst [vmem:[#allocation2 + $0x10] sm:$0xff] %v410
  %475 = vst [vmem:[#allocation2 + $0x18] sm:$0xff] %v301
  %476 = vst [vmem:[#allocation2 + $0x20] sm:$0xff] %v303
  %477 = vst [vmem:[#allocation2 + $0x28] sm:$0xff] %v413
  %478 = vst [vmem:[#allocation2 + $0x30] sm:$0xff] %v307
  %479 = vst [vmem:[#allocation2 + $0x38] sm:$0xff] %v309
  %480 = vst [vmem:[#allocation2 + $0x40] sm:$0xff] %v418
  %481 = vst [vmem:[#allocation2 + $0x48] sm:$0xff] %v311
  %482 = vst [vmem:[#allocation2 + $0x50] sm:$0xff] %v313
  %483 = vst [vmem:[#allocation2 + $0x58] sm:$0xff] %v421
  %484 = vst [vmem:[#allocation2 + $0x60] sm:$0xff] %v317
  %485 = vst [vmem:[#allocation2 + $0x68] sm:$0xff] %v319
  %486 = vst [vmem:[#allocation2 + $0x70] sm:$0xff] %v426
  %487 = vst [vmem:[#allocation2 + $0x78] sm:$0xff] %v321
  %488 = vst [vmem:[#allocation2 + $0x80] sm:$0xff] %v323
  %489 = vst [vmem:[#allocation2 + $0x88] sm:$0xff] %v429
  %490 = vst [vmem:[#allocation2 + $0x90] sm:$0xff] %v327
  %491 = vst [vmem:[#allocation2 + $0x98] sm:$0xff] %v329
  %492 = vst [vmem:[#allocation2 + $0xa0] sm:$0xff] %v434
  %493 = vst [vmem:[#allocation2 + $0xa8] sm:$0xff] %v331
  %494 = vst [vmem:[#allocation2 + $0xb0] sm:$0xff] %v333
  %495 = vst [vmem:[#allocation2 + $0xb8] sm:$0xff] %v437
  %496 = vst [vmem:[#allocation2 + $0xc0] sm:$0xff] %v337
  %497 = vst [vmem:[#allocation2 + $0xc8] sm:$0xff] %v339
  %498 = vst [vmem:[#allocation2 + $0xd0] sm:$0xff] %v442
  %499 = vst [vmem:[#allocation2 + $0xd8] sm:$0xff] %v341
  %500 = vst [vmem:[#allocation2 + $0xe0] sm:$0xff] %v343
  %501 = vst [vmem:[#allocation2 + $0xe8] sm:$0xff] %v445
  %502 = vst [vmem:[#allocation2 + $0xf0] sm:$0xff] %v347
  %503 = vst [vmem:[#allocation2 + $0xf8] sm:$0xff] %v349
  %504 = vst [vmem:[#allocation2 + $0x100] sm:$0xff] %v450
  %505 = vst [vmem:[#allocation2 + $0x108] sm:$0xff] %v351
  %506 = vst [vmem:[#allocation2 + $0x110] sm:$0xff] %v353
  %507 = vst [vmem:[#allocation2 + $0x118] sm:$0xff] %v453
  %508 = vst [vmem:[#allocation2 + $0x120] sm:$0xff] %v357
  %509 = vst [vmem:[#allocation2 + $0x128] sm:$0xff] %v359
  %510 = vst [vmem:[#allocation2 + $0x130] sm:$0xff] %v458
  %511 = vst [vmem:[#allocation2 + $0x138] sm:$0xff] %v361
  %512 = vst [vmem:[#allocation2 + $0x140] sm:$0xff] %v363
  %513 = vst [vmem:[#allocation2 + $0x148] sm:$0xff] %v461
  %514 = vst [vmem:[#allocation2 + $0x150] sm:$0xff] %v367
  %515 = vst [vmem:[#allocation2 + $0x158] sm:$0xff] %v369
  %516 = vst [vmem:[#allocation2 + $0x160] sm:$0xff] %v466
  %517 = vst [vmem:[#allocation2 + $0x168] sm:$0xff] %v371
  %518 = vst [vmem:[#allocation2 + $0x170] sm:$0xff] %v373
  %519 = vst [vmem:[#allocation2 + $0x178] sm:$0xff] %v469
  %v520 = vlaneseq
  %v521 = vand.u32 %v520, 127
  %v522 = vadd.s32 %v521, 128
  %v523 = vadd.s32 %v521, 256
  %vm524 = vcmp.lt.s32.totalorder %v521, 0
  %v525 = vsub.s32 0, %v521
  %v526 = vsel %vm524, %v525, %v521
  %v527 = vshrl.u32 %v526, 7
  %v528 = vand.u32 %v526, 127
  %v529 = vsub.s32 0, %v528
  %v530 = vsel %vm524, %v529, %v528
  %vm531 = vcmp.lt.s32.totalorder %v522, 0
  %v532 = vsub.s32 0, %v522
  %v533 = vsel %vm531, %v532, %v522
  %v534 = vshrl.u32 %v533, 7
  %v535 = vand.u32 %v533, 127
  %v536 = vsub.s32 0, %v535
  %v537 = vsel %vm531, %v536, %v535
  %vm538 = vcmp.lt.s32.totalorder %v523, 0
  %v539 = vsub.s32 0, %v523
  %v540 = vsel %vm538, %v539, %v523
  %v541 = vshrl.u32 %v540, 7
  %v542 = vand.u32 %v540, 127
  %v543 = vsub.s32 0, %v542
  %v544 = vsel %vm538, %v543, %v542
  %vm545 = vcmp.ne.s32.totalorder %v530, 0
  %vm546 = vcmp.ne.s32.totalorder %v537, 0
  %vm547 = vcmp.ne.s32.totalorder %v544, 0
  %vm548 = vcmp.lt.s32.totalorder %v530, 0
  %vm549 = vcmp.lt.s32.totalorder %v537, 0
  %vm550 = vcmp.lt.s32.totalorder %v544, 0
  %vm551 = vmand %vm548, %vm545
  %vm552 = vmand %vm549, %vm546
  %vm553 = vmand %vm550, %vm547
  %v554 = vadd.s32 %v530, 128
  %v555 = vadd.s32 %v537, 128
  %v556 = vadd.s32 %v544, 128
  %v557 = vsel %vm551, %v554, %v530
  %v558 = vsel %vm552, %v555, %v537
  %v559 = vsel %vm553, %v556, %v544
  %vm560 = vcmp.lt.s32.totalorder %v557, 64
  %vm561 = vcmp.lt.s32.totalorder %v558, 64
  %vm562 = vcmp.lt.s32.totalorder %v559, 64
  %v563 = vld [vmem:[#allocation2] sm:$0xff]
  %v564 = vld [vmem:[#allocation2 + $0x8] sm:$0xff]
  %v565 = vld [vmem:[#allocation2 + $0x10] sm:$0xff]
  %v566 = vld [vmem:[#allocation2 + $0x18] sm:$0xff]
  %v567 = vld [vmem:[#allocation2 + $0x20] sm:$0xff]
  %v568 = vld [vmem:[#allocation2 + $0x28] sm:$0xff]
  %s569 = scalar_lea.vmem [#allocation2], 336
  %v570 = vld [vmem:[%s569] sm:$0xff]
  %v571 = vld [vmem:[%s569 + $0x8] sm:$0xff]
  %v572 = vld [vmem:[%s569 + $0x10] sm:$0xff]
  %v573 = vld [vmem:[%s569 + $0x18] sm:$0xff]
  %v574 = vld [vmem:[%s569 + $0x20] sm:$0xff]
  %v575 = vld [vmem:[%s569 + $0x28] sm:$0xff]
  %v576 = vsel %vm560, %v563, %v570
  %v577 = vsel %vm561, %v564, %v571
  %v578 = vsel %vm562, %v565, %v572
  %v579 = vsel %vm560, %v566, %v573
  %v580 = vsel %vm561, %v567, %v574
  %v581 = vsel %vm562, %v568, %v575
  %582 = vst [vmem:[#allocation2] sm:$0xff] %v576
  %583 = vst [vmem:[#allocation2 + $0x8] sm:$0xff] %v577
  %584 = vst [vmem:[#allocation2 + $0x10] sm:$0xff] %v578
  %585 = vst [vmem:[#allocation2 + $0x18] sm:$0xff] %v579
  %586 = vst [vmem:[#allocation2 + $0x20] sm:$0xff] %v580
  %587 = vst [vmem:[#allocation2 + $0x28] sm:$0xff] %v581
  %v588 = vsel %vm560, %v570, %v563
  %v589 = vsel %vm561, %v571, %v564
  %v590 = vsel %vm562, %v572, %v565
  %v591 = vsel %vm560, %v573, %v566
  %v592 = vsel %vm561, %v574, %v567
  %v593 = vsel %vm562, %v575, %v568
  %594 = vst [vmem:[%s569] sm:$0xff] %v588
  %595 = vst [vmem:[%s569 + $0x8] sm:$0xff] %v589
  %596 = vst [vmem:[%s569 + $0x10] sm:$0xff] %v590
  %597 = vst [vmem:[%s569 + $0x18] sm:$0xff] %v591
  %598 = vst [vmem:[%s569 + $0x20] sm:$0xff] %v592
  %599 = vst [vmem:[%s569 + $0x28] sm:$0xff] %v593
  %s600 = scalar_lea.vmem [#allocation2], 48
  %v601 = vld [vmem:[%s600] sm:$0xff]
  %v602 = vld [vmem:[%s600 + $0x8] sm:$0xff]
  %v603 = vld [vmem:[%s600 + $0x10] sm:$0xff]
  %v604 = vld [vmem:[%s600 + $0x18] sm:$0xff]
  %v605 = vld [vmem:[%s600 + $0x20] sm:$0xff]
  %v606 = vld [vmem:[%s600 + $0x28] sm:$0xff]
  %s607 = scalar_lea.vmem [#allocation2], 288
  %v608 = vld [vmem:[%s607] sm:$0xff]
  %v609 = vld [vmem:[%s607 + $0x8] sm:$0xff]
  %v610 = vld [vmem:[%s607 + $0x10] sm:$0xff]
  %v611 = vld [vmem:[%s607 + $0x18] sm:$0xff]
  %v612 = vld [vmem:[%s607 + $0x20] sm:$0xff]
  %v613 = vld [vmem:[%s607 + $0x28] sm:$0xff]
  %v614 = vsel %vm560, %v601, %v608
  %v615 = vsel %vm561, %v602, %v609
  %v616 = vsel %vm562, %v603, %v610
  %v617 = vsel %vm560, %v604, %v611
  %v618 = vsel %vm561, %v605, %v612
  %v619 = vsel %vm562, %v606, %v613
  %620 = vst [vmem:[%s600] sm:$0xff] %v614
  %621 = vst [vmem:[%s600 + $0x8] sm:$0xff] %v615
  %622 = vst [vmem:[%s600 + $0x10] sm:$0xff] %v616
  %623 = vst [vmem:[%s600 + $0x18] sm:$0xff] %v617
  %624 = vst [vmem:[%s600 + $0x20] sm:$0xff] %v618
  %625 = vst [vmem:[%s600 + $0x28] sm:$0xff] %v619
  %v626 = vsel %vm560, %v608, %v601
  %v627 = vsel %vm561, %v609, %v602
  %v628 = vsel %vm562, %v610, %v603
  %v629 = vsel %vm560, %v611, %v604
  %v630 = vsel %vm561, %v612, %v605
  %v631 = vsel %vm562, %v613, %v606
  %632 = vst [vmem:[%s607] sm:$0xff] %v626
  %633 = vst [vmem:[%s607 + $0x8] sm:$0xff] %v627
  %634 = vst [vmem:[%s607 + $0x10] sm:$0xff] %v628
  %635 = vst [vmem:[%s607 + $0x18] sm:$0xff] %v629
  %636 = vst [vmem:[%s607 + $0x20] sm:$0xff] %v630
  %637 = vst [vmem:[%s607 + $0x28] sm:$0xff] %v631
  %s638 = scalar_lea.vmem [#allocation2], 96
  %v639 = vld [vmem:[%s638] sm:$0xff]
  %v640 = vld [vmem:[%s638 + $0x8] sm:$0xff]
  %v641 = vld [vmem:[%s638 + $0x10] sm:$0xff]
  %v642 = vld [vmem:[%s638 + $0x18] sm:$0xff]
  %v643 = vld [vmem:[%s638 + $0x20] sm:$0xff]
  %v644 = vld [vmem:[%s638 + $0x28] sm:$0xff]
  %s645 = scalar_lea.vmem [#allocation2], 240
  %v646 = vld [vmem:[%s645] sm:$0xff]
  %v647 = vld [vmem:[%s645 + $0x8] sm:$0xff]
  %v648 = vld [vmem:[%s645 + $0x10] sm:$0xff]
  %v649 = vld [vmem:[%s645 + $0x18] sm:$0xff]
  %v650 = vld [vmem:[%s645 + $0x20] sm:$0xff]
  %v651 = vld [vmem:[%s645 + $0x28] sm:$0xff]
  %v652 = vsel %vm560, %v639, %v646
  %v653 = vsel %vm561, %v640, %v647
  %v654 = vsel %vm562, %v641, %v648
  %v655 = vsel %vm560, %v642, %v649
  %v656 = vsel %vm561, %v643, %v650
  %v657 = vsel %vm562, %v644, %v651
  %658 = vst [vmem:[%s638] sm:$0xff] %v652
  %659 = vst [vmem:[%s638 + $0x8] sm:$0xff] %v653
  %660 = vst [vmem:[%s638 + $0x10] sm:$0xff] %v654
  %661 = vst [vmem:[%s638 + $0x18] sm:$0xff] %v655
  %662 = vst [vmem:[%s638 + $0x20] sm:$0xff] %v656
  %663 = vst [vmem:[%s638 + $0x28] sm:$0xff] %v657
  %v664 = vsel %vm560, %v646, %v639
  %v665 = vsel %vm561, %v647, %v640
  %v666 = vsel %vm562, %v648, %v641
  %v667 = vsel %vm560, %v649, %v642
  %v668 = vsel %vm561, %v650, %v643
  %v669 = vsel %vm562, %v651, %v644
  %670 = vst [vmem:[%s645] sm:$0xff] %v664
  %671 = vst [vmem:[%s645 + $0x8] sm:$0xff] %v665
  %672 = vst [vmem:[%s645 + $0x10] sm:$0xff] %v666
  %673 = vst [vmem:[%s645 + $0x18] sm:$0xff] %v667
  %674 = vst [vmem:[%s645 + $0x20] sm:$0xff] %v668
  %675 = vst [vmem:[%s645 + $0x28] sm:$0xff] %v669
  %s676 = scalar_lea.vmem [#allocation2], 144
  %v677 = vld [vmem:[%s676] sm:$0xff]
  %v678 = vld [vmem:[%s676 + $0x8] sm:$0xff]
  %v679 = vld [vmem:[%s676 + $0x10] sm:$0xff]
  %v680 = vld [vmem:[%s676 + $0x18] sm:$0xff]
  %v681 = vld [vmem:[%s676 + $0x20] sm:$0xff]
  %v682 = vld [vmem:[%s676 + $0x28] sm:$0xff]
  %s683 = scalar_lea.vmem [#allocation2], 192
  %v684 = vld [vmem:[%s683] sm:$0xff]
  %v685 = vld [vmem:[%s683 + $0x8] sm:$0xff]
  %v686 = vld [vmem:[%s683 + $0x10] sm:$0xff]
  %v687 = vld [vmem:[%s683 + $0x18] sm:$0xff]
  %v688 = vld [vmem:[%s683 + $0x20] sm:$0xff]
  %v689 = vld [vmem:[%s683 + $0x28] sm:$0xff]
  %v690 = vsel %vm560, %v677, %v684
  %v691 = vsel %vm561, %v678, %v685
  %v692 = vsel %vm562, %v679, %v686
  %v693 = vsel %vm560, %v680, %v687
  %v694 = vsel %vm561, %v681, %v688
  %v695 = vsel %vm562, %v682, %v689
  %696 = vst [vmem:[%s676] sm:$0xff] %v690
  %697 = vst [vmem:[%s676 + $0x8] sm:$0xff] %v691
  %698 = vst [vmem:[%s676 + $0x10] sm:$0xff] %v692
  %699 = vst [vmem:[%s676 + $0x18] sm:$0xff] %v693
  %700 = vst [vmem:[%s676 + $0x20] sm:$0xff] %v694
  %701 = vst [vmem:[%s676 + $0x28] sm:$0xff] %v695
  %v702 = vsel %vm560, %v684, %v677
  %v703 = vsel %vm561, %v685, %v678
  %v704 = vsel %vm562, %v686, %v679
  %v705 = vsel %vm560, %v687, %v680
  %v706 = vsel %vm561, %v688, %v681
  %v707 = vsel %vm562, %v689, %v682
  %708 = vst [vmem:[%s683] sm:$0xff] %v702
  %709 = vst [vmem:[%s683 + $0x8] sm:$0xff] %v703
  %710 = vst [vmem:[%s683 + $0x10] sm:$0xff] %v704
  %711 = vst [vmem:[%s683 + $0x18] sm:$0xff] %v705
  %712 = vst [vmem:[%s683 + $0x20] sm:$0xff] %v706
  %713 = vst [vmem:[%s683 + $0x28] sm:$0xff] %v707
  %v714 = vld [vmem:[%s2] sm:$0xff]
  %v715 = vld [vmem:[%s2 + $0x8] sm:$0xf]
  %v716 = vld [vmem:[%s2 + $0xc] sm:$0xff]
  %v717 = vld [vmem:[%s2 + $0x14] sm:$0xf]
  %v718 = vld [vmem:[%s2 + $0x18] sm:$0xff]
  %v719 = vld [vmem:[%s2 + $0x20] sm:$0xf]
  %v720 = vld [vmem:[%s2 + $0x24] sm:$0xff]
  %v721 = vld [vmem:[%s2 + $0x2c] sm:$0xf]
  %v722 = vld [vmem:[%s2 + $0x30] sm:$0xff]
  %v723 = vld [vmem:[%s2 + $0x38] sm:$0xf]
  %v724 = vld [vmem:[%s2 + $0x3c] sm:$0xff]
  %v725 = vld [vmem:[%s2 + $0x44] sm:$0xf]
  %v726 = vld [vmem:[%s2 + $0x48] sm:$0xff]
  %v727 = vld [vmem:[%s2 + $0x50] sm:$0xf]
  %v728 = vld [vmem:[%s2 + $0x54] sm:$0xff]
  %v729 = vld [vmem:[%s2 + $0x5c] sm:$0xf]
  %v730 = vld [vmem:[%s2 + $0x60] sm:$0xff]
  %v731 = vld [vmem:[%s2 + $0x68] sm:$0xf]
  %v732 = vld [vmem:[%s2 + $0x6c] sm:$0xff]
  %v733 = vld [vmem:[%s2 + $0x74] sm:$0xf]
  %v734 = vld [vmem:[%s2 + $0x78] sm:$0xff]
  %v735 = vld [vmem:[%s2 + $0x80] sm:$0xf]
  %v736 = vld [vmem:[%s2 + $0x84] sm:$0xff]
  %v737 = vld [vmem:[%s2 + $0x8c] sm:$0xf]
  %v738 = vld [vmem:[%s2 + $0x90] sm:$0xff]
  %v739 = vld [vmem:[%s2 + $0x98] sm:$0xf]
  %v740 = vld [vmem:[%s2 + $0x9c] sm:$0xff]
  %v741 = vld [vmem:[%s2 + $0xa4] sm:$0xf]
  %v742 = vld [vmem:[%s2 + $0xa8] sm:$0xff]
  %v743 = vld [vmem:[%s2 + $0xb0] sm:$0xf]
  %v744 = vld [vmem:[%s2 + $0xb4] sm:$0xff]
  %v745 = vld [vmem:[%s2 + $0xbc] sm:$0xf]
  %v746 = vld [vmem:[%s4] sm:$0x1]
  %v748 = vlaneseq
  %v749 = vshrl.u32 %v748, 7
  %v750 = vsub.s32 0, %v749
  %v751 = vrot.slane %v746, %v750
  %v753 = vld [vmem:[#allocation2] sm:$0xff]
  %v754 = vld [vmem:[#allocation2 + $0x18] sm:$0xff]
  %v755 = vxor.u32 %v753, 2147483648
  %v756 = vxor.u32 %v754, 2147483648
  %v757 = vmul.f32 %v755, 1.442695
  %v758 = vpow.pop %v757
  %v759 = vmul.f32 %v756, 1.442695
  %v760 = vpow.pop %v759
  %v761 = vadd.f32 %v758, 1.0
  %v762 = vadd.f32 %v760, 1.0
  %v763 = vrcp.pop %v761
  %v764 = vmul.f32 1.0, %v763
  %v765 = vrcp.pop %v762
  %v766 = vmul.f32 1.0, %v765
  %v767 = vld [vmem:[#allocation2 + $0x8] sm:$0xff]
  %v768 = vld [vmem:[#allocation2 + $0x20] sm:$0xff]
  %v769 = vxor.u32 %v767, 2147483648
  %v770 = vxor.u32 %v768, 2147483648
  %v771 = vmul.f32 %v769, 1.442695
  %v772 = vpow.pop %v771
  %v773 = vmul.f32 %v770, 1.442695
  %v774 = vpow.pop %v773
  %v775 = vadd.f32 %v772, 1.0
  %v776 = vadd.f32 %v774, 1.0
  %v777 = vrcp.pop %v775
  %v778 = vmul.f32 1.0, %v777
  %v779 = vrcp.pop %v776
  %v780 = vmul.f32 1.0, %v779
  %v781 = vld [vmem:[#allocation2 + $0x10] sm:$0xff]
  %v782 = vld [vmem:[#allocation2 + $0x28] sm:$0xff]
  %v783 = vmul.f32 %v764, %v751
  %v784 = vmul.f32 %v766, %v751
  %v785 = vadd.f32 %v781, %v783
  %v786 = vadd.f32 %v782, %v784
  %v787 = vtanh.pop %v785
  %v788 = vtanh.pop %v786
  %v789 = vsub.f32 1.0, %v778
  %v790 = vsub.f32 1.0, %v780
  %v791 = vmul.f32 %v789, %v787
  %v792 = vmul.f32 %v790, %v788
  %793 = vst [vmem:[#allocation3] sm:$0xff] %v791
  %794 = vst [vmem:[#allocation3 + $0x8] sm:$0xff] %v792
  %v795 = vpack.c.bf16 %v792, %v791
  %v828 = vunpack.c.l.b16 %v714
  %v829 = vunpack.c.h.b16 %v714
  %v830 = vunpack.c.l.b16 %v715
  %v831 = vunpack.c.l.b16 %v716
  %v832 = vunpack.c.h.b16 %v716
  %v833 = vunpack.c.l.b16 %v717
  %v834 = vunpack.c.l.b16 %v718
  %v835 = vunpack.c.h.b16 %v718
  %v836 = vunpack.c.l.b16 %v719
  %v837 = vunpack.c.l.b16 %v720
  %v838 = vunpack.c.h.b16 %v720
  %v839 = vunpack.c.l.b16 %v721
  %v840 = vunpack.c.l.b16 %v722
  %v841 = vunpack.c.h.b16 %v722
  %v842 = vunpack.c.l.b16 %v723
  %v843 = vunpack.c.l.b16 %v724
  %v844 = vunpack.c.h.b16 %v724
  %v845 = vunpack.c.l.b16 %v725
  %v846 = vunpack.c.l.b16 %v726
  %v847 = vunpack.c.h.b16 %v726
  %v848 = vunpack.c.l.b16 %v727
  %v849 = vunpack.c.l.b16 %v728
  %v850 = vunpack.c.h.b16 %v728
  %v851 = vunpack.c.l.b16 %v729
  %v852 = vunpack.c.l.b16 %v730
  %v853 = vunpack.c.h.b16 %v730
  %v854 = vunpack.c.l.b16 %v731
  %v855 = vunpack.c.l.b16 %v732
  %v856 = vunpack.c.h.b16 %v732
  %v857 = vunpack.c.l.b16 %v733
  %v858 = vunpack.c.l.b16 %v734
  %v859 = vunpack.c.h.b16 %v734
  %v860 = vunpack.c.l.b16 %v735
  %v861 = vunpack.c.l.b16 %v736
  %v862 = vunpack.c.h.b16 %v736
  %v863 = vunpack.c.l.b16 %v737
  %v864 = vunpack.c.l.b16 %v738
  %v865 = vunpack.c.h.b16 %v738
  %v866 = vunpack.c.l.b16 %v739
  %v867 = vunpack.c.l.b16 %v740
  %v868 = vunpack.c.h.b16 %v740
  %v869 = vunpack.c.l.b16 %v741
  %v870 = vunpack.c.l.b16 %v742
  %v871 = vunpack.c.h.b16 %v742
  %v872 = vunpack.c.l.b16 %v743
  %v873 = vunpack.c.l.b16 %v744
  %v874 = vunpack.c.h.b16 %v744
  %v875 = vunpack.c.l.b16 %v745
  %v876 = vpack.c.b16 %v831, %v828
  %v877 = vpack.c.b16 %v832, %v829
  %v878 = vpack.c.b16 %v833, %v830
  %v879 = vpack.c.b16 %v837, %v834
  %v880 = vpack.c.b16 %v838, %v835
  %v881 = vpack.c.b16 %v839, %v836
  %v882 = vpack.c.b16 %v843, %v840
  %v883 = vpack.c.b16 %v844, %v841
  %v884 = vpack.c.b16 %v845, %v842
  %v885 = vpack.c.b16 %v849, %v846
  %v886 = vpack.c.b16 %v850, %v847
  %v887 = vpack.c.b16 %v851, %v848
  %v888 = vpack.c.b16 %v855, %v852
  %v889 = vpack.c.b16 %v856, %v853
  %v890 = vpack.c.b16 %v857, %v854
  %v891 = vpack.c.b16 %v861, %v858
  %v892 = vpack.c.b16 %v862, %v859
  %v893 = vpack.c.b16 %v863, %v860
  %v894 = vpack.c.b16 %v867, %v864
  %v895 = vpack.c.b16 %v868, %v865
  %v896 = vpack.c.b16 %v869, %v866
  %v897 = vpack.c.b16 %v873, %v870
  %v898 = vpack.c.b16 %v874, %v871
  %v899 = vpack.c.b16 %v875, %v872
  %924 = vmatprep.subr.bf16.mxu0 %v877
  %925 = vmatpush1.bf16.msra.mxu0 %v876
  %926 = vmatprep.subr.bf16.mxu0 %v880
  %927 = vmatpush1.bf16.msra.mxu0 %v879
  %928 = vmatprep.subr.bf16.mxu0 %v883
  %929 = vmatpush1.bf16.msra.mxu0 %v882
  %930 = vmatprep.subr.bf16.mxu0 %v886
  %931 = vmatpush1.bf16.msra.mxu0 %v885
  %932 = vmatprep.subr.bf16.mxu0 %v889
  %933 = vmatpush1.bf16.msra.mxu0 %v888
  %934 = vmatprep.subr.bf16.mxu0 %v892
  %935 = vmatpush1.bf16.msra.mxu0 %v891
  %936 = vmatprep.subr.bf16.mxu0 %v895
  %937 = vmatpush1.bf16.msra.mxu0 %v894
  %938 = vmatprep.subr.bf16.mxu0 %v898
  %939 = vmatpush1.bf16.msra.mxu0 %v897
  %940 = vmatprep.subr.bf16.mxu0 0
  %941 = vmatpush1.bf16.msra.mxu0 0
  %942 = vmatprep.subr.bf16.mxu0 0
  %943 = vmatpush1.bf16.msra.mxu0 0
  %944 = vmatprep.subr.bf16.mxu0 0
  %945 = vmatpush1.bf16.msra.mxu0 0
  %946 = vmatprep.subr.bf16.mxu0 0
  %947 = vmatpush1.bf16.msra.mxu0 0
  %948 = vmatprep.subr.bf16.mxu0 0
  %949 = vmatpush1.bf16.msra.mxu0 0
  %950 = vmatprep.subr.bf16.mxu0 0
  %951 = vmatpush1.bf16.msra.mxu0 0
  %952 = vmatprep.subr.bf16.mxu0 0
  %953 = vmatpush1.bf16.msra.mxu0 0
  %954 = vmatprep.subr.bf16.mxu0 0
  %955 = vmatpush1.bf16.msra.mxu0 0
  %956 = vmatprep.mubr.bf16.mxu0 0
  %957 = vmatmul.mubr.bf16.gmra.mrb[0].mxu0 %v795
  %v958 = vpop.f32.mrb[0].mxu0
  %v959 = vadd.f32 0.0, %v958
  %v960 = vpop.f32.mrb[0].mxu0
  %v961 = vadd.f32 0.0, %v960
  %v962 = vpop.f32.mrb[0].mxu0
  %v963 = vadd.f32 0.0, %v962
  %v964 = vpop.f32.mrb[0].mxu0
  %v965 = vadd.f32 0.0, %v964
  %966 = vdwg.mxu0
  %967 = vmatprep.subr.bf16.mxu0 0
  %968 = vmatpush1.bf16.msra.mxu0 %v878
  %969 = vmatprep.subr.bf16.mxu0 0
  %970 = vmatpush1.bf16.msra.mxu0 %v881
  %971 = vmatprep.subr.bf16.mxu0 0
  %972 = vmatpush1.bf16.msra.mxu0 %v884
  %973 = vmatprep.subr.bf16.mxu0 0
  %974 = vmatpush1.bf16.msra.mxu0 %v887
  %975 = vmatprep.subr.bf16.mxu0 0
  %976 = vmatpush1.bf16.msra.mxu0 %v890
  %977 = vmatprep.subr.bf16.mxu0 0
  %978 = vmatpush1.bf16.msra.mxu0 %v893
  %979 = vmatprep.subr.bf16.mxu0 0
  %980 = vmatpush1.bf16.msra.mxu0 %v896
  %981 = vmatprep.subr.bf16.mxu0 0
  %982 = vmatpush1.bf16.msra.mxu0 %v899
  %983 = vmatprep.subr.bf16.mxu0 0
  %984 = vmatpush1.bf16.msra.mxu0 0
  %985 = vmatprep.subr.bf16.mxu0 0
  %986 = vmatpush1.bf16.msra.mxu0 0
  %987 = vmatprep.subr.bf16.mxu0 0
  %988 = vmatpush1.bf16.msra.mxu0 0
  %989 = vmatprep.subr.bf16.mxu0 0
  %990 = vmatpush1.bf16.msra.mxu0 0
  %991 = vmatprep.subr.bf16.mxu0 0
  %992 = vmatpush1.bf16.msra.mxu0 0
  %993 = vmatprep.subr.bf16.mxu0 0
  %994 = vmatpush1.bf16.msra.mxu0 0
  %995 = vmatprep.subr.bf16.mxu0 0
  %996 = vmatpush1.bf16.msra.mxu0 0
  %997 = vmatprep.subr.bf16.mxu0 0
  %998 = vmatpush1.bf16.msra.mxu0 0
  %999 = vmatprep.mubr.bf16.mxu0 0
  %1000 = vmatmul.mubr.bf16.gmra.mrb[0].mxu0 %v795
  %v1001 = vpop.f32.mrb[0].mxu0
  %v1002 = vadd.f32 0.0, %v1001
  %v1003 = vpop.f32.mrb[0].mxu0
  %v1004 = vpop.f32.mrb[0].mxu0
  %v1005 = vadd.f32 0.0, %v1004
  %v1006 = vpop.f32.mrb[0].mxu0
  %1007 = vdwg.mxu0
  %v1008 = vld [vmem:[%s600] sm:$0xff]
  %v1009 = vld [vmem:[%s600 + $0x18] sm:$0xff]
  %v1010 = vadd.f32 %v1008, %v959
  %v1011 = vadd.f32 %v1009, %v963
  %v1012 = vxor.u32 %v1010, 2147483648
  %v1013 = vxor.u32 %v1011, 2147483648
  %v1014 = vmul.f32 %v1012, 1.442695
  %v1015 = vpow.pop %v1014
  %v1016 = vmul.f32 %v1013, 1.442695
  %v1017 = vpow.pop %v1016
  %v1018 = vadd.f32 %v1015, 1.0
  %v1019 = vadd.f32 %v1017, 1.0
  %v1020 = vrcp.pop %v1018
  %v1021 = vmul.f32 1.0, %v1020
  %v1022 = vrcp.pop %v1019
  %v1023 = vmul.f32 1.0, %v1022
  %v1024 = vld [vmem:[%s600 + $0x8] sm:$0xff]
  %v1025 = vld [vmem:[%s600 + $0x20] sm:$0xff]
  %v1026 = vadd.f32 %v1024, %v961
  %v1027 = vadd.f32 %v1025, %v965
  %v1028 = vxor.u32 %v1026, 2147483648
  %v1029 = vxor.u32 %v1027, 2147483648
  %v1030 = vmul.f32 %v1028, 1.442695
  %v1031 = vpow.pop %v1030
  %v1032 = vmul.f32 %v1029, 1.442695
  %v1033 = vpow.pop %v1032
  %v1034 = vadd.f32 %v1031, 1.0
  %v1035 = vadd.f32 %v1033, 1.0
  %v1036 = vrcp.pop %v1034
  %v1037 = vmul.f32 1.0, %v1036
  %v1038 = vrcp.pop %v1035
  %v1039 = vmul.f32 1.0, %v1038
  %v1040 = vld [vmem:[%s600 + $0x10] sm:$0xff]
  %v1041 = vld [vmem:[%s600 + $0x28] sm:$0xff]
  %v1042 = vadd.f32 %v1002, %v751
  %v1043 = vadd.f32 %v1005, %v751
  %v1044 = vmul.f32 %v1021, %v1042
  %v1045 = vmul.f32 %v1023, %v1043
  %v1046 = vadd.f32 %v1040, %v1044
  %v1047 = vadd.f32 %v1041, %v1045
  %v1048 = vtanh.pop %v1046
  %v1049 = vtanh.pop %v1047
  %v1050 = vsub.f32 1.0, %v1037
  %v1051 = vsub.f32 1.0, %v1039
  %v1052 = vmul.f32 %v1050, %v1048
  %v1053 = vmul.f32 %v1051, %v1049
  %v1054 = vmul.f32 %v1037, %v791
  %v1055 = vmul.f32 %v1039, %v792
  %v1056 = vadd.f32 %v1052, %v1054
  %v1057 = vadd.f32 %v1053, %v1055
  %s1058 = scalar_lea.vmem [#allocation3], 16
  %1059 = vst [vmem:[%s1058] sm:$0xff] %v1056
  %1060 = vst [vmem:[%s1058 + $0x8] sm:$0xff] %v1057
  %v1061 = vpack.c.bf16 %v1057, %v1056
  %1062 = vmatprep.subr.bf16.mxu0 %v877
  %1063 = vmatpush1.bf16.msra.mxu0 %v876
  %1064 = vmatprep.subr.bf16.mxu0 %v880
  %1065 = vmatpush1.bf16.msra.mxu0 %v879
  %1066 = vmatprep.subr.bf16.mxu0 %v883
  %1067 = vmatpush1.bf16.msra.mxu0 %v882
  %1068 = vmatprep.subr.bf16.mxu0 %v886
  %1069 = vmatpush1.bf16.msra.mxu0 %v885
  %1070 = vmatprep.subr.bf16.mxu0 %v889
  %1071 = vmatpush1.bf16.msra.mxu0 %v888
  %1072 = vmatprep.subr.bf16.mxu0 %v892
  %1073 = vmatpush1.bf16.msra.mxu0 %v891
  %1074 = vmatprep.subr.bf16.mxu0 %v895
  %1075 = vmatpush1.bf16.msra.mxu0 %v894
  %1076 = vmatprep.subr.bf16.mxu0 %v898
  %1077 = vmatpush1.bf16.msra.mxu0 %v897
  %1078 = vmatprep.subr.bf16.mxu0 0
  %1079 = vmatpush1.bf16.msra.mxu0 0
  %1080 = vmatprep.subr.bf16.mxu0 0
  %1081 = vmatpush1.bf16.msra.mxu0 0
  %1082 = vmatprep.subr.bf16.mxu0 0
  %1083 = vmatpush1.bf16.msra.mxu0 0
  %1084 = vmatprep.subr.bf16.mxu0 0
  %1085 = vmatpush1.bf16.msra.mxu0 0
  %1086 = vmatprep.subr.bf16.mxu0 0
  %1087 = vmatpush1.bf16.msra.mxu0 0
  %1088 = vmatprep.subr.bf16.mxu0 0
  %1089 = vmatpush1.bf16.msra.mxu0 0
  %1090 = vmatprep.subr.bf16.mxu0 0
  %1091 = vmatpush1.bf16.msra.mxu0 0
  %1092 = vmatprep.subr.bf16.mxu0 0
  %1093 = vmatpush1.bf16.msra.mxu0 0
  %1094 = vmatprep.mubr.bf16.mxu0 0
  %1095 = vmatmul.mubr.bf16.gmra.mrb[0].mxu0 %v1061
  %v1096 = vpop.f32.mrb[0].mxu0
  %v1097 = vadd.f32 0.0, %v1096
  %v1098 = vpop.f32.mrb[0].mxu0
  %v1099 = vadd.f32 0.0, %v1098
  %v1100 = vpop.f32.mrb[0].mxu0
  %v1101 = vadd.f32 0.0, %v1100
  %v1102 = vpop.f32.mrb[0].mxu0
  %v1103 = vadd.f32 0.0, %v1102
  %1104 = vdwg.mxu0
  %1105 = vmatprep.subr.bf16.mxu0 0
  %1106 = vmatpush1.bf16.msra.mxu0 %v878
  %1107 = vmatprep.subr.bf16.mxu0 0
  %1108 = vmatpush1.bf16.msra.mxu0 %v881
  %1109 = vmatprep.subr.bf16.mxu0 0
  %1110 = vmatpush1.bf16.msra.mxu0 %v884
  %1111 = vmatprep.subr.bf16.mxu0 0
  %1112 = vmatpush1.bf16.msra.mxu0 %v887
  %1113 = vmatprep.subr.bf16.mxu0 0
  %1114 = vmatpush1.bf16.msra.mxu0 %v890
  %1115 = vmatprep.subr.bf16.mxu0 0
  %1116 = vmatpush1.bf16.msra.mxu0 %v893
  %1117 = vmatprep.subr.bf16.mxu0 0
  %1118 = vmatpush1.bf16.msra.mxu0 %v896
  %1119 = vmatprep.subr.bf16.mxu0 0
  %1120 = vmatpush1.bf16.msra.mxu0 %v899
  %1121 = vmatprep.subr.bf16.mxu0 0
  %1122 = vmatpush1.bf16.msra.mxu0 0
  %1123 = vmatprep.subr.bf16.mxu0 0
  %1124 = vmatpush1.bf16.msra.mxu0 0
  %1125 = vmatprep.subr.bf16.mxu0 0
  %1126 = vmatpush1.bf16.msra.mxu0 0
  %1127 = vmatprep.subr.bf16.mxu0 0
  %1128 = vmatpush1.bf16.msra.mxu0 0
  %1129 = vmatprep.subr.bf16.mxu0 0
  %1130 = vmatpush1.bf16.msra.mxu0 0
  %1131 = vmatprep.subr.bf16.mxu0 0
  %1132 = vmatpush1.bf16.msra.mxu0 0
  %1133 = vmatprep.subr.bf16.mxu0 0
  %1134 = vmatpush1.bf16.msra.mxu0 0
  %1135 = vmatprep.subr.bf16.mxu0 0
  %1136 = vmatpush1.bf16.msra.mxu0 0
  %1137 = vmatprep.mubr.bf16.mxu0 0
  %1138 = vmatmul.mubr.bf16.gmra.mrb[0].mxu0 %v1061
  %v1139 = vpop.f32.mrb[0].mxu0
  %v1140 = vadd.f32 0.0, %v1139
  %v1141 = vpop.f32.mrb[0].mxu0
  %v1142 = vpop.f32.mrb[0].mxu0
  %v1143 = vadd.f32 0.0, %v1142
  %v1144 = vpop.f32.mrb[0].mxu0
  %1145 = vdwg.mxu0
  %v1146 = vld [vmem:[%s638] sm:$0xff]
  %v1147 = vld [vmem:[%s638 + $0x18] sm:$0xff]
  %v1148 = vadd.f32 %v1146, %v1097
  %v1149 = vadd.f32 %v1147, %v1101
  %v1150 = vxor.u32 %v1148, 2147483648
  %v1151 = vxor.u32 %v1149, 2147483648
  %v1152 = vmul.f32 %v1150, 1.442695
  %v1153 = vpow.pop %v1152
  %v1154 = vmul.f32 %v1151, 1.442695
  %v1155 = vpow.pop %v1154
  %v1156 = vadd.f32 %v1153, 1.0
  %v1157 = vadd.f32 %v1155, 1.0
  %v1158 = vrcp.pop %v1156
  %v1159 = vmul.f32 1.0, %v1158
  %v1160 = vrcp.pop %v1157
  %v1161 = vmul.f32 1.0, %v1160
  %v1162 = vld [vmem:[%s638 + $0x8] sm:$0xff]
  %v1163 = vld [vmem:[%s638 + $0x20] sm:$0xff]
  %v1164 = vadd.f32 %v1162, %v1099
  %v1165 = vadd.f32 %v1163, %v1103
  %v1166 = vxor.u32 %v1164, 2147483648
  %v1167 = vxor.u32 %v1165, 2147483648
  %v1168 = vmul.f32 %v1166, 1.442695
  %v1169 = vpow.pop %v1168
  %v1170 = vmul.f32 %v1167, 1.442695
  %v1171 = vpow.pop %v1170
  %v1172 = vadd.f32 %v1169, 1.0
  %v1173 = vadd.f32 %v1171, 1.0
  %v1174 = vrcp.pop %v1172
  %v1175 = vmul.f32 1.0, %v1174
  %v1176 = vrcp.pop %v1173
  %v1177 = vmul.f32 1.0, %v1176
  %v1178 = vld [vmem:[%s638 + $0x10] sm:$0xff]
  %v1179 = vld [vmem:[%s638 + $0x28] sm:$0xff]
  %v1180 = vadd.f32 %v1140, %v751
  %v1181 = vadd.f32 %v1143, %v751
  %v1182 = vmul.f32 %v1159, %v1180
  %v1183 = vmul.f32 %v1161, %v1181
  %v1184 = vadd.f32 %v1178, %v1182
  %v1185 = vadd.f32 %v1179, %v1183
  %v1186 = vtanh.pop %v1184
  %v1187 = vtanh.pop %v1185
  %v1188 = vsub.f32 1.0, %v1175
  %v1189 = vsub.f32 1.0, %v1177
  %v1190 = vmul.f32 %v1188, %v1186
  %v1191 = vmul.f32 %v1189, %v1187
  %v1192 = vmul.f32 %v1175, %v1056
  %v1193 = vmul.f32 %v1177, %v1057
  %v1194 = vadd.f32 %v1190, %v1192
  %v1195 = vadd.f32 %v1191, %v1193
  %s1196 = scalar_lea.vmem [#allocation3], 32
  %1197 = vst [vmem:[%s1196] sm:$0xff] %v1194
  %1198 = vst [vmem:[%s1196 + $0x8] sm:$0xff] %v1195
  %v1199 = vpack.c.bf16 %v1195, %v1194
  %1200 = vmatprep.subr.bf16.mxu0 %v877
  %1201 = vmatpush1.bf16.msra.mxu0 %v876
  %1202 = vmatprep.subr.bf16.mxu0 %v880
  %1203 = vmatpush1.bf16.msra.mxu0 %v879
  %1204 = vmatprep.subr.bf16.mxu0 %v883
  %1205 = vmatpush1.bf16.msra.mxu0 %v882
  %1206 = vmatprep.subr.bf16.mxu0 %v886
  %1207 = vmatpush1.bf16.msra.mxu0 %v885
  %1208 = vmatprep.subr.bf16.mxu0 %v889
  %1209 = vmatpush1.bf16.msra.mxu0 %v888
  %1210 = vmatprep.subr.bf16.mxu0 %v892
  %1211 = vmatpush1.bf16.msra.mxu0 %v891
  %1212 = vmatprep.subr.bf16.mxu0 %v895
  %1213 = vmatpush1.bf16.msra.mxu0 %v894
  %1214 = vmatprep.subr.bf16.mxu0 %v898
  %1215 = vmatpush1.bf16.msra.mxu0 %v897
  %1216 = vmatprep.subr.bf16.mxu0 0
  %1217 = vmatpush1.bf16.msra.mxu0 0
  %1218 = vmatprep.subr.bf16.mxu0 0
  %1219 = vmatpush1.bf16.msra.mxu0 0
  %1220 = vmatprep.subr.bf16.mxu0 0
  %1221 = vmatpush1.bf16.msra.mxu0 0
  %1222 = vmatprep.subr.bf16.mxu0 0
  %1223 = vmatpush1.bf16.msra.mxu0 0
  %1224 = vmatprep.subr.bf16.mxu0 0
  %1225 = vmatpush1.bf16.msra.mxu0 0
  %1226 = vmatprep.subr.bf16.mxu0 0
  %1227 = vmatpush1.bf16.msra.mxu0 0
  %1228 = vmatprep.subr.bf16.mxu0 0
  %1229 = vmatpush1.bf16.msra.mxu0 0
  %1230 = vmatprep.subr.bf16.mxu0 0
  %1231 = vmatpush1.bf16.msra.mxu0 0
  %1232 = vmatprep.mubr.bf16.mxu0 0
  %1233 = vmatmul.mubr.bf16.gmra.mrb[0].mxu0 %v1199
  %v1234 = vpop.f32.mrb[0].mxu0
  %v1235 = vadd.f32 0.0, %v1234
  %v1236 = vpop.f32.mrb[0].mxu0
  %v1237 = vadd.f32 0.0, %v1236
  %v1238 = vpop.f32.mrb[0].mxu0
  %v1239 = vadd.f32 0.0, %v1238
  %v1240 = vpop.f32.mrb[0].mxu0
  %v1241 = vadd.f32 0.0, %v1240
  %1242 = vdwg.mxu0
  %1243 = vmatprep.subr.bf16.mxu0 0
  %1244 = vmatpush1.bf16.msra.mxu0 %v878
  %1245 = vmatprep.subr.bf16.mxu0 0
  %1246 = vmatpush1.bf16.msra.mxu0 %v881
  %1247 = vmatprep.subr.bf16.mxu0 0
  %1248 = vmatpush1.bf16.msra.mxu0 %v884
  %1249 = vmatprep.subr.bf16.mxu0 0
  %1250 = vmatpush1.bf16.msra.mxu0 %v887
  %1251 = vmatprep.subr.bf16.mxu0 0
  %1252 = vmatpush1.bf16.msra.mxu0 %v890
  %1253 = vmatprep.subr.bf16.mxu0 0
  %1254 = vmatpush1.bf16.msra.mxu0 %v893
  %1255 = vmatprep.subr.bf16.mxu0 0
  %1256 = vmatpush1.bf16.msra.mxu0 %v896
  %1257 = vmatprep.subr.bf16.mxu0 0
  %1258 = vmatpush1.bf16.msra.mxu0 %v899
  %1259 = vmatprep.subr.bf16.mxu0 0
  %1260 = vmatpush1.bf16.msra.mxu0 0
  %1261 = vmatprep.subr.bf16.mxu0 0
  %1262 = vmatpush1.bf16.msra.mxu0 0
  %1263 = vmatprep.subr.bf16.mxu0 0
  %1264 = vmatpush1.bf16.msra.mxu0 0
  %1265 = vmatprep.subr.bf16.mxu0 0
  %1266 = vmatpush1.bf16.msra.mxu0 0
  %1267 = vmatprep.subr.bf16.mxu0 0
  %1268 = vmatpush1.bf16.msra.mxu0 0
  %1269 = vmatprep.subr.bf16.mxu0 0
  %1270 = vmatpush1.bf16.msra.mxu0 0
  %1271 = vmatprep.subr.bf16.mxu0 0
  %1272 = vmatpush1.bf16.msra.mxu0 0
  %1273 = vmatprep.subr.bf16.mxu0 0
  %1274 = vmatpush1.bf16.msra.mxu0 0
  %1275 = vmatprep.mubr.bf16.mxu0 0
  %1276 = vmatmul.mubr.bf16.gmra.mrb[0].mxu0 %v1199
  %v1277 = vpop.f32.mrb[0].mxu0
  %v1278 = vadd.f32 0.0, %v1277
  %v1279 = vpop.f32.mrb[0].mxu0
  %v1280 = vpop.f32.mrb[0].mxu0
  %v1281 = vadd.f32 0.0, %v1280
  %v1282 = vpop.f32.mrb[0].mxu0
  %1283 = vdwg.mxu0
  %v1284 = vld [vmem:[%s676] sm:$0xff]
  %v1285 = vld [vmem:[%s676 + $0x18] sm:$0xff]
  %v1286 = vadd.f32 %v1284, %v1235
  %v1287 = vadd.f32 %v1285, %v1239
  %v1288 = vxor.u32 %v1286, 2147483648
  %v1289 = vxor.u32 %v1287, 2147483648
  %v1290 = vmul.f32 %v1288, 1.442695
  %v1291 = vpow.pop %v1290
  %v1292 = vmul.f32 %v1289, 1.442695
  %v1293 = vpow.pop %v1292
  %v1294 = vadd.f32 %v1291, 1.0
  %v1295 = vadd.f32 %v1293, 1.0
  %v1296 = vrcp.pop %v1294
  %v1297 = vmul.f32 1.0, %v1296
  %v1298 = vrcp.pop %v1295
  %v1299 = vmul.f32 1.0, %v1298
  %v1300 = vld [vmem:[%s676 + $0x8] sm:$0xff]
  %v1301 = vld [vmem:[%s676 + $0x20] sm:$0xff]
  %v1302 = vadd.f32 %v1300, %v1237
  %v1303 = vadd.f32 %v1301, %v1241
  %v1304 = vxor.u32 %v1302, 2147483648
  %v1305 = vxor.u32 %v1303, 2147483648
  %v1306 = vmul.f32 %v1304, 1.442695
  %v1307 = vpow.pop %v1306
  %v1308 = vmul.f32 %v1305, 1.442695
  %v1309 = vpow.pop %v1308
  %v1310 = vadd.f32 %v1307, 1.0
  %v1311 = vadd.f32 %v1309, 1.0
  %v1312 = vrcp.pop %v1310
  %v1313 = vmul.f32 1.0, %v1312
  %v1314 = vrcp.pop %v1311
  %v1315 = vmul.f32 1.0, %v1314
  %v1316 = vld [vmem:[%s676 + $0x10] sm:$0xff]
  %v1317 = vld [vmem:[%s676 + $0x28] sm:$0xff]
  %v1318 = vadd.f32 %v1278, %v751
  %v1319 = vadd.f32 %v1281, %v751
  %v1320 = vmul.f32 %v1297, %v1318
  %v1321 = vmul.f32 %v1299, %v1319
  %v1322 = vadd.f32 %v1316, %v1320
  %v1323 = vadd.f32 %v1317, %v1321
  %v1324 = vtanh.pop %v1322
  %v1325 = vtanh.pop %v1323
  %v1326 = vsub.f32 1.0, %v1313
  %v1327 = vsub.f32 1.0, %v1315
  %v1328 = vmul.f32 %v1326, %v1324
  %v1329 = vmul.f32 %v1327, %v1325
  %v1330 = vmul.f32 %v1313, %v1194
  %v1331 = vmul.f32 %v1315, %v1195
  %v1332 = vadd.f32 %v1328, %v1330
  %v1333 = vadd.f32 %v1329, %v1331
  %s1334 = scalar_lea.vmem [#allocation3], 48
  %1335 = vst [vmem:[%s1334] sm:$0xff] %v1332
  %1336 = vst [vmem:[%s1334 + $0x8] sm:$0xff] %v1333
  %v1337 = vpack.c.bf16 %v1333, %v1332
  %1338 = vmatprep.subr.bf16.mxu0 %v877
  %1339 = vmatpush1.bf16.msra.mxu0 %v876
  %1340 = vmatprep.subr.bf16.mxu0 %v880
  %1341 = vmatpush1.bf16.msra.mxu0 %v879
  %1342 = vmatprep.subr.bf16.mxu0 %v883
  %1343 = vmatpush1.bf16.msra.mxu0 %v882
  %1344 = vmatprep.subr.bf16.mxu0 %v886
  %1345 = vmatpush1.bf16.msra.mxu0 %v885
  %1346 = vmatprep.subr.bf16.mxu0 %v889
  %1347 = vmatpush1.bf16.msra.mxu0 %v888
  %1348 = vmatprep.subr.bf16.mxu0 %v892
  %1349 = vmatpush1.bf16.msra.mxu0 %v891
  %1350 = vmatprep.subr.bf16.mxu0 %v895
  %1351 = vmatpush1.bf16.msra.mxu0 %v894
  %1352 = vmatprep.subr.bf16.mxu0 %v898
  %1353 = vmatpush1.bf16.msra.mxu0 %v897
  %1354 = vmatprep.subr.bf16.mxu0 0
  %1355 = vmatpush1.bf16.msra.mxu0 0
  %1356 = vmatprep.subr.bf16.mxu0 0
  %1357 = vmatpush1.bf16.msra.mxu0 0
  %1358 = vmatprep.subr.bf16.mxu0 0
  %1359 = vmatpush1.bf16.msra.mxu0 0
  %1360 = vmatprep.subr.bf16.mxu0 0
  %1361 = vmatpush1.bf16.msra.mxu0 0
  %1362 = vmatprep.subr.bf16.mxu0 0
  %1363 = vmatpush1.bf16.msra.mxu0 0
  %1364 = vmatprep.subr.bf16.mxu0 0
  %1365 = vmatpush1.bf16.msra.mxu0 0
  %1366 = vmatprep.subr.bf16.mxu0 0
  %1367 = vmatpush1.bf16.msra.mxu0 0
  %1368 = vmatprep.subr.bf16.mxu0 0
  %1369 = vmatpush1.bf16.msra.mxu0 0
  %1370 = vmatprep.mubr.bf16.mxu0 0
  %1371 = vmatmul.mubr.bf16.gmra.mrb[0].mxu0 %v1337
  %v1372 = vpop.f32.mrb[0].mxu0
  %v1373 = vadd.f32 0.0, %v1372
  %v1374 = vpop.f32.mrb[0].mxu0
  %v1375 = vadd.f32 0.0, %v1374
  %v1376 = vpop.f32.mrb[0].mxu0
  %v1377 = vadd.f32 0.0, %v1376
  %v1378 = vpop.f32.mrb[0].mxu0
  %v1379 = vadd.f32 0.0, %v1378
  %1380 = vdwg.mxu0
  %1381 = vmatprep.subr.bf16.mxu0 0
  %1382 = vmatpush1.bf16.msra.mxu0 %v878
  %1383 = vmatprep.subr.bf16.mxu0 0
  %1384 = vmatpush1.bf16.msra.mxu0 %v881
  %1385 = vmatprep.subr.bf16.mxu0 0
  %1386 = vmatpush1.bf16.msra.mxu0 %v884
  %1387 = vmatprep.subr.bf16.mxu0 0
  %1388 = vmatpush1.bf16.msra.mxu0 %v887
  %1389 = vmatprep.subr.bf16.mxu0 0
  %1390 = vmatpush1.bf16.msra.mxu0 %v890
  %1391 = vmatprep.subr.bf16.mxu0 0
  %1392 = vmatpush1.bf16.msra.mxu0 %v893
  %1393 = vmatprep.subr.bf16.mxu0 0
  %1394 = vmatpush1.bf16.msra.mxu0 %v896
  %1395 = vmatprep.subr.bf16.mxu0 0
  %1396 = vmatpush1.bf16.msra.mxu0 %v899
  %1397 = vmatprep.subr.bf16.mxu0 0
  %1398 = vmatpush1.bf16.msra.mxu0 0
  %1399 = vmatprep.subr.bf16.mxu0 0
  %1400 = vmatpush1.bf16.msra.mxu0 0
  %1401 = vmatprep.subr.bf16.mxu0 0
  %1402 = vmatpush1.bf16.msra.mxu0 0
  %1403 = vmatprep.subr.bf16.mxu0 0
  %1404 = vmatpush1.bf16.msra.mxu0 0
  %1405 = vmatprep.subr.bf16.mxu0 0
  %1406 = vmatpush1.bf16.msra.mxu0 0
  %1407 = vmatprep.subr.bf16.mxu0 0
  %1408 = vmatpush1.bf16.msra.mxu0 0
  %1409 = vmatprep.subr.bf16.mxu0 0
  %1410 = vmatpush1.bf16.msra.mxu0 0
  %1411 = vmatprep.subr.bf16.mxu0 0
  %1412 = vmatpush1.bf16.msra.mxu0 0
  %1413 = vmatprep.mubr.bf16.mxu0 0
  %1414 = vmatmul.mubr.bf16.gmra.mrb[0].mxu0 %v1337
  %v1415 = vpop.f32.mrb[0].mxu0
  %v1416 = vadd.f32 0.0, %v1415
  %v1417 = vpop.f32.mrb[0].mxu0
  %v1418 = vpop.f32.mrb[0].mxu0
  %v1419 = vadd.f32 0.0, %v1418
  %v1420 = vpop.f32.mrb[0].mxu0
  %1421 = vdwg.mxu0
  %v1422 = vld [vmem:[%s683] sm:$0xff]
  %v1423 = vld [vmem:[%s683 + $0x18] sm:$0xff]
  %v1424 = vadd.f32 %v1422, %v1373
  %v1425 = vadd.f32 %v1423, %v1377
  %v1426 = vxor.u32 %v1424, 2147483648
  %v1427 = vxor.u32 %v1425, 2147483648
  %v1428 = vmul.f32 %v1426, 1.442695
  %v1429 = vpow.pop %v1428
  %v1430 = vmul.f32 %v1427, 1.442695
  %v1431 = vpow.pop %v1430
  %v1432 = vadd.f32 %v1429, 1.0
  %v1433 = vadd.f32 %v1431, 1.0
  %v1434 = vrcp.pop %v1432
  %v1435 = vmul.f32 1.0, %v1434
  %v1436 = vrcp.pop %v1433
  %v1437 = vmul.f32 1.0, %v1436
  %v1438 = vld [vmem:[%s683 + $0x8] sm:$0xff]
  %v1439 = vld [vmem:[%s683 + $0x20] sm:$0xff]
  %v1440 = vadd.f32 %v1438, %v1375
  %v1441 = vadd.f32 %v1439, %v1379
  %v1442 = vxor.u32 %v1440, 2147483648
  %v1443 = vxor.u32 %v1441, 2147483648
  %v1444 = vmul.f32 %v1442, 1.442695
  %v1445 = vpow.pop %v1444
  %v1446 = vmul.f32 %v1443, 1.442695
  %v1447 = vpow.pop %v1446
  %v1448 = vadd.f32 %v1445, 1.0
  %v1449 = vadd.f32 %v1447, 1.0
  %v1450 = vrcp.pop %v1448
  %v1451 = vmul.f32 1.0, %v1450
  %v1452 = vrcp.pop %v1449
  %v1453 = vmul.f32 1.0, %v1452
  %v1454 = vld [vmem:[%s683 + $0x10] sm:$0xff]
  %v1455 = vld [vmem:[%s683 + $0x28] sm:$0xff]
  %v1456 = vadd.f32 %v1416, %v751
  %v1457 = vadd.f32 %v1419, %v751
  %v1458 = vmul.f32 %v1435, %v1456
  %v1459 = vmul.f32 %v1437, %v1457
  %v1460 = vadd.f32 %v1454, %v1458
  %v1461 = vadd.f32 %v1455, %v1459
  %v1462 = vtanh.pop %v1460
  %v1463 = vtanh.pop %v1461
  %v1464 = vsub.f32 1.0, %v1451
  %v1465 = vsub.f32 1.0, %v1453
  %v1466 = vmul.f32 %v1464, %v1462
  %v1467 = vmul.f32 %v1465, %v1463
  %v1468 = vmul.f32 %v1451, %v1332
  %v1469 = vmul.f32 %v1453, %v1333
  %v1470 = vadd.f32 %v1466, %v1468
  %v1471 = vadd.f32 %v1467, %v1469
  %s1472 = scalar_lea.vmem [#allocation3], 64
  %1473 = vst [vmem:[%s1472] sm:$0xff] %v1470
  %1474 = vst [vmem:[%s1472 + $0x8] sm:$0xff] %v1471
  %v1475 = vpack.c.bf16 %v1471, %v1470
  %1476 = vmatprep.subr.bf16.mxu0 %v877
  %1477 = vmatpush1.bf16.msra.mxu0 %v876
  %1478 = vmatprep.subr.bf16.mxu0 %v880
  %1479 = vmatpush1.bf16.msra.mxu0 %v879
  %1480 = vmatprep.subr.bf16.mxu0 %v883
  %1481 = vmatpush1.bf16.msra.mxu0 %v882
  %1482 = vmatprep.subr.bf16.mxu0 %v886
  %1483 = vmatpush1.bf16.msra.mxu0 %v885
  %1484 = vmatprep.subr.bf16.mxu0 %v889
  %1485 = vmatpush1.bf16.msra.mxu0 %v888
  %1486 = vmatprep.subr.bf16.mxu0 %v892
  %1487 = vmatpush1.bf16.msra.mxu0 %v891
  %1488 = vmatprep.subr.bf16.mxu0 %v895
  %1489 = vmatpush1.bf16.msra.mxu0 %v894
  %1490 = vmatprep.subr.bf16.mxu0 %v898
  %1491 = vmatpush1.bf16.msra.mxu0 %v897
  %1492 = vmatprep.subr.bf16.mxu0 0
  %1493 = vmatpush1.bf16.msra.mxu0 0
  %1494 = vmatprep.subr.bf16.mxu0 0
  %1495 = vmatpush1.bf16.msra.mxu0 0
  %1496 = vmatprep.subr.bf16.mxu0 0
  %1497 = vmatpush1.bf16.msra.mxu0 0
  %1498 = vmatprep.subr.bf16.mxu0 0
  %1499 = vmatpush1.bf16.msra.mxu0 0
  %1500 = vmatprep.subr.bf16.mxu0 0
  %1501 = vmatpush1.bf16.msra.mxu0 0
  %1502 = vmatprep.subr.bf16.mxu0 0
  %1503 = vmatpush1.bf16.msra.mxu0 0
  %1504 = vmatprep.subr.bf16.mxu0 0
  %1505 = vmatpush1.bf16.msra.mxu0 0
  %1506 = vmatprep.subr.bf16.mxu0 0
  %1507 = vmatpush1.bf16.msra.mxu0 0
  %1508 = vmatprep.mubr.bf16.mxu0 0
  %1509 = vmatmul.mubr.bf16.gmra.mrb[0].mxu0 %v1475
  %v1510 = vpop.f32.mrb[0].mxu0
  %v1511 = vadd.f32 0.0, %v1510
  %v1512 = vpop.f32.mrb[0].mxu0
  %v1513 = vadd.f32 0.0, %v1512
  %v1514 = vpop.f32.mrb[0].mxu0
  %v1515 = vadd.f32 0.0, %v1514
  %v1516 = vpop.f32.mrb[0].mxu0
  %v1517 = vadd.f32 0.0, %v1516
  %1518 = vdwg.mxu0
  %1519 = vmatprep.subr.bf16.mxu0 0
  %1520 = vmatpush1.bf16.msra.mxu0 %v878
  %1521 = vmatprep.subr.bf16.mxu0 0
  %1522 = vmatpush1.bf16.msra.mxu0 %v881
  %1523 = vmatprep.subr.bf16.mxu0 0
  %1524 = vmatpush1.bf16.msra.mxu0 %v884
  %1525 = vmatprep.subr.bf16.mxu0 0
  %1526 = vmatpush1.bf16.msra.mxu0 %v887
  %1527 = vmatprep.subr.bf16.mxu0 0
  %1528 = vmatpush1.bf16.msra.mxu0 %v890
  %1529 = vmatprep.subr.bf16.mxu0 0
  %1530 = vmatpush1.bf16.msra.mxu0 %v893
  %1531 = vmatprep.subr.bf16.mxu0 0
  %1532 = vmatpush1.bf16.msra.mxu0 %v896
  %1533 = vmatprep.subr.bf16.mxu0 0
  %1534 = vmatpush1.bf16.msra.mxu0 %v899
  %1535 = vmatprep.subr.bf16.mxu0 0
  %1536 = vmatpush1.bf16.msra.mxu0 0
  %1537 = vmatprep.subr.bf16.mxu0 0
  %1538 = vmatpush1.bf16.msra.mxu0 0
  %1539 = vmatprep.subr.bf16.mxu0 0
  %1540 = vmatpush1.bf16.msra.mxu0 0
  %1541 = vmatprep.subr.bf16.mxu0 0
  %1542 = vmatpush1.bf16.msra.mxu0 0
  %1543 = vmatprep.subr.bf16.mxu0 0
  %1544 = vmatpush1.bf16.msra.mxu0 0
  %1545 = vmatprep.subr.bf16.mxu0 0
  %1546 = vmatpush1.bf16.msra.mxu0 0
  %1547 = vmatprep.subr.bf16.mxu0 0
  %1548 = vmatpush1.bf16.msra.mxu0 0
  %1549 = vmatprep.subr.bf16.mxu0 0
  %1550 = vmatpush1.bf16.msra.mxu0 0
  %1551 = vmatprep.mubr.bf16.mxu0 0
  %1552 = vmatmul.mubr.bf16.gmra.mrb[0].mxu0 %v1475
  %v1553 = vpop.f32.mrb[0].mxu0
  %v1554 = vadd.f32 0.0, %v1553
  %v1555 = vpop.f32.mrb[0].mxu0
  %v1556 = vpop.f32.mrb[0].mxu0
  %v1557 = vadd.f32 0.0, %v1556
  %v1558 = vpop.f32.mrb[0].mxu0
  %1559 = vdwg.mxu0
  %v1560 = vld [vmem:[%s645] sm:$0xff]
  %v1561 = vld [vmem:[%s645 + $0x18] sm:$0xff]
  %v1562 = vadd.f32 %v1560, %v1511
  %v1563 = vadd.f32 %v1561, %v1515
  %v1564 = vxor.u32 %v1562, 2147483648
  %v1565 = vxor.u32 %v1563, 2147483648
  %v1566 = vmul.f32 %v1564, 1.442695
  %v1567 = vpow.pop %v1566
  %v1568 = vmul.f32 %v1565, 1.442695
  %v1569 = vpow.pop %v1568
  %v1570 = vadd.f32 %v1567, 1.0
  %v1571 = vadd.f32 %v1569, 1.0
  %v1572 = vrcp.pop %v1570
  %v1573 = vmul.f32 1.0, %v1572
  %v1574 = vrcp.pop %v1571
  %v1575 = vmul.f32 1.0, %v1574
  %v1576 = vld [vmem:[%s645 + $0x8] sm:$0xff]
  %v1577 = vld [vmem:[%s645 + $0x20] sm:$0xff]
  %v1578 = vadd.f32 %v1576, %v1513
  %v1579 = vadd.f32 %v1577, %v1517
  %v1580 = vxor.u32 %v1578, 2147483648
  %v1581 = vxor.u32 %v1579, 2147483648
  %v1582 = vmul.f32 %v1580, 1.442695
  %v1583 = vpow.pop %v1582
  %v1584 = vmul.f32 %v1581, 1.442695
  %v1585 = vpow.pop %v1584
  %v1586 = vadd.f32 %v1583, 1.0
  %v1587 = vadd.f32 %v1585, 1.0
  %v1588 = vrcp.pop %v1586
  %v1589 = vmul.f32 1.0, %v1588
  %v1590 = vrcp.pop %v1587
  %v1591 = vmul.f32 1.0, %v1590
  %v1592 = vld [vmem:[%s645 + $0x10] sm:$0xff]
  %v1593 = vld [vmem:[%s645 + $0x28] sm:$0xff]
  %v1594 = vadd.f32 %v1554, %v751
  %v1595 = vadd.f32 %v1557, %v751
  %v1596 = vmul.f32 %v1573, %v1594
  %v1597 = vmul.f32 %v1575, %v1595
  %v1598 = vadd.f32 %v1592, %v1596
  %v1599 = vadd.f32 %v1593, %v1597
  %v1600 = vtanh.pop %v1598
  %v1601 = vtanh.pop %v1599
  %v1602 = vsub.f32 1.0, %v1589
  %v1603 = vsub.f32 1.0, %v1591
  %v1604 = vmul.f32 %v1602, %v1600
  %v1605 = vmul.f32 %v1603, %v1601
  %v1606 = vmul.f32 %v1589, %v1470
  %v1607 = vmul.f32 %v1591, %v1471
  %v1608 = vadd.f32 %v1604, %v1606
  %v1609 = vadd.f32 %v1605, %v1607
  %s1610 = scalar_lea.vmem [#allocation3], 80
  %1611 = vst [vmem:[%s1610] sm:$0xff] %v1608
  %1612 = vst [vmem:[%s1610 + $0x8] sm:$0xff] %v1609
  %v1613 = vpack.c.bf16 %v1609, %v1608
  %1614 = vmatprep.subr.bf16.mxu0 %v877
  %1615 = vmatpush1.bf16.msra.mxu0 %v876
  %1616 = vmatprep.subr.bf16.mxu0 %v880
  %1617 = vmatpush1.bf16.msra.mxu0 %v879
  %1618 = vmatprep.subr.bf16.mxu0 %v883
  %1619 = vmatpush1.bf16.msra.mxu0 %v882
  %1620 = vmatprep.subr.bf16.mxu0 %v886
  %1621 = vmatpush1.bf16.msra.mxu0 %v885
  %1622 = vmatprep.subr.bf16.mxu0 %v889
  %1623 = vmatpush1.bf16.msra.mxu0 %v888
  %1624 = vmatprep.subr.bf16.mxu0 %v892
  %1625 = vmatpush1.bf16.msra.mxu0 %v891
  %1626 = vmatprep.subr.bf16.mxu0 %v895
  %1627 = vmatpush1.bf16.msra.mxu0 %v894
  %1628 = vmatprep.subr.bf16.mxu0 %v898
  %1629 = vmatpush1.bf16.msra.mxu0 %v897
  %1630 = vmatprep.subr.bf16.mxu0 0
  %1631 = vmatpush1.bf16.msra.mxu0 0
  %1632 = vmatprep.subr.bf16.mxu0 0
  %1633 = vmatpush1.bf16.msra.mxu0 0
  %1634 = vmatprep.subr.bf16.mxu0 0
  %1635 = vmatpush1.bf16.msra.mxu0 0
  %1636 = vmatprep.subr.bf16.mxu0 0
  %1637 = vmatpush1.bf16.msra.mxu0 0
  %1638 = vmatprep.subr.bf16.mxu0 0
  %1639 = vmatpush1.bf16.msra.mxu0 0
  %1640 = vmatprep.subr.bf16.mxu0 0
  %1641 = vmatpush1.bf16.msra.mxu0 0
  %1642 = vmatprep.subr.bf16.mxu0 0
  %1643 = vmatpush1.bf16.msra.mxu0 0
  %1644 = vmatprep.subr.bf16.mxu0 0
  %1645 = vmatpush1.bf16.msra.mxu0 0
  %1646 = vmatprep.mubr.bf16.mxu0 0
  %1647 = vmatmul.mubr.bf16.gmra.mrb[0].mxu0 %v1613
  %v1648 = vpop.f32.mrb[0].mxu0
  %v1649 = vadd.f32 0.0, %v1648
  %v1650 = vpop.f32.mrb[0].mxu0
  %v1651 = vadd.f32 0.0, %v1650
  %v1652 = vpop.f32.mrb[0].mxu0
  %v1653 = vadd.f32 0.0, %v1652
  %v1654 = vpop.f32.mrb[0].mxu0
  %v1655 = vadd.f32 0.0, %v1654
  %1656 = vdwg.mxu0
  %1657 = vmatprep.subr.bf16.mxu0 0
  %1658 = vmatpush1.bf16.msra.mxu0 %v878
  %1659 = vmatprep.subr.bf16.mxu0 0
  %1660 = vmatpush1.bf16.msra.mxu0 %v881
  %1661 = vmatprep.subr.bf16.mxu0 0
  %1662 = vmatpush1.bf16.msra.mxu0 %v884
  %1663 = vmatprep.subr.bf16.mxu0 0
  %1664 = vmatpush1.bf16.msra.mxu0 %v887
  %1665 = vmatprep.subr.bf16.mxu0 0
  %1666 = vmatpush1.bf16.msra.mxu0 %v890
  %1667 = vmatprep.subr.bf16.mxu0 0
  %1668 = vmatpush1.bf16.msra.mxu0 %v893
  %1669 = vmatprep.subr.bf16.mxu0 0
  %1670 = vmatpush1.bf16.msra.mxu0 %v896
  %1671 = vmatprep.subr.bf16.mxu0 0
  %1672 = vmatpush1.bf16.msra.mxu0 %v899
  %1673 = vmatprep.subr.bf16.mxu0 0
  %1674 = vmatpush1.bf16.msra.mxu0 0
  %1675 = vmatprep.subr.bf16.mxu0 0
  %1676 = vmatpush1.bf16.msra.mxu0 0
  %1677 = vmatprep.subr.bf16.mxu0 0
  %1678 = vmatpush1.bf16.msra.mxu0 0
  %1679 = vmatprep.subr.bf16.mxu0 0
  %1680 = vmatpush1.bf16.msra.mxu0 0
  %1681 = vmatprep.subr.bf16.mxu0 0
  %1682 = vmatpush1.bf16.msra.mxu0 0
  %1683 = vmatprep.subr.bf16.mxu0 0
  %1684 = vmatpush1.bf16.msra.mxu0 0
  %1685 = vmatprep.subr.bf16.mxu0 0
  %1686 = vmatpush1.bf16.msra.mxu0 0
  %1687 = vmatprep.subr.bf16.mxu0 0
  %1688 = vmatpush1.bf16.msra.mxu0 0
  %1689 = vmatprep.mubr.bf16.mxu0 0
  %1690 = vmatmul.mubr.bf16.gmra.mrb[0].mxu0 %v1613
  %v1691 = vpop.f32.mrb[0].mxu0
  %v1692 = vadd.f32 0.0, %v1691
  %v1693 = vpop.f32.mrb[0].mxu0
  %v1694 = vpop.f32.mrb[0].mxu0
  %v1695 = vadd.f32 0.0, %v1694
  %v1696 = vpop.f32.mrb[0].mxu0
  %1697 = vdwg.mxu0
  %v1698 = vld [vmem:[%s607] sm:$0xff]
  %v1699 = vld [vmem:[%s607 + $0x18] sm:$0xff]
  %v1700 = vadd.f32 %v1698, %v1649
  %v1701 = vadd.f32 %v1699, %v1653
  %v1702 = vxor.u32 %v1700, 2147483648
  %v1703 = vxor.u32 %v1701, 2147483648
  %v1704 = vmul.f32 %v1702, 1.442695
  %v1705 = vpow.pop %v1704
  %v1706 = vmul.f32 %v1703, 1.442695
  %v1707 = vpow.pop %v1706
  %v1708 = vadd.f32 %v1705, 1.0
  %v1709 = vadd.f32 %v1707, 1.0
  %v1710 = vrcp.pop %v1708
  %v1711 = vmul.f32 1.0, %v1710
  %v1712 = vrcp.pop %v1709
  %v1713 = vmul.f32 1.0, %v1712
  %v1714 = vld [vmem:[%s607 + $0x8] sm:$0xff]
  %v1715 = vld [vmem:[%s607 + $0x20] sm:$0xff]
  %v1716 = vadd.f32 %v1714, %v1651
  %v1717 = vadd.f32 %v1715, %v1655
  %v1718 = vxor.u32 %v1716, 2147483648
  %v1719 = vxor.u32 %v1717, 2147483648
  %v1720 = vmul.f32 %v1718, 1.442695
  %v1721 = vpow.pop %v1720
  %v1722 = vmul.f32 %v1719, 1.442695
  %v1723 = vpow.pop %v1722
  %v1724 = vadd.f32 %v1721, 1.0
  %v1725 = vadd.f32 %v1723, 1.0
  %v1726 = vrcp.pop %v1724
  %v1727 = vmul.f32 1.0, %v1726
  %v1728 = vrcp.pop %v1725
  %v1729 = vmul.f32 1.0, %v1728
  %v1730 = vld [vmem:[%s607 + $0x10] sm:$0xff]
  %v1731 = vld [vmem:[%s607 + $0x28] sm:$0xff]
  %v1732 = vadd.f32 %v1692, %v751
  %v1733 = vadd.f32 %v1695, %v751
  %v1734 = vmul.f32 %v1711, %v1732
  %v1735 = vmul.f32 %v1713, %v1733
  %v1736 = vadd.f32 %v1730, %v1734
  %v1737 = vadd.f32 %v1731, %v1735
  %v1738 = vtanh.pop %v1736
  %v1739 = vtanh.pop %v1737
  %v1740 = vsub.f32 1.0, %v1727
  %v1741 = vsub.f32 1.0, %v1729
  %v1742 = vmul.f32 %v1740, %v1738
  %v1743 = vmul.f32 %v1741, %v1739
  %v1744 = vmul.f32 %v1727, %v1608
  %v1745 = vmul.f32 %v1729, %v1609
  %v1746 = vadd.f32 %v1742, %v1744
  %v1747 = vadd.f32 %v1743, %v1745
  %s1748 = scalar_lea.vmem [#allocation3], 96
  %1749 = vst [vmem:[%s1748] sm:$0xff] %v1746
  %1750 = vst [vmem:[%s1748 + $0x8] sm:$0xff] %v1747
  %v1751 = vpack.c.bf16 %v1747, %v1746
  %1752 = vmatprep.subr.bf16.mxu0 %v877
  %1753 = vmatpush1.bf16.msra.mxu0 %v876
  %1754 = vmatprep.subr.bf16.mxu0 %v880
  %1755 = vmatpush1.bf16.msra.mxu0 %v879
  %1756 = vmatprep.subr.bf16.mxu0 %v883
  %1757 = vmatpush1.bf16.msra.mxu0 %v882
  %1758 = vmatprep.subr.bf16.mxu0 %v886
  %1759 = vmatpush1.bf16.msra.mxu0 %v885
  %1760 = vmatprep.subr.bf16.mxu0 %v889
  %1761 = vmatpush1.bf16.msra.mxu0 %v888
  %1762 = vmatprep.subr.bf16.mxu0 %v892
  %1763 = vmatpush1.bf16.msra.mxu0 %v891
  %1764 = vmatprep.subr.bf16.mxu0 %v895
  %1765 = vmatpush1.bf16.msra.mxu0 %v894
  %1766 = vmatprep.subr.bf16.mxu0 %v898
  %1767 = vmatpush1.bf16.msra.mxu0 %v897
  %1768 = vmatprep.subr.bf16.mxu0 0
  %1769 = vmatpush1.bf16.msra.mxu0 0
  %1770 = vmatprep.subr.bf16.mxu0 0
  %1771 = vmatpush1.bf16.msra.mxu0 0
  %1772 = vmatprep.subr.bf16.mxu0 0
  %1773 = vmatpush1.bf16.msra.mxu0 0
  %1774 = vmatprep.subr.bf16.mxu0 0
  %1775 = vmatpush1.bf16.msra.mxu0 0
  %1776 = vmatprep.subr.bf16.mxu0 0
  %1777 = vmatpush1.bf16.msra.mxu0 0
  %1778 = vmatprep.subr.bf16.mxu0 0
  %1779 = vmatpush1.bf16.msra.mxu0 0
  %1780 = vmatprep.subr.bf16.mxu0 0
  %1781 = vmatpush1.bf16.msra.mxu0 0
  %1782 = vmatprep.subr.bf16.mxu0 0
  %1783 = vmatpush1.bf16.msra.mxu0 0
  %1784 = vmatprep.mubr.bf16.mxu0 0
  %1785 = vmatmul.mubr.bf16.gmra.mrb[0].mxu0 %v1751
  %v1786 = vpop.f32.mrb[0].mxu0
  %v1787 = vadd.f32 0.0, %v1786
  %v1788 = vpop.f32.mrb[0].mxu0
  %v1789 = vadd.f32 0.0, %v1788
  %v1790 = vpop.f32.mrb[0].mxu0
  %v1791 = vadd.f32 0.0, %v1790
  %v1792 = vpop.f32.mrb[0].mxu0
  %v1793 = vadd.f32 0.0, %v1792
  %1794 = vdwg.mxu0
  %1795 = vmatprep.subr.bf16.mxu0 0
  %1796 = vmatpush1.bf16.msra.mxu0 %v878
  %1797 = vmatprep.subr.bf16.mxu0 0
  %1798 = vmatpush1.bf16.msra.mxu0 %v881
  %1799 = vmatprep.subr.bf16.mxu0 0
  %1800 = vmatpush1.bf16.msra.mxu0 %v884
  %1801 = vmatprep.subr.bf16.mxu0 0
  %1802 = vmatpush1.bf16.msra.mxu0 %v887
  %1803 = vmatprep.subr.bf16.mxu0 0
  %1804 = vmatpush1.bf16.msra.mxu0 %v890
  %1805 = vmatprep.subr.bf16.mxu0 0
  %1806 = vmatpush1.bf16.msra.mxu0 %v893
  %1807 = vmatprep.subr.bf16.mxu0 0
  %1808 = vmatpush1.bf16.msra.mxu0 %v896
  %1809 = vmatprep.subr.bf16.mxu0 0
  %1810 = vmatpush1.bf16.msra.mxu0 %v899
  %1811 = vmatprep.subr.bf16.mxu0 0
  %1812 = vmatpush1.bf16.msra.mxu0 0
  %1813 = vmatprep.subr.bf16.mxu0 0
  %1814 = vmatpush1.bf16.msra.mxu0 0
  %1815 = vmatprep.subr.bf16.mxu0 0
  %1816 = vmatpush1.bf16.msra.mxu0 0
  %1817 = vmatprep.subr.bf16.mxu0 0
  %1818 = vmatpush1.bf16.msra.mxu0 0
  %1819 = vmatprep.subr.bf16.mxu0 0
  %1820 = vmatpush1.bf16.msra.mxu0 0
  %1821 = vmatprep.subr.bf16.mxu0 0
  %1822 = vmatpush1.bf16.msra.mxu0 0
  %1823 = vmatprep.subr.bf16.mxu0 0
  %1824 = vmatpush1.bf16.msra.mxu0 0
  %1825 = vmatprep.subr.bf16.mxu0 0
  %1826 = vmatpush1.bf16.msra.mxu0 0
  %1827 = vmatprep.mubr.bf16.mxu0 0
  %1828 = vmatmul.mubr.bf16.gmra.mrb[0].mxu0 %v1751
  %v1829 = vpop.f32.mrb[0].mxu0
  %v1830 = vadd.f32 0.0, %v1829
  %v1831 = vpop.f32.mrb[0].mxu0
  %v1832 = vpop.f32.mrb[0].mxu0
  %v1833 = vadd.f32 0.0, %v1832
  %v1834 = vpop.f32.mrb[0].mxu0
  %1835 = vdwg.mxu0
  %v1836 = vld [vmem:[%s569] sm:$0xff]
  %v1837 = vld [vmem:[%s569 + $0x18] sm:$0xff]
  %v1838 = vadd.f32 %v1836, %v1787
  %v1839 = vadd.f32 %v1837, %v1791
  %v1840 = vxor.u32 %v1838, 2147483648
  %v1841 = vxor.u32 %v1839, 2147483648
  %v1842 = vmul.f32 %v1840, 1.442695
  %v1843 = vpow.pop %v1842
  %v1844 = vmul.f32 %v1841, 1.442695
  %v1845 = vpow.pop %v1844
  %v1846 = vadd.f32 %v1843, 1.0
  %v1847 = vadd.f32 %v1845, 1.0
  %v1848 = vrcp.pop %v1846
  %v1849 = vmul.f32 1.0, %v1848
  %v1850 = vrcp.pop %v1847
  %v1851 = vmul.f32 1.0, %v1850
  %v1852 = vld [vmem:[%s569 + $0x8] sm:$0xff]
  %v1853 = vld [vmem:[%s569 + $0x20] sm:$0xff]
  %v1854 = vadd.f32 %v1852, %v1789
  %v1855 = vadd.f32 %v1853, %v1793
  %v1856 = vxor.u32 %v1854, 2147483648
  %v1857 = vxor.u32 %v1855, 2147483648
  %v1858 = vmul.f32 %v1856, 1.442695
  %v1859 = vpow.pop %v1858
  %v1860 = vmul.f32 %v1857, 1.442695
  %v1861 = vpow.pop %v1860
  %v1862 = vadd.f32 %v1859, 1.0
  %v1863 = vadd.f32 %v1861, 1.0
  %v1864 = vrcp.pop %v1862
  %v1865 = vmul.f32 1.0, %v1864
  %v1866 = vrcp.pop %v1863
  %v1867 = vmul.f32 1.0, %v1866
  %v1868 = vld [vmem:[%s569 + $0x10] sm:$0xff]
  %v1869 = vld [vmem:[%s569 + $0x28] sm:$0xff]
  %v1870 = vadd.f32 %v1830, %v751
  %v1871 = vadd.f32 %v1833, %v751
  %v1872 = vmul.f32 %v1849, %v1870
  %v1873 = vmul.f32 %v1851, %v1871
  %v1874 = vadd.f32 %v1868, %v1872
  %v1875 = vadd.f32 %v1869, %v1873
  %v1876 = vtanh.pop %v1874
  %v1877 = vtanh.pop %v1875
  %v1878 = vsub.f32 1.0, %v1865
  %v1879 = vsub.f32 1.0, %v1867
  %v1880 = vmul.f32 %v1878, %v1876
  %v1881 = vmul.f32 %v1879, %v1877
  %v1882 = vmul.f32 %v1865, %v1746
  %v1883 = vmul.f32 %v1867, %v1747
  %v1884 = vadd.f32 %v1880, %v1882
  %v1885 = vadd.f32 %v1881, %v1883
  %s1886 = scalar_lea.vmem [#allocation3], 112
  %1887 = vst [vmem:[%s1886] sm:$0xff] %v1884
  %1888 = vst [vmem:[%s1886 + $0x8] sm:$0xff] %v1885
  %vm1889 = vcmp.lt.s32.totalorder %v521, 64
  %v1890 = vld [vmem:[#allocation3] sm:$0xff]
  %v1891 = vld [vmem:[#allocation3 + $0x8] sm:$0xff]
  %v1892 = vld [vmem:[%s1886] sm:$0xff]
  %v1893 = vld [vmem:[%s1886 + $0x8] sm:$0xff]
  %v1894 = vsel %vm1889, %v1890, %v1892
  %v1895 = vsel %vm1889, %v1891, %v1893
  %1896 = vst [vmem:[%s5] sm:$0xff] %v1894
  %1897 = vst [vmem:[%s5 + $0x8] sm:$0xff] %v1895
  %v1898 = vld [vmem:[%s1058] sm:$0xff]
  %v1899 = vld [vmem:[%s1058 + $0x8] sm:$0xff]
  %v1900 = vld [vmem:[%s1748] sm:$0xff]
  %v1901 = vld [vmem:[%s1748 + $0x8] sm:$0xff]
  %v1902 = vsel %vm1889, %v1898, %v1900
  %v1903 = vsel %vm1889, %v1899, %v1901
  %s1904 = scalar_lea.vmem %s5, 16
  %1905 = vst [vmem:[%s1904] sm:$0xff] %v1902
  %1906 = vst [vmem:[%s1904 + $0x8] sm:$0xff] %v1903
  %v1907 = vld [vmem:[%s1196] sm:$0xff]
  %v1908 = vld [vmem:[%s1196 + $0x8] sm:$0xff]
  %v1909 = vld [vmem:[%s1610] sm:$0xff]
  %v1910 = vld [vmem:[%s1610 + $0x8] sm:$0xff]
  %v1911 = vsel %vm1889, %v1907, %v1909
  %v1912 = vsel %vm1889, %v1908, %v1910
  %s1913 = scalar_lea.vmem %s5, 32
  %1914 = vst [vmem:[%s1913] sm:$0xff] %v1911
  %1915 = vst [vmem:[%s1913 + $0x8] sm:$0xff] %v1912
  %v1916 = vld [vmem:[%s1334] sm:$0xff]
  %v1917 = vld [vmem:[%s1334 + $0x8] sm:$0xff]
  %v1918 = vld [vmem:[%s1472] sm:$0xff]
  %v1919 = vld [vmem:[%s1472 + $0x8] sm:$0xff]
  %v1920 = vsel %vm1889, %v1916, %v1918
  %v1921 = vsel %vm1889, %v1917, %v1919
  %s1922 = scalar_lea.vmem %s5, 48
  %1923 = vst [vmem:[%s1922] sm:$0xff] %v1920
  %1924 = vst [vmem:[%s1922 + $0x8] sm:$0xff] %v1921
  %v1925 = vld [vmem:[%s1472] sm:$0xff]
  %v1926 = vld [vmem:[%s1472 + $0x8] sm:$0xff]
  %v1927 = vld [vmem:[%s1334] sm:$0xff]
  %v1928 = vld [vmem:[%s1334 + $0x8] sm:$0xff]
  %v1929 = vsel %vm1889, %v1925, %v1927
  %v1930 = vsel %vm1889, %v1926, %v1928
  %s1931 = scalar_lea.vmem %s5, 64
  %1932 = vst [vmem:[%s1931] sm:$0xff] %v1929
  %1933 = vst [vmem:[%s1931 + $0x8] sm:$0xff] %v1930
  %v1934 = vld [vmem:[%s1610] sm:$0xff]
  %v1935 = vld [vmem:[%s1610 + $0x8] sm:$0xff]
  %v1936 = vld [vmem:[%s1196] sm:$0xff]
  %v1937 = vld [vmem:[%s1196 + $0x8] sm:$0xff]
  %v1938 = vsel %vm1889, %v1934, %v1936
  %v1939 = vsel %vm1889, %v1935, %v1937
  %s1940 = scalar_lea.vmem %s5, 80
  %1941 = vst [vmem:[%s1940] sm:$0xff] %v1938
  %1942 = vst [vmem:[%s1940 + $0x8] sm:$0xff] %v1939
  %v1943 = vld [vmem:[%s1748] sm:$0xff]
  %v1944 = vld [vmem:[%s1748 + $0x8] sm:$0xff]
  %v1945 = vld [vmem:[%s1058] sm:$0xff]
  %v1946 = vld [vmem:[%s1058 + $0x8] sm:$0xff]
  %v1947 = vsel %vm1889, %v1943, %v1945
  %v1948 = vsel %vm1889, %v1944, %v1946
  %s1949 = scalar_lea.vmem %s5, 96
  %1950 = vst [vmem:[%s1949] sm:$0xff] %v1947
  %1951 = vst [vmem:[%s1949 + $0x8] sm:$0xff] %v1948
  %v1952 = vld [vmem:[%s1886] sm:$0xff]
  %v1953 = vld [vmem:[%s1886 + $0x8] sm:$0xff]
  %v1954 = vld [vmem:[#allocation3] sm:$0xff]
  %v1955 = vld [vmem:[#allocation3 + $0x8] sm:$0xff]
  %v1956 = vsel %vm1889, %v1952, %v1954
  %v1957 = vsel %vm1889, %v1953, %v1955
  %s1958 = scalar_lea.vmem %s5, 112
  %1959 = vst [vmem:[%s1958] sm:$0xff] %v1956
  %1960 = vst [vmem:[%s1958 + $0x8] sm:$0xff] %v1957
  // Predicated region
  $region22: #{action_history_encoder.3} parent=0 // pred_check
    _
  $region23: #{action_history_encoder.3} parent=0 // pred_check_branch
    %1962 = sbr.rel (0) target = $region25
  $region24: #{action_history_encoder.3} parent=0 // pred_region
    _
  $region25: #{action_history_encoder.3} parent=0 // pred_fallthru
    _
  // Predicated region
  $region26: #{action_history_encoder.3} parent=0 // pred_check
    _
  $region27: #{action_history_encoder.3} parent=0 // pred_check_branch
    %1964 = sbr.rel (0) target = $region29
  $region28: #{action_history_encoder.3} parent=0 // pred_region
    _
  $region29: #{action_history_encoder.3} parent=0 // pred_fallthru
    _

// kernel: action_history_encoder.2
$region0: #{action_history_encoder.2}
  #allocation0 [shape = 'u32[]', space=smem, size = 0x4, offset = 0x4, fixed_abs, tag = 'smem constant byte address 0x4 - core index']
  #allocation1 [shape = 'u32[144,128]{1,0:T(1,128)}', space=vmem, size = 0x12000, scoped, tag = 'internal scratch']
  #allocation2 [shape = 'f32[8,16,384]{2,1,0:T(8,128)}', space=vmem, size = 0x30000, scoped, tag = 'scratch operand']
  #allocation3 [shape = 'f32[8,16,128]{2,1,0:T(8,128)}', space=vmem, size = 0x10000, scoped, tag = 'scratch operand']
  %s0 = inlined_call_operand.vmem [shape: bf16[8,16,64], index: 0, kind: input, shape index: {}]
  %s1 = inlined_call_operand.vmem [shape: bf16[64,384], index: 1, kind: input, shape index: {}]
  %s2 = inlined_call_operand.vmem [shape: bf16[128,384], index: 2, kind: input, shape index: {}]
  %s3 = inlined_call_operand.vmem [shape: f32[1,384], index: 3, kind: input, shape index: {}]
  %s4 = inlined_call_operand.vmem [shape: f32[1,128], index: 4, kind: input, shape index: {}]
  %s5 = inlined_call_operand.vmem [shape: bf16[8,16,128], index: 5, kind: output, shape index: {}]
  %s6 = sld [smem:[#allocation0]]
  $region30: #{action_history_encoder.2} parent=0
    _
  %s8 = ssub.s32 1, %s6
  %s9 = scalar_select 0, %s8, %s6
  // Predicated region
  $region2: #{action_history_encoder.2} parent=0 // pred_check
    _
  $region3: #{action_history_encoder.2} parent=0 // pred_check_branch
    %11 = sbr.rel (0) target = $region5
  $region4: #{action_history_encoder.2} parent=0 // pred_region
    _
  $region5: #{action_history_encoder.2} parent=0 // pred_fallthru
    _
  // Predicated region
  $region6: #{action_history_encoder.2} parent=0 // pred_check
    _
  $region7: #{action_history_encoder.2} parent=0 // pred_check_branch
    %13 = sbr.rel (0) target = $region9
  $region8: #{action_history_encoder.2} parent=0 // pred_region
    _
  $region9: #{action_history_encoder.2} parent=0 // pred_fallthru
    _
  // Predicated region
  $region10: #{action_history_encoder.2} parent=0 // pred_check
    _
  $region11: #{action_history_encoder.2} parent=0 // pred_check_branch
    %15 = sbr.rel (0) target = $region13
  $region12: #{action_history_encoder.2} parent=0 // pred_region
    _
  $region13: #{action_history_encoder.2} parent=0 // pred_fallthru
    _
  // Predicated region
  $region14: #{action_history_encoder.2} parent=0 // pred_check
    _
  $region15: #{action_history_encoder.2} parent=0 // pred_check_branch
    %17 = sbr.rel (0) target = $region17
  $region16: #{action_history_encoder.2} parent=0 // pred_region
    _
  $region17: #{action_history_encoder.2} parent=0 // pred_fallthru
    _
  // Predicated region
  $region18: #{action_history_encoder.2} parent=0 // pred_check
    _
  $region19: #{action_history_encoder.2} parent=0 // pred_check_branch
    %19 = sbr.rel (0) target = $region21
  $region20: #{action_history_encoder.2} parent=0 // pred_region
    _
  $region21: #{action_history_encoder.2} parent=0 // pred_fallthru
    _
  %v21 = vld [vmem:[%s0] sm:$0xf]
  %v22 = vld [vmem:[%s0 + $0x4] sm:$0xf]
  %v23 = vld [vmem:[%s0 + $0x8] sm:$0xf]
  %v24 = vld [vmem:[%s0 + $0xc] sm:$0xf]
  %v25 = vld [vmem:[%s0 + $0x10] sm:$0xf]
  %v26 = vld [vmem:[%s0 + $0x14] sm:$0xf]
  %v27 = vld [vmem:[%s0 + $0x18] sm:$0xf]
  %v28 = vld [vmem:[%s0 + $0x1c] sm:$0xf]
  %v29 = vld [vmem:[%s0 + $0x20] sm:$0xf]
  %v30 = vld [vmem:[%s0 + $0x24] sm:$0xf]
  %v31 = vld [vmem:[%s0 + $0x28] sm:$0xf]
  %v32 = vld [vmem:[%s0 + $0x2c] sm:$0xf]
  %v33 = vld [vmem:[%s0 + $0x30] sm:$0xf]
  %v34 = vld [vmem:[%s0 + $0x34] sm:$0xf]
  %v35 = vld [vmem:[%s0 + $0x38] sm:$0xf]
  %v36 = vld [vmem:[%s0 + $0x3c] sm:$0xf]
  %v37 = vld [vmem:[%s1] sm:$0xff]
  %v38 = vld [vmem:[%s1 + $0x8] sm:$0xf]
  %v39 = vld [vmem:[%s1 + $0xc] sm:$0xff]
  %v40 = vld [vmem:[%s1 + $0x14] sm:$0xf]
  %v41 = vld [vmem:[%s1 + $0x18] sm:$0xff]
  %v42 = vld [vmem:[%s1 + $0x20] sm:$0xf]
  %v43 = vld [vmem:[%s1 + $0x24] sm:$0xff]
  %v44 = vld [vmem:[%s1 + $0x2c] sm:$0xf]
  %v45 = vld [vmem:[%s1 + $0x30] sm:$0xff]
  %v46 = vld [vmem:[%s1 + $0x38] sm:$0xf]
  %v47 = vld [vmem:[%s1 + $0x3c] sm:$0xff]
  %v48 = vld [vmem:[%s1 + $0x44] sm:$0xf]
  %v49 = vld [vmem:[%s1 + $0x48] sm:$0xff]
  %v50 = vld [vmem:[%s1 + $0x50] sm:$0xf]
  %v51 = vld [vmem:[%s1 + $0x54] sm:$0xff]
  %v52 = vld [vmem:[%s1 + $0x5c] sm:$0xf]
  %v53 = vld [vmem:[%s3] sm:$0x7]
  %v55 = vlaneseq
  %v56 = vshrl.u32 %v55, 7
  %v57 = vsub.s32 0, %v56
  %v58 = vrot.slane %v53, %v57
  %v59 = vlaneseq
  %v60 = vshrl.u32 %v59, 7
  %v61 = vsub.s32 1, %v60
  %v62 = vrot.slane %v53, %v61
  %v63 = vlaneseq
  %v64 = vshrl.u32 %v63, 7
  %v65 = vsub.s32 2, %v64
  %v66 = vrot.slane %v53, %v65
  %v86 = vunpack.c.l.b16 %v21
  %v87 = vunpack.c.l.b16 %v22
  %v88 = vunpack.c.l.b16 %v23
  %v89 = vunpack.c.l.b16 %v24
  %v90 = vunpack.c.l.b16 %v25
  %v91 = vunpack.c.l.b16 %v26
  %v92 = vunpack.c.l.b16 %v27
  %v93 = vunpack.c.l.b16 %v28
  %v94 = vunpack.c.l.b16 %v29
  %v95 = vunpack.c.l.b16 %v30
  %v96 = vunpack.c.l.b16 %v31
  %v97 = vunpack.c.l.b16 %v32
  %v98 = vunpack.c.l.b16 %v33
  %v99 = vunpack.c.l.b16 %v34
  %v100 = vunpack.c.l.b16 %v35
  %v101 = vunpack.c.l.b16 %v36
  %v102 = vpack.c.b16 %v87, %v86
  %v103 = vpack.c.b16 %v89, %v88
  %v104 = vpack.c.b16 %v91, %v90
  %v105 = vpack.c.b16 %v93, %v92
  %v106 = vpack.c.b16 %v95, %v94
  %v107 = vpack.c.b16 %v97, %v96
  %v108 = vpack.c.b16 %v99, %v98
  %v109 = vpack.c.b16 %v101, %v100
  %v126 = vunpack.c.l.b16 %v37
  %v127 = vunpack.c.h.b16 %v37
  %v128 = vunpack.c.l.b16 %v38
  %v129 = vunpack.c.l.b16 %v39
  %v130 = vunpack.c.h.b16 %v39
  %v131 = vunpack.c.l.b16 %v40
  %v132 = vunpack.c.l.b16 %v41
  %v133 = vunpack.c.h.b16 %v41
  %v134 = vunpack.c.l.b16 %v42
  %v135 = vunpack.c.l.b16 %v43
  %v136 = vunpack.c.h.b16 %v43
  %v137 = vunpack.c.l.b16 %v44
  %v138 = vunpack.c.l.b16 %v45
  %v139 = vunpack.c.h.b16 %v45
  %v140 = vunpack.c.l.b16 %v46
  %v141 = vunpack.c.l.b16 %v47
  %v142 = vunpack.c.h.b16 %v47
  %v143 = vunpack.c.l.b16 %v48
  %v144 = vunpack.c.l.b16 %v49
  %v145 = vunpack.c.h.b16 %v49
  %v146 = vunpack.c.l.b16 %v50
  %v147 = vunpack.c.l.b16 %v51
  %v148 = vunpack.c.h.b16 %v51
  %v149 = vunpack.c.l.b16 %v52
  %v150 = vpack.c.b16 %v129, %v126
  %v151 = vpack.c.b16 %v130, %v127
  %v152 = vpack.c.b16 %v131, %v128
  %v153 = vpack.c.b16 %v135, %v132
  %v154 = vpack.c.b16 %v136, %v133
  %v155 = vpack.c.b16 %v137, %v134
  %v156 = vpack.c.b16 %v141, %v138
  %v157 = vpack.c.b16 %v142, %v139
  %v158 = vpack.c.b16 %v143, %v140
  %v159 = vpack.c.b16 %v147, %v144
  %v160 = vpack.c.b16 %v148, %v145
  %v161 = vpack.c.b16 %v149, %v146
  %vm174 = vcmask 523264
  %v176 = vsel %vm174, %v102, 0
  %v179 = vsel %vm174, %v103, 0
  %v182 = vsel %vm174, %v104, 0
  %v185 = vsel %vm174, %v105, 0
  %v188 = vsel %vm174, %v106, 0
  %v191 = vsel %vm174, %v107, 0
  %v194 = vsel %vm174, %v108, 0
  %v197 = vsel %vm174, %v109, 0
  %199 = vmatprep.subr.bf16.mxu0 %v151
  %200 = vmatpush1.bf16.msra.mxu0 %v150
  %201 = vmatprep.subr.bf16.mxu0 %v154
  %202 = vmatpush1.bf16.msra.mxu0 %v153
  %203 = vmatprep.subr.bf16.mxu0 %v157
  %204 = vmatpush1.bf16.msra.mxu0 %v156
  %205 = vmatprep.subr.bf16.mxu0 %v160
  %206 = vmatpush1.bf16.msra.mxu0 %v159
  %207 = vmatprep.subr.bf16.mxu0 0
  %208 = vmatpush1.bf16.msra.mxu0 0
  %209 = vmatprep.subr.bf16.mxu0 0
  %210 = vmatpush1.bf16.msra.mxu0 0
  %211 = vmatprep.subr.bf16.mxu0 0
  %212 = vmatpush1.bf16.msra.mxu0 0
  %213 = vmatprep.subr.bf16.mxu0 0
  %214 = vmatpush1.bf16.msra.mxu0 0
  %215 = vmatprep.subr.bf16.mxu0 0
  %216 = vmatpush1.bf16.msra.mxu0 0
  %217 = vmatprep.subr.bf16.mxu0 0
  %218 = vmatpush1.bf16.msra.mxu0 0
  %219 = vmatprep.subr.bf16.mxu0 0
  %220 = vmatpush1.bf16.msra.mxu0 0
  %221 = vmatprep.subr.bf16.mxu0 0
  %222 = vmatpush1.bf16.msra.mxu0 0
  %223 = vmatprep.subr.bf16.mxu0 0
  %224 = vmatpush1.bf16.msra.mxu0 0
  %225 = vmatprep.subr.bf16.mxu0 0
  %226 = vmatpush1.bf16.msra.mxu0 0
  %227 = vmatprep.subr.bf16.mxu0 0
  %228 = vmatpush1.bf16.msra.mxu0 0
  %229 = vmatprep.subr.bf16.mxu0 0
  %230 = vmatpush1.bf16.msra.mxu0 0
  %231 = vmatprep.mubr.bf16.mxu0 0
  %232 = vmatmul.mubr.bf16.gmra.mrb[0].mxu0 %v176
  %v233 = vpop.f32.mrb[0].mxu0
  %v234 = vadd.f32 %v58, %v233
  %v235 = vpop.f32.mrb[0].mxu0
  %v236 = vadd.f32 %v62, %v235
  %v237 = vpop.f32.mrb[0].mxu0
  %v238 = vadd.f32 %v58, %v237
  %v239 = vpop.f32.mrb[0].mxu0
  %v240 = vadd.f32 %v62, %v239
  %241 = vmatprep.mubr.bf16.mxu0 0
  %242 = vmatmul.mubr.bf16.gmra.mrb[0].mxu0 %v179
  %v243 = vpop.f32.mrb[0].mxu0
  %v244 = vadd.f32 %v58, %v243
  %v245 = vpop.f32.mrb[0].mxu0
  %v246 = vadd.f32 %v62, %v245
  %v247 = vpop.f32.mrb[0].mxu0
  %v248 = vadd.f32 %v58, %v247
  %v249 = vpop.f32.mrb[0].mxu0
  %v250 = vadd.f32 %v62, %v249
  %251 = vmatprep.mubr.bf16.mxu0 0
  %252 = vmatmul.mubr.bf16.gmra.mrb[0].mxu0 %v182
  %v253 = vpop.f32.mrb[0].mxu0
  %v254 = vadd.f32 %v58, %v253
  %v255 = vpop.f32.mrb[0].mxu0
  %v256 = vadd.f32 %v62, %v255
  %v257 = vpop.f32.mrb[0].mxu0
  %v258 = vadd.f32 %v58, %v257
  %v259 = vpop.f32.mrb[0].mxu0
  %v260 = vadd.f32 %v62, %v259
  %261 = vmatprep.mubr.bf16.mxu0 0
  %262 = vmatmul.mubr.bf16.gmra.mrb[0].mxu0 %v185
  %v263 = vpop.f32.mrb[0].mxu0
  %v264 = vadd.f32 %v58, %v263
  %v265 = vpop.f32.mrb[0].mxu0
  %v266 = vadd.f32 %v62, %v265
  %v267 = vpop.f32.mrb[0].mxu0
  %v268 = vadd.f32 %v58, %v267
  %v269 = vpop.f32.mrb[0].mxu0
  %v270 = vadd.f32 %v62, %v269
  %271 = vmatprep.mubr.bf16.mxu0 0
  %272 = vmatmul.mubr.bf16.gmra.mrb[0].mxu0 %v188
  %v273 = vpop.f32.mrb[0].mxu0
  %v274 = vadd.f32 %v58, %v273
  %v275 = vpop.f32.mrb[0].mxu0
  %v276 = vadd.f32 %v62, %v275
  %v277 = vpop.f32.mrb[0].mxu0
  %v278 = vadd.f32 %v58, %v277
  %v279 = vpop.f32.mrb[0].mxu0
  %v280 = vadd.f32 %v62, %v279
  %281 = vmatprep.mubr.bf16.mxu0 0
  %282 = vmatmul.mubr.bf16.gmra.mrb[0].mxu0 %v191
  %v283 = vpop.f32.mrb[0].mxu0
  %v284 = vadd.f32 %v58, %v283
  %v285 = vpop.f32.mrb[0].mxu0
  %v286 = vadd.f32 %v62, %v285
  %v287 = vpop.f32.mrb[0].mxu0
  %v288 = vadd.f32 %v58, %v287
  %v289 = vpop.f32.mrb[0].mxu0
  %v290 = vadd.f32 %v62, %v289
  %291 = vmatprep.mubr.bf16.mxu0 0
  %292 = vmatmul.mubr.bf16.gmra.mrb[0].mxu0 %v194
  %v293 = vpop.f32.mrb[0].mxu0
  %v294 = vadd.f32 %v58, %v293
  %v295 = vpop.f32.mrb[0].mxu0
  %v296 = vadd.f32 %v62, %v295
  %v297 = vpop.f32.mrb[0].mxu0
  %v298 = vadd.f32 %v58, %v297
  %v299 = vpop.f32.mrb[0].mxu0
  %v300 = vadd.f32 %v62, %v299
  %301 = vmatprep.mubr.bf16.mxu0 0
  %302 = vmatmul.mubr.bf16.gmra.mrb[0].mxu0 %v197
  %v303 = vpop.f32.mrb[0].mxu0
  %v304 = vadd.f32 %v58, %v303
  %v305 = vpop.f32.mrb[0].mxu0
  %v306 = vadd.f32 %v62, %v305
  %v307 = vpop.f32.mrb[0].mxu0
  %v308 = vadd.f32 %v58, %v307
  %v309 = vpop.f32.mrb[0].mxu0
  %v310 = vadd.f32 %v62, %v309
  %311 = vdwg.mxu0
  %312 = vmatprep.subr.bf16.mxu0 0
  %313 = vmatpush1.bf16.msra.mxu0 %v152
  %314 = vmatprep.subr.bf16.mxu0 0
  %315 = vmatpush1.bf16.msra.mxu0 %v155
  %316 = vmatprep.subr.bf16.mxu0 0
  %317 = vmatpush1.bf16.msra.mxu0 %v158
  %318 = vmatprep.subr.bf16.mxu0 0
  %319 = vmatpush1.bf16.msra.mxu0 %v161
  %320 = vmatprep.subr.bf16.mxu0 0
  %321 = vmatpush1.bf16.msra.mxu0 0
  %322 = vmatprep.subr.bf16.mxu0 0
  %323 = vmatpush1.bf16.msra.mxu0 0
  %324 = vmatprep.subr.bf16.mxu0 0
  %325 = vmatpush1.bf16.msra.mxu0 0
  %326 = vmatprep.subr.bf16.mxu0 0
  %327 = vmatpush1.bf16.msra.mxu0 0
  %328 = vmatprep.subr.bf16.mxu0 0
  %329 = vmatpush1.bf16.msra.mxu0 0
  %330 = vmatprep.subr.bf16.mxu0 0
  %331 = vmatpush1.bf16.msra.mxu0 0
  %332 = vmatprep.subr.bf16.mxu0 0
  %333 = vmatpush1.bf16.msra.mxu0 0
  %334 = vmatprep.subr.bf16.mxu0 0
  %335 = vmatpush1.bf16.msra.mxu0 0
  %336 = vmatprep.subr.bf16.mxu0 0
  %337 = vmatpush1.bf16.msra.mxu0 0
  %338 = vmatprep.subr.bf16.mxu0 0
  %339 = vmatpush1.bf16.msra.mxu0 0
  %340 = vmatprep.subr.bf16.mxu0 0
  %341 = vmatpush1.bf16.msra.mxu0 0
  %342 = vmatprep.subr.bf16.mxu0 0
  %343 = vmatpush1.bf16.msra.mxu0 0
  %344 = vmatprep.mubr.bf16.mxu0 0
  %345 = vmatmul.mubr.bf16.gmra.mrb[0].mxu0 %v176
  %v346 = vpop.f32.mrb[0].mxu0
  %v347 = vadd.f32 %v66, %v346
  %v348 = vpop.f32.mrb[0].mxu0
  %v349 = vpop.f32.mrb[0].mxu0
  %v350 = vadd.f32 %v66, %v349
  %v351 = vpop.f32.mrb[0].mxu0
  %352 = vmatprep.mubr.bf16.mxu0 0
  %353 = vmatmul.mubr.bf16.gmra.mrb[0].mxu0 %v179
  %v354 = vpop.f32.mrb[0].mxu0
  %v355 = vadd.f32 %v66, %v354
  %v356 = vpop.f32.mrb[0].mxu0
  %v357 = vpop.f32.mrb[0].mxu0
  %v358 = vadd.f32 %v66, %v357
  %v359 = vpop.f32.mrb[0].mxu0
  %360 = vmatprep.mubr.bf16.mxu0 0
  %361 = vmatmul.mubr.bf16.gmra.mrb[0].mxu0 %v182
  %v362 = vpop.f32.mrb[0].mxu0
  %v363 = vadd.f32 %v66, %v362
  %v364 = vpop.f32.mrb[0].mxu0
  %v365 = vpop.f32.mrb[0].mxu0
  %v366 = vadd.f32 %v66, %v365
  %v367 = vpop.f32.mrb[0].mxu0
  %368 = vmatprep.mubr.bf16.mxu0 0
  %369 = vmatmul.mubr.bf16.gmra.mrb[0].mxu0 %v185
  %v370 = vpop.f32.mrb[0].mxu0
  %v371 = vadd.f32 %v66, %v370
  %v372 = vpop.f32.mrb[0].mxu0
  %v373 = vpop.f32.mrb[0].mxu0
  %v374 = vadd.f32 %v66, %v373
  %v375 = vpop.f32.mrb[0].mxu0
  %376 = vmatprep.mubr.bf16.mxu0 0
  %377 = vmatmul.mubr.bf16.gmra.mrb[0].mxu0 %v188
  %v378 = vpop.f32.mrb[0].mxu0
  %v379 = vadd.f32 %v66, %v378
  %v380 = vpop.f32.mrb[0].mxu0
  %v381 = vpop.f32.mrb[0].mxu0
  %v382 = vadd.f32 %v66, %v381
  %v383 = vpop.f32.mrb[0].mxu0
  %384 = vmatprep.mubr.bf16.mxu0 0
  %385 = vmatmul.mubr.bf16.gmra.mrb[0].mxu0 %v191
  %v386 = vpop.f32.mrb[0].mxu0
  %v387 = vadd.f32 %v66, %v386
  %v388 = vpop.f32.mrb[0].mxu0
  %v389 = vpop.f32.mrb[0].mxu0
  %v390 = vadd.f32 %v66, %v389
  %v391 = vpop.f32.mrb[0].mxu0
  %392 = vmatprep.mubr.bf16.mxu0 0
  %393 = vmatmul.mubr.bf16.gmra.mrb[0].mxu0 %v194
  %v394 = vpop.f32.mrb[0].mxu0
  %v395 = vadd.f32 %v66, %v394
  %v396 = vpop.f32.mrb[0].mxu0
  %v397 = vpop.f32.mrb[0].mxu0
  %v398 = vadd.f32 %v66, %v397
  %v399 = vpop.f32.mrb[0].mxu0
  %400 = vmatprep.mubr.bf16.mxu0 0
  %401 = vmatmul.mubr.bf16.gmra.mrb[0].mxu0 %v197
  %v402 = vpop.f32.mrb[0].mxu0
  %v403 = vadd.f32 %v66, %v402
  %v404 = vpop.f32.mrb[0].mxu0
  %v405 = vpop.f32.mrb[0].mxu0
  %v406 = vadd.f32 %v66, %v405
  %v407 = vpop.f32.mrb[0].mxu0
  %408 = vdwg.mxu0
  %409 = vst [vmem:[#allocation2] sm:$0xff] %v234
  %410 = vst [vmem:[#allocation2 + $0x8] sm:$0xff] %v236
  %411 = vst [vmem:[#allocation2 + $0x10] sm:$0xff] %v347
  %412 = vst [vmem:[#allocation2 + $0x18] sm:$0xff] %v238
  %413 = vst [vmem:[#allocation2 + $0x20] sm:$0xff] %v240
  %414 = vst [vmem:[#allocation2 + $0x28] sm:$0xff] %v350
  %415 = vst [vmem:[#allocation2 + $0x30] sm:$0xff] %v244
  %416 = vst [vmem:[#allocation2 + $0x38] sm:$0xff] %v246
  %417 = vst [vmem:[#allocation2 + $0x40] sm:$0xff] %v355
  %418 = vst [vmem:[#allocation2 + $0x48] sm:$0xff] %v248
  %419 = vst [vmem:[#allocation2 + $0x50] sm:$0xff] %v250
  %420 = vst [vmem:[#allocation2 + $0x58] sm:$0xff] %v358
  %421 = vst [vmem:[#allocation2 + $0x60] sm:$0xff] %v254
  %422 = vst [vmem:[#allocation2 + $0x68] sm:$0xff] %v256
  %423 = vst [vmem:[#allocation2 + $0x70] sm:$0xff] %v363
  %424 = vst [vmem:[#allocation2 + $0x78] sm:$0xff] %v258
  %425 = vst [vmem:[#allocation2 + $0x80] sm:$0xff] %v260
  %426 = vst [vmem:[#allocation2 + $0x88] sm:$0xff] %v366
  %427 = vst [vmem:[#allocation2 + $0x90] sm:$0xff] %v264
  %428 = vst [vmem:[#allocation2 + $0x98] sm:$0xff] %v266
  %429 = vst [vmem:[#allocation2 + $0xa0] sm:$0xff] %v371
  %430 = vst [vmem:[#allocation2 + $0xa8] sm:$0xff] %v268
  %431 = vst [vmem:[#allocation2 + $0xb0] sm:$0xff] %v270
  %432 = vst [vmem:[#allocation2 + $0xb8] sm:$0xff] %v374
  %433 = vst [vmem:[#allocation2 + $0xc0] sm:$0xff] %v274
  %434 = vst [vmem:[#allocation2 + $0xc8] sm:$0xff] %v276
  %435 = vst [vmem:[#allocation2 + $0xd0] sm:$0xff] %v379
  %436 = vst [vmem:[#allocation2 + $0xd8] sm:$0xff] %v278
  %437 = vst [vmem:[#allocation2 + $0xe0] sm:$0xff] %v280
  %438 = vst [vmem:[#allocation2 + $0xe8] sm:$0xff] %v382
  %439 = vst [vmem:[#allocation2 + $0xf0] sm:$0xff] %v284
  %440 = vst [vmem:[#allocation2 + $0xf8] sm:$0xff] %v286
  %441 = vst [vmem:[#allocation2 + $0x100] sm:$0xff] %v387
  %442 = vst [vmem:[#allocation2 + $0x108] sm:$0xff] %v288
  %443 = vst [vmem:[#allocation2 + $0x110] sm:$0xff] %v290
  %444 = vst [vmem:[#allocation2 + $0x118] sm:$0xff] %v390
  %445 = vst [vmem:[#allocation2 + $0x120] sm:$0xff] %v294
  %446 = vst [vmem:[#allocation2 + $0x128] sm:$0xff] %v296
  %447 = vst [vmem:[#allocation2 + $0x130] sm:$0xff] %v395
  %448 = vst [vmem:[#allocation2 + $0x138] sm:$0xff] %v298
  %449 = vst [vmem:[#allocation2 + $0x140] sm:$0xff] %v300
  %450 = vst [vmem:[#allocation2 + $0x148] sm:$0xff] %v398
  %451 = vst [vmem:[#allocation2 + $0x150] sm:$0xff] %v304
  %452 = vst [vmem:[#allocation2 + $0x158] sm:$0xff] %v306
  %453 = vst [vmem:[#allocation2 + $0x160] sm:$0xff] %v403
  %454 = vst [vmem:[#allocation2 + $0x168] sm:$0xff] %v308
  %455 = vst [vmem:[#allocation2 + $0x170] sm:$0xff] %v310
  %456 = vst [vmem:[#allocation2 + $0x178] sm:$0xff] %v406
  %v457 = vlaneseq
  %v458 = vand.u32 %v457, 127
  %v459 = vadd.s32 %v458, 128
  %v460 = vadd.s32 %v458, 256
  %vm461 = vcmp.lt.s32.totalorder %v458, 0
  %v462 = vsub.s32 0, %v458
  %v463 = vsel %vm461, %v462, %v458
  %v464 = vshrl.u32 %v463, 7
  %v465 = vand.u32 %v463, 127
  %v466 = vsub.s32 0, %v465
  %v467 = vsel %vm461, %v466, %v465
  %vm468 = vcmp.lt.s32.totalorder %v459, 0
  %v469 = vsub.s32 0, %v459
  %v470 = vsel %vm468, %v469, %v459
  %v471 = vshrl.u32 %v470, 7
  %v472 = vand.u32 %v470, 127
  %v473 = vsub.s32 0, %v472
  %v474 = vsel %vm468, %v473, %v472
  %vm475 = vcmp.lt.s32.totalorder %v460, 0
  %v476 = vsub.s32 0, %v460
  %v477 = vsel %vm475, %v476, %v460
  %v478 = vshrl.u32 %v477, 7
  %v479 = vand.u32 %v477, 127
  %v480 = vsub.s32 0, %v479
  %v481 = vsel %vm475, %v480, %v479
  %vm482 = vcmp.ne.s32.totalorder %v467, 0
  %vm483 = vcmp.ne.s32.totalorder %v474, 0
  %vm484 = vcmp.ne.s32.totalorder %v481, 0
  %vm485 = vcmp.lt.s32.totalorder %v467, 0
  %vm486 = vcmp.lt.s32.totalorder %v474, 0
  %vm487 = vcmp.lt.s32.totalorder %v481, 0
  %vm488 = vmand %vm485, %vm482
  %vm489 = vmand %vm486, %vm483
  %vm490 = vmand %vm487, %vm484
  %v491 = vadd.s32 %v467, 128
  %v492 = vadd.s32 %v474, 128
  %v493 = vadd.s32 %v481, 128
  %v494 = vsel %vm488, %v491, %v467
  %v495 = vsel %vm489, %v492, %v474
  %v496 = vsel %vm490, %v493, %v481
  %vm497 = vcmp.lt.s32.totalorder %v494, 64
  %vm498 = vcmp.lt.s32.totalorder %v495, 64
  %vm499 = vcmp.lt.s32.totalorder %v496, 64
  %v500 = vld [vmem:[#allocation2] sm:$0xff]
  %v501 = vld [vmem:[#allocation2 + $0x8] sm:$0xff]
  %v502 = vld [vmem:[#allocation2 + $0x10] sm:$0xff]
  %v503 = vld [vmem:[#allocation2 + $0x18] sm:$0xff]
  %v504 = vld [vmem:[#allocation2 + $0x20] sm:$0xff]
  %v505 = vld [vmem:[#allocation2 + $0x28] sm:$0xff]
  %s506 = scalar_lea.vmem [#allocation2], 336
  %v507 = vld [vmem:[%s506] sm:$0xff]
  %v508 = vld [vmem:[%s506 + $0x8] sm:$0xff]
  %v509 = vld [vmem:[%s506 + $0x10] sm:$0xff]
  %v510 = vld [vmem:[%s506 + $0x18] sm:$0xff]
  %v511 = vld [vmem:[%s506 + $0x20] sm:$0xff]
  %v512 = vld [vmem:[%s506 + $0x28] sm:$0xff]
  %v513 = vsel %vm497, %v500, %v507
  %v514 = vsel %vm498, %v501, %v508
  %v515 = vsel %vm499, %v502, %v509
  %v516 = vsel %vm497, %v503, %v510
  %v517 = vsel %vm498, %v504, %v511
  %v518 = vsel %vm499, %v505, %v512
  %519 = vst [vmem:[#allocation2] sm:$0xff] %v513
  %520 = vst [vmem:[#allocation2 + $0x8] sm:$0xff] %v514
  %521 = vst [vmem:[#allocation2 + $0x10] sm:$0xff] %v515
  %522 = vst [vmem:[#allocation2 + $0x18] sm:$0xff] %v516
  %523 = vst [vmem:[#allocation2 + $0x20] sm:$0xff] %v517
  %524 = vst [vmem:[#allocation2 + $0x28] sm:$0xff] %v518
  %v525 = vsel %vm497, %v507, %v500
  %v526 = vsel %vm498, %v508, %v501
  %v527 = vsel %vm499, %v509, %v502
  %v528 = vsel %vm497, %v510, %v503
  %v529 = vsel %vm498, %v511, %v504
  %v530 = vsel %vm499, %v512, %v505
  %531 = vst [vmem:[%s506] sm:$0xff] %v525
  %532 = vst [vmem:[%s506 + $0x8] sm:$0xff] %v526
  %533 = vst [vmem:[%s506 + $0x10] sm:$0xff] %v527
  %534 = vst [vmem:[%s506 + $0x18] sm:$0xff] %v528
  %535 = vst [vmem:[%s506 + $0x20] sm:$0xff] %v529
  %536 = vst [vmem:[%s506 + $0x28] sm:$0xff] %v530
  %s537 = scalar_lea.vmem [#allocation2], 48
  %v538 = vld [vmem:[%s537] sm:$0xff]
  %v539 = vld [vmem:[%s537 + $0x8] sm:$0xff]
  %v540 = vld [vmem:[%s537 + $0x10] sm:$0xff]
  %v541 = vld [vmem:[%s537 + $0x18] sm:$0xff]
  %v542 = vld [vmem:[%s537 + $0x20] sm:$0xff]
  %v543 = vld [vmem:[%s537 + $0x28] sm:$0xff]
  %s544 = scalar_lea.vmem [#allocation2], 288
  %v545 = vld [vmem:[%s544] sm:$0xff]
  %v546 = vld [vmem:[%s544 + $0x8] sm:$0xff]
  %v547 = vld [vmem:[%s544 + $0x10] sm:$0xff]
  %v548 = vld [vmem:[%s544 + $0x18] sm:$0xff]
  %v549 = vld [vmem:[%s544 + $0x20] sm:$0xff]
  %v550 = vld [vmem:[%s544 + $0x28] sm:$0xff]
  %v551 = vsel %vm497, %v538, %v545
  %v552 = vsel %vm498, %v539, %v546
  %v553 = vsel %vm499, %v540, %v547
  %v554 = vsel %vm497, %v541, %v548
  %v555 = vsel %vm498, %v542, %v549
  %v556 = vsel %vm499, %v543, %v550
  %557 = vst [vmem:[%s537] sm:$0xff] %v551
  %558 = vst [vmem:[%s537 + $0x8] sm:$0xff] %v552
  %559 = vst [vmem:[%s537 + $0x10] sm:$0xff] %v553
  %560 = vst [vmem:[%s537 + $0x18] sm:$0xff] %v554
  %561 = vst [vmem:[%s537 + $0x20] sm:$0xff] %v555
  %562 = vst [vmem:[%s537 + $0x28] sm:$0xff] %v556
  %v563 = vsel %vm497, %v545, %v538
  %v564 = vsel %vm498, %v546, %v539
  %v565 = vsel %vm499, %v547, %v540
  %v566 = vsel %vm497, %v548, %v541
  %v567 = vsel %vm498, %v549, %v542
  %v568 = vsel %vm499, %v550, %v543
  %569 = vst [vmem:[%s544] sm:$0xff] %v563
  %570 = vst [vmem:[%s544 + $0x8] sm:$0xff] %v564
  %571 = vst [vmem:[%s544 + $0x10] sm:$0xff] %v565
  %572 = vst [vmem:[%s544 + $0x18] sm:$0xff] %v566
  %573 = vst [vmem:[%s544 + $0x20] sm:$0xff] %v567
  %574 = vst [vmem:[%s544 + $0x28] sm:$0xff] %v568
  %s575 = scalar_lea.vmem [#allocation2], 96
  %v576 = vld [vmem:[%s575] sm:$0xff]
  %v577 = vld [vmem:[%s575 + $0x8] sm:$0xff]
  %v578 = vld [vmem:[%s575 + $0x10] sm:$0xff]
  %v579 = vld [vmem:[%s575 + $0x18] sm:$0xff]
  %v580 = vld [vmem:[%s575 + $0x20] sm:$0xff]
  %v581 = vld [vmem:[%s575 + $0x28] sm:$0xff]
  %s582 = scalar_lea.vmem [#allocation2], 240
  %v583 = vld [vmem:[%s582] sm:$0xff]
  %v584 = vld [vmem:[%s582 + $0x8] sm:$0xff]
  %v585 = vld [vmem:[%s582 + $0x10] sm:$0xff]
  %v586 = vld [vmem:[%s582 + $0x18] sm:$0xff]
  %v587 = vld [vmem:[%s582 + $0x20] sm:$0xff]
  %v588 = vld [vmem:[%s582 + $0x28] sm:$0xff]
  %v589 = vsel %vm497, %v576, %v583
  %v590 = vsel %vm498, %v577, %v584
  %v591 = vsel %vm499, %v578, %v585
  %v592 = vsel %vm497, %v579, %v586
  %v593 = vsel %vm498, %v580, %v587
  %v594 = vsel %vm499, %v581, %v588
  %595 = vst [vmem:[%s575] sm:$0xff] %v589
  %596 = vst [vmem:[%s575 + $0x8] sm:$0xff] %v590
  %597 = vst [vmem:[%s575 + $0x10] sm:$0xff] %v591
  %598 = vst [vmem:[%s575 + $0x18] sm:$0xff] %v592
  %599 = vst [vmem:[%s575 + $0x20] sm:$0xff] %v593
  %600 = vst [vmem:[%s575 + $0x28] sm:$0xff] %v594
  %v601 = vsel %vm497, %v583, %v576
  %v602 = vsel %vm498, %v584, %v577
  %v603 = vsel %vm499, %v585, %v578
  %v604 = vsel %vm497, %v586, %v579
  %v605 = vsel %vm498, %v587, %v580
  %v606 = vsel %vm499, %v588, %v581
  %607 = vst [vmem:[%s582] sm:$0xff] %v601
  %608 = vst [vmem:[%s582 + $0x8] sm:$0xff] %v602
  %609 = vst [vmem:[%s582 + $0x10] sm:$0xff] %v603
  %610 = vst [vmem:[%s582 + $0x18] sm:$0xff] %v604
  %611 = vst [vmem:[%s582 + $0x20] sm:$0xff] %v605
  %612 = vst [vmem:[%s582 + $0x28] sm:$0xff] %v606
  %s613 = scalar_lea.vmem [#allocation2], 144
  %v614 = vld [vmem:[%s613] sm:$0xff]
  %v615 = vld [vmem:[%s613 + $0x8] sm:$0xff]
  %v616 = vld [vmem:[%s613 + $0x10] sm:$0xff]
  %v617 = vld [vmem:[%s613 + $0x18] sm:$0xff]
  %v618 = vld [vmem:[%s613 + $0x20] sm:$0xff]
  %v619 = vld [vmem:[%s613 + $0x28] sm:$0xff]
  %s620 = scalar_lea.vmem [#allocation2], 192
  %v621 = vld [vmem:[%s620] sm:$0xff]
  %v622 = vld [vmem:[%s620 + $0x8] sm:$0xff]
  %v623 = vld [vmem:[%s620 + $0x10] sm:$0xff]
  %v624 = vld [vmem:[%s620 + $0x18] sm:$0xff]
  %v625 = vld [vmem:[%s620 + $0x20] sm:$0xff]
  %v626 = vld [vmem:[%s620 + $0x28] sm:$0xff]
  %v627 = vsel %vm497, %v614, %v621
  %v628 = vsel %vm498, %v615, %v622
  %v629 = vsel %vm499, %v616, %v623
  %v630 = vsel %vm497, %v617, %v624
  %v631 = vsel %vm498, %v618, %v625
  %v632 = vsel %vm499, %v619, %v626
  %633 = vst [vmem:[%s613] sm:$0xff] %v627
  %634 = vst [vmem:[%s613 + $0x8] sm:$0xff] %v628
  %635 = vst [vmem:[%s613 + $0x10] sm:$0xff] %v629
  %636 = vst [vmem:[%s613 + $0x18] sm:$0xff] %v630
  %637 = vst [vmem:[%s613 + $0x20] sm:$0xff] %v631
  %638 = vst [vmem:[%s613 + $0x28] sm:$0xff] %v632
  %v639 = vsel %vm497, %v621, %v614
  %v640 = vsel %vm498, %v622, %v615
  %v641 = vsel %vm499, %v623, %v616
  %v642 = vsel %vm497, %v624, %v617
  %v643 = vsel %vm498, %v625, %v618
  %v644 = vsel %vm499, %v626, %v619
  %645 = vst [vmem:[%s620] sm:$0xff] %v639
  %646 = vst [vmem:[%s620 + $0x8] sm:$0xff] %v640
  %647 = vst [vmem:[%s620 + $0x10] sm:$0xff] %v641
  %648 = vst [vmem:[%s620 + $0x18] sm:$0xff] %v642
  %649 = vst [vmem:[%s620 + $0x20] sm:$0xff] %v643
  %650 = vst [vmem:[%s620 + $0x28] sm:$0xff] %v644
  %v651 = vld [vmem:[%s2] sm:$0xff]
  %v652 = vld [vmem:[%s2 + $0x8] sm:$0xf]
  %v653 = vld [vmem:[%s2 + $0xc] sm:$0xff]
  %v654 = vld [vmem:[%s2 + $0x14] sm:$0xf]
  %v655 = vld [vmem:[%s2 + $0x18] sm:$0xff]
  %v656 = vld [vmem:[%s2 + $0x20] sm:$0xf]
  %v657 = vld [vmem:[%s2 + $0x24] sm:$0xff]
  %v658 = vld [vmem:[%s2 + $0x2c] sm:$0xf]
  %v659 = vld [vmem:[%s2 + $0x30] sm:$0xff]
  %v660 = vld [vmem:[%s2 + $0x38] sm:$0xf]
  %v661 = vld [vmem:[%s2 + $0x3c] sm:$0xff]
  %v662 = vld [vmem:[%s2 + $0x44] sm:$0xf]
  %v663 = vld [vmem:[%s2 + $0x48] sm:$0xff]
  %v664 = vld [vmem:[%s2 + $0x50] sm:$0xf]
  %v665 = vld [vmem:[%s2 + $0x54] sm:$0xff]
  %v666 = vld [vmem:[%s2 + $0x5c] sm:$0xf]
  %v667 = vld [vmem:[%s2 + $0x60] sm:$0xff]
  %v668 = vld [vmem:[%s2 + $0x68] sm:$0xf]
  %v669 = vld [vmem:[%s2 + $0x6c] sm:$0xff]
  %v670 = vld [vmem:[%s2 + $0x74] sm:$0xf]
  %v671 = vld [vmem:[%s2 + $0x78] sm:$0xff]
  %v672 = vld [vmem:[%s2 + $0x80] sm:$0xf]
  %v673 = vld [vmem:[%s2 + $0x84] sm:$0xff]
  %v674 = vld [vmem:[%s2 + $0x8c] sm:$0xf]
  %v675 = vld [vmem:[%s2 + $0x90] sm:$0xff]
  %v676 = vld [vmem:[%s2 + $0x98] sm:$0xf]
  %v677 = vld [vmem:[%s2 + $0x9c] sm:$0xff]
  %v678 = vld [vmem:[%s2 + $0xa4] sm:$0xf]
  %v679 = vld [vmem:[%s2 + $0xa8] sm:$0xff]
  %v680 = vld [vmem:[%s2 + $0xb0] sm:$0xf]
  %v681 = vld [vmem:[%s2 + $0xb4] sm:$0xff]
  %v682 = vld [vmem:[%s2 + $0xbc] sm:$0xf]
  %v683 = vld [vmem:[%s4] sm:$0x1]
  %v685 = vlaneseq
  %v686 = vshrl.u32 %v685, 7
  %v687 = vsub.s32 0, %v686
  %v688 = vrot.slane %v683, %v687
  %v690 = vld [vmem:[#allocation2] sm:$0xff]
  %v691 = vld [vmem:[#allocation2 + $0x18] sm:$0xff]
  %v692 = vxor.u32 %v690, 2147483648
  %v693 = vxor.u32 %v691, 2147483648
  %v694 = vmul.f32 %v692, 1.442695
  %v695 = vpow.pop %v694
  %v696 = vmul.f32 %v693, 1.442695
  %v697 = vpow.pop %v696
  %v698 = vadd.f32 %v695, 1.0
  %v699 = vadd.f32 %v697, 1.0
  %v700 = vrcp.pop %v698
  %v701 = vmul.f32 1.0, %v700
  %v702 = vrcp.pop %v699
  %v703 = vmul.f32 1.0, %v702
  %v704 = vld [vmem:[#allocation2 + $0x8] sm:$0xff]
  %v705 = vld [vmem:[#allocation2 + $0x20] sm:$0xff]
  %v706 = vxor.u32 %v704, 2147483648
  %v707 = vxor.u32 %v705, 2147483648
  %v708 = vmul.f32 %v706, 1.442695
  %v709 = vpow.pop %v708
  %v710 = vmul.f32 %v707, 1.442695
  %v711 = vpow.pop %v710
  %v712 = vadd.f32 %v709, 1.0
  %v713 = vadd.f32 %v711, 1.0
  %v714 = vrcp.pop %v712
  %v715 = vmul.f32 1.0, %v714
  %v716 = vrcp.pop %v713
  %v717 = vmul.f32 1.0, %v716
  %v718 = vld [vmem:[#allocation2 + $0x10] sm:$0xff]
  %v719 = vld [vmem:[#allocation2 + $0x28] sm:$0xff]
  %v720 = vmul.f32 %v701, %v688
  %v721 = vmul.f32 %v703, %v688
  %v722 = vadd.f32 %v718, %v720
  %v723 = vadd.f32 %v719, %v721
  %v724 = vtanh.pop %v722
  %v725 = vtanh.pop %v723
  %v726 = vsub.f32 1.0, %v715
  %v727 = vsub.f32 1.0, %v717
  %v728 = vmul.f32 %v726, %v724
  %v729 = vmul.f32 %v727, %v725
  %730 = vst [vmem:[#allocation3] sm:$0xff] %v728
  %731 = vst [vmem:[#allocation3 + $0x8] sm:$0xff] %v729
  %v732 = vpack.c.bf16 %v729, %v728
  %v765 = vunpack.c.l.b16 %v651
  %v766 = vunpack.c.h.b16 %v651
  %v767 = vunpack.c.l.b16 %v652
  %v768 = vunpack.c.l.b16 %v653
  %v769 = vunpack.c.h.b16 %v653
  %v770 = vunpack.c.l.b16 %v654
  %v771 = vunpack.c.l.b16 %v655
  %v772 = vunpack.c.h.b16 %v655
  %v773 = vunpack.c.l.b16 %v656
  %v774 = vunpack.c.l.b16 %v657
  %v775 = vunpack.c.h.b16 %v657
  %v776 = vunpack.c.l.b16 %v658
  %v777 = vunpack.c.l.b16 %v659
  %v778 = vunpack.c.h.b16 %v659
  %v779 = vunpack.c.l.b16 %v660
  %v780 = vunpack.c.l.b16 %v661
  %v781 = vunpack.c.h.b16 %v661
  %v782 = vunpack.c.l.b16 %v662
  %v783 = vunpack.c.l.b16 %v663
  %v784 = vunpack.c.h.b16 %v663
  %v785 = vunpack.c.l.b16 %v664
  %v786 = vunpack.c.l.b16 %v665
  %v787 = vunpack.c.h.b16 %v665
  %v788 = vunpack.c.l.b16 %v666
  %v789 = vunpack.c.l.b16 %v667
  %v790 = vunpack.c.h.b16 %v667
  %v791 = vunpack.c.l.b16 %v668
  %v792 = vunpack.c.l.b16 %v669
  %v793 = vunpack.c.h.b16 %v669
  %v794 = vunpack.c.l.b16 %v670
  %v795 = vunpack.c.l.b16 %v671
  %v796 = vunpack.c.h.b16 %v671
  %v797 = vunpack.c.l.b16 %v672
  %v798 = vunpack.c.l.b16 %v673
  %v799 = vunpack.c.h.b16 %v673
  %v800 = vunpack.c.l.b16 %v674
  %v801 = vunpack.c.l.b16 %v675
  %v802 = vunpack.c.h.b16 %v675
  %v803 = vunpack.c.l.b16 %v676
  %v804 = vunpack.c.l.b16 %v677
  %v805 = vunpack.c.h.b16 %v677
  %v806 = vunpack.c.l.b16 %v678
  %v807 = vunpack.c.l.b16 %v679
  %v808 = vunpack.c.h.b16 %v679
  %v809 = vunpack.c.l.b16 %v680
  %v810 = vunpack.c.l.b16 %v681
  %v811 = vunpack.c.h.b16 %v681
  %v812 = vunpack.c.l.b16 %v682
  %v813 = vpack.c.b16 %v768, %v765
  %v814 = vpack.c.b16 %v769, %v766
  %v815 = vpack.c.b16 %v770, %v767
  %v816 = vpack.c.b16 %v774, %v771
  %v817 = vpack.c.b16 %v775, %v772
  %v818 = vpack.c.b16 %v776, %v773
  %v819 = vpack.c.b16 %v780, %v777
  %v820 = vpack.c.b16 %v781, %v778
  %v821 = vpack.c.b16 %v782, %v779
  %v822 = vpack.c.b16 %v786, %v783
  %v823 = vpack.c.b16 %v787, %v784
  %v824 = vpack.c.b16 %v788, %v785
  %v825 = vpack.c.b16 %v792, %v789
  %v826 = vpack.c.b16 %v793, %v790
  %v827 = vpack.c.b16 %v794, %v791
  %v828 = vpack.c.b16 %v798, %v795
  %v829 = vpack.c.b16 %v799, %v796
  %v830 = vpack.c.b16 %v800, %v797
  %v831 = vpack.c.b16 %v804, %v801
  %v832 = vpack.c.b16 %v805, %v802
  %v833 = vpack.c.b16 %v806, %v803
  %v834 = vpack.c.b16 %v810, %v807
  %v835 = vpack.c.b16 %v811, %v808
  %v836 = vpack.c.b16 %v812, %v809
  %861 = vmatprep.subr.bf16.mxu0 %v814
  %862 = vmatpush1.bf16.msra.mxu0 %v813
  %863 = vmatprep.subr.bf16.mxu0 %v817
  %864 = vmatpush1.bf16.msra.mxu0 %v816
  %865 = vmatprep.subr.bf16.mxu0 %v820
  %866 = vmatpush1.bf16.msra.mxu0 %v819
  %867 = vmatprep.subr.bf16.mxu0 %v823
  %868 = vmatpush1.bf16.msra.mxu0 %v822
  %869 = vmatprep.subr.bf16.mxu0 %v826
  %870 = vmatpush1.bf16.msra.mxu0 %v825
  %871 = vmatprep.subr.bf16.mxu0 %v829
  %872 = vmatpush1.bf16.msra.mxu0 %v828
  %873 = vmatprep.subr.bf16.mxu0 %v832
  %874 = vmatpush1.bf16.msra.mxu0 %v831
  %875 = vmatprep.subr.bf16.mxu0 %v835
  %876 = vmatpush1.bf16.msra.mxu0 %v834
  %877 = vmatprep.subr.bf16.mxu0 0
  %878 = vmatpush1.bf16.msra.mxu0 0
  %879 = vmatprep.subr.bf16.mxu0 0
  %880 = vmatpush1.bf16.msra.mxu0 0
  %881 = vmatprep.subr.bf16.mxu0 0
  %882 = vmatpush1.bf16.msra.mxu0 0
  %883 = vmatprep.subr.bf16.mxu0 0
  %884 = vmatpush1.bf16.msra.mxu0 0
  %885 = vmatprep.subr.bf16.mxu0 0
  %886 = vmatpush1.bf16.msra.mxu0 0
  %887 = vmatprep.subr.bf16.mxu0 0
  %888 = vmatpush1.bf16.msra.mxu0 0
  %889 = vmatprep.subr.bf16.mxu0 0
  %890 = vmatpush1.bf16.msra.mxu0 0
  %891 = vmatprep.subr.bf16.mxu0 0
  %892 = vmatpush1.bf16.msra.mxu0 0
  %893 = vmatprep.mubr.bf16.mxu0 0
  %894 = vmatmul.mubr.bf16.gmra.mrb[0].mxu0 %v732
  %v895 = vpop.f32.mrb[0].mxu0
  %v896 = vadd.f32 0.0, %v895
  %v897 = vpop.f32.mrb[0].mxu0
  %v898 = vadd.f32 0.0, %v897
  %v899 = vpop.f32.mrb[0].mxu0
  %v900 = vadd.f32 0.0, %v899
  %v901 = vpop.f32.mrb[0].mxu0
  %v902 = vadd.f32 0.0, %v901
  %903 = vdwg.mxu0
  %904 = vmatprep.subr.bf16.mxu0 0
  %905 = vmatpush1.bf16.msra.mxu0 %v815
  %906 = vmatprep.subr.bf16.mxu0 0
  %907 = vmatpush1.bf16.msra.mxu0 %v818
  %908 = vmatprep.subr.bf16.mxu0 0
  %909 = vmatpush1.bf16.msra.mxu0 %v821
  %910 = vmatprep.subr.bf16.mxu0 0
  %911 = vmatpush1.bf16.msra.mxu0 %v824
  %912 = vmatprep.subr.bf16.mxu0 0
  %913 = vmatpush1.bf16.msra.mxu0 %v827
  %914 = vmatprep.subr.bf16.mxu0 0
  %915 = vmatpush1.bf16.msra.mxu0 %v830
  %916 = vmatprep.subr.bf16.mxu0 0
  %917 = vmatpush1.bf16.msra.mxu0 %v833
  %918 = vmatprep.subr.bf16.mxu0 0
  %919 = vmatpush1.bf16.msra.mxu0 %v836
  %920 = vmatprep.subr.bf16.mxu0 0
  %921 = vmatpush1.bf16.msra.mxu0 0
  %922 = vmatprep.subr.bf16.mxu0 0
  %923 = vmatpush1.bf16.msra.mxu0 0
  %924 = vmatprep.subr.bf16.mxu0 0
  %925 = vmatpush1.bf16.msra.mxu0 0
  %926 = vmatprep.subr.bf16.mxu0 0
  %927 = vmatpush1.bf16.msra.mxu0 0
  %928 = vmatprep.subr.bf16.mxu0 0
  %929 = vmatpush1.bf16.msra.mxu0 0
  %930 = vmatprep.subr.bf16.mxu0 0
  %931 = vmatpush1.bf16.msra.mxu0 0
  %932 = vmatprep.subr.bf16.mxu0 0
  %933 = vmatpush1.bf16.msra.mxu0 0
  %934 = vmatprep.subr.bf16.mxu0 0
  %935 = vmatpush1.bf16.msra.mxu0 0
  %936 = vmatprep.mubr.bf16.mxu0 0
  %937 = vmatmul.mubr.bf16.gmra.mrb[0].mxu0 %v732
  %v938 = vpop.f32.mrb[0].mxu0
  %v939 = vadd.f32 0.0, %v938
  %v940 = vpop.f32.mrb[0].mxu0
  %v941 = vpop.f32.mrb[0].mxu0
  %v942 = vadd.f32 0.0, %v941
  %v943 = vpop.f32.mrb[0].mxu0
  %944 = vdwg.mxu0
  %v945 = vld [vmem:[%s537] sm:$0xff]
  %v946 = vld [vmem:[%s537 + $0x18] sm:$0xff]
  %v947 = vadd.f32 %v945, %v896
  %v948 = vadd.f32 %v946, %v900
  %v949 = vxor.u32 %v947, 2147483648
  %v950 = vxor.u32 %v948, 2147483648
  %v951 = vmul.f32 %v949, 1.442695
  %v952 = vpow.pop %v951
  %v953 = vmul.f32 %v950, 1.442695
  %v954 = vpow.pop %v953
  %v955 = vadd.f32 %v952, 1.0
  %v956 = vadd.f32 %v954, 1.0
  %v957 = vrcp.pop %v955
  %v958 = vmul.f32 1.0, %v957
  %v959 = vrcp.pop %v956
  %v960 = vmul.f32 1.0, %v959
  %v961 = vld [vmem:[%s537 + $0x8] sm:$0xff]
  %v962 = vld [vmem:[%s537 + $0x20] sm:$0xff]
  %v963 = vadd.f32 %v961, %v898
  %v964 = vadd.f32 %v962, %v902
  %v965 = vxor.u32 %v963, 2147483648
  %v966 = vxor.u32 %v964, 2147483648
  %v967 = vmul.f32 %v965, 1.442695
  %v968 = vpow.pop %v967
  %v969 = vmul.f32 %v966, 1.442695
  %v970 = vpow.pop %v969
  %v971 = vadd.f32 %v968, 1.0
  %v972 = vadd.f32 %v970, 1.0
  %v973 = vrcp.pop %v971
  %v974 = vmul.f32 1.0, %v973
  %v975 = vrcp.pop %v972
  %v976 = vmul.f32 1.0, %v975
  %v977 = vld [vmem:[%s537 + $0x10] sm:$0xff]
  %v978 = vld [vmem:[%s537 + $0x28] sm:$0xff]
  %v979 = vadd.f32 %v939, %v688
  %v980 = vadd.f32 %v942, %v688
  %v981 = vmul.f32 %v958, %v979
  %v982 = vmul.f32 %v960, %v980
  %v983 = vadd.f32 %v977, %v981
  %v984 = vadd.f32 %v978, %v982
  %v985 = vtanh.pop %v983
  %v986 = vtanh.pop %v984
  %v987 = vsub.f32 1.0, %v974
  %v988 = vsub.f32 1.0, %v976
  %v989 = vmul.f32 %v987, %v985
  %v990 = vmul.f32 %v988, %v986
  %v991 = vmul.f32 %v974, %v728
  %v992 = vmul.f32 %v976, %v729
  %v993 = vadd.f32 %v989, %v991
  %v994 = vadd.f32 %v990, %v992
  %s995 = scalar_lea.vmem [#allocation3], 16
  %996 = vst [vmem:[%s995] sm:$0xff] %v993
  %997 = vst [vmem:[%s995 + $0x8] sm:$0xff] %v994
  %v998 = vpack.c.bf16 %v994, %v993
  %999 = vmatprep.subr.bf16.mxu0 %v814
  %1000 = vmatpush1.bf16.msra.mxu0 %v813
  %1001 = vmatprep.subr.bf16.mxu0 %v817
  %1002 = vmatpush1.bf16.msra.mxu0 %v816
  %1003 = vmatprep.subr.bf16.mxu0 %v820
  %1004 = vmatpush1.bf16.msra.mxu0 %v819
  %1005 = vmatprep.subr.bf16.mxu0 %v823
  %1006 = vmatpush1.bf16.msra.mxu0 %v822
  %1007 = vmatprep.subr.bf16.mxu0 %v826
  %1008 = vmatpush1.bf16.msra.mxu0 %v825
  %1009 = vmatprep.subr.bf16.mxu0 %v829
  %1010 = vmatpush1.bf16.msra.mxu0 %v828
  %1011 = vmatprep.subr.bf16.mxu0 %v832
  %1012 = vmatpush1.bf16.msra.mxu0 %v831
  %1013 = vmatprep.subr.bf16.mxu0 %v835
  %1014 = vmatpush1.bf16.msra.mxu0 %v834
  %1015 = vmatprep.subr.bf16.mxu0 0
  %1016 = vmatpush1.bf16.msra.mxu0 0
  %1017 = vmatprep.subr.bf16.mxu0 0
  %1018 = vmatpush1.bf16.msra.mxu0 0
  %1019 = vmatprep.subr.bf16.mxu0 0
  %1020 = vmatpush1.bf16.msra.mxu0 0
  %1021 = vmatprep.subr.bf16.mxu0 0
  %1022 = vmatpush1.bf16.msra.mxu0 0
  %1023 = vmatprep.subr.bf16.mxu0 0
  %1024 = vmatpush1.bf16.msra.mxu0 0
  %1025 = vmatprep.subr.bf16.mxu0 0
  %1026 = vmatpush1.bf16.msra.mxu0 0
  %1027 = vmatprep.subr.bf16.mxu0 0
  %1028 = vmatpush1.bf16.msra.mxu0 0
  %1029 = vmatprep.subr.bf16.mxu0 0
  %1030 = vmatpush1.bf16.msra.mxu0 0
  %1031 = vmatprep.mubr.bf16.mxu0 0
  %1032 = vmatmul.mubr.bf16.gmra.mrb[0].mxu0 %v998
  %v1033 = vpop.f32.mrb[0].mxu0
  %v1034 = vadd.f32 0.0, %v1033
  %v1035 = vpop.f32.mrb[0].mxu0
  %v1036 = vadd.f32 0.0, %v1035
  %v1037 = vpop.f32.mrb[0].mxu0
  %v1038 = vadd.f32 0.0, %v1037
  %v1039 = vpop.f32.mrb[0].mxu0
  %v1040 = vadd.f32 0.0, %v1039
  %1041 = vdwg.mxu0
  %1042 = vmatprep.subr.bf16.mxu0 0
  %1043 = vmatpush1.bf16.msra.mxu0 %v815
  %1044 = vmatprep.subr.bf16.mxu0 0
  %1045 = vmatpush1.bf16.msra.mxu0 %v818
  %1046 = vmatprep.subr.bf16.mxu0 0
  %1047 = vmatpush1.bf16.msra.mxu0 %v821
  %1048 = vmatprep.subr.bf16.mxu0 0
  %1049 = vmatpush1.bf16.msra.mxu0 %v824
  %1050 = vmatprep.subr.bf16.mxu0 0
  %1051 = vmatpush1.bf16.msra.mxu0 %v827
  %1052 = vmatprep.subr.bf16.mxu0 0
  %1053 = vmatpush1.bf16.msra.mxu0 %v830
  %1054 = vmatprep.subr.bf16.mxu0 0
  %1055 = vmatpush1.bf16.msra.mxu0 %v833
  %1056 = vmatprep.subr.bf16.mxu0 0
  %1057 = vmatpush1.bf16.msra.mxu0 %v836
  %1058 = vmatprep.subr.bf16.mxu0 0
  %1059 = vmatpush1.bf16.msra.mxu0 0
  %1060 = vmatprep.subr.bf16.mxu0 0
  %1061 = vmatpush1.bf16.msra.mxu0 0
  %1062 = vmatprep.subr.bf16.mxu0 0
  %1063 = vmatpush1.bf16.msra.mxu0 0
  %1064 = vmatprep.subr.bf16.mxu0 0
  %1065 = vmatpush1.bf16.msra.mxu0 0
  %1066 = vmatprep.subr.bf16.mxu0 0
  %1067 = vmatpush1.bf16.msra.mxu0 0
  %1068 = vmatprep.subr.bf16.mxu0 0
  %1069 = vmatpush1.bf16.msra.mxu0 0
  %1070 = vmatprep.subr.bf16.mxu0 0
  %1071 = vmatpush1.bf16.msra.mxu0 0
  %1072 = vmatprep.subr.bf16.mxu0 0
  %1073 = vmatpush1.bf16.msra.mxu0 0
  %1074 = vmatprep.mubr.bf16.mxu0 0
  %1075 = vmatmul.mubr.bf16.gmra.mrb[0].mxu0 %v998
  %v1076 = vpop.f32.mrb[0].mxu0
  %v1077 = vadd.f32 0.0, %v1076
  %v1078 = vpop.f32.mrb[0].mxu0
  %v1079 = vpop.f32.mrb[0].mxu0
  %v1080 = vadd.f32 0.0, %v1079
  %v1081 = vpop.f32.mrb[0].mxu0
  %1082 = vdwg.mxu0
  %v1083 = vld [vmem:[%s575] sm:$0xff]
  %v1084 = vld [vmem:[%s575 + $0x18] sm:$0xff]
  %v1085 = vadd.f32 %v1083, %v1034
  %v1086 = vadd.f32 %v1084, %v1038
  %v1087 = vxor.u32 %v1085, 2147483648
  %v1088 = vxor.u32 %v1086, 2147483648
  %v1089 = vmul.f32 %v1087, 1.442695
  %v1090 = vpow.pop %v1089
  %v1091 = vmul.f32 %v1088, 1.442695
  %v1092 = vpow.pop %v1091
  %v1093 = vadd.f32 %v1090, 1.0
  %v1094 = vadd.f32 %v1092, 1.0
  %v1095 = vrcp.pop %v1093
  %v1096 = vmul.f32 1.0, %v1095
  %v1097 = vrcp.pop %v1094
  %v1098 = vmul.f32 1.0, %v1097
  %v1099 = vld [vmem:[%s575 + $0x8] sm:$0xff]
  %v1100 = vld [vmem:[%s575 + $0x20] sm:$0xff]
  %v1101 = vadd.f32 %v1099, %v1036
  %v1102 = vadd.f32 %v1100, %v1040
  %v1103 = vxor.u32 %v1101, 2147483648
  %v1104 = vxor.u32 %v1102, 2147483648
  %v1105 = vmul.f32 %v1103, 1.442695
  %v1106 = vpow.pop %v1105
  %v1107 = vmul.f32 %v1104, 1.442695
  %v1108 = vpow.pop %v1107
  %v1109 = vadd.f32 %v1106, 1.0
  %v1110 = vadd.f32 %v1108, 1.0
  %v1111 = vrcp.pop %v1109
  %v1112 = vmul.f32 1.0, %v1111
  %v1113 = vrcp.pop %v1110
  %v1114 = vmul.f32 1.0, %v1113
  %v1115 = vld [vmem:[%s575 + $0x10] sm:$0xff]
  %v1116 = vld [vmem:[%s575 + $0x28] sm:$0xff]
  %v1117 = vadd.f32 %v1077, %v688
  %v1118 = vadd.f32 %v1080, %v688
  %v1119 = vmul.f32 %v1096, %v1117
  %v1120 = vmul.f32 %v1098, %v1118
  %v1121 = vadd.f32 %v1115, %v1119
  %v1122 = vadd.f32 %v1116, %v1120
  %v1123 = vtanh.pop %v1121
  %v1124 = vtanh.pop %v1122
  %v1125 = vsub.f32 1.0, %v1112
  %v1126 = vsub.f32 1.0, %v1114
  %v1127 = vmul.f32 %v1125, %v1123
  %v1128 = vmul.f32 %v1126, %v1124
  %v1129 = vmul.f32 %v1112, %v993
  %v1130 = vmul.f32 %v1114, %v994
  %v1131 = vadd.f32 %v1127, %v1129
  %v1132 = vadd.f32 %v1128, %v1130
  %s1133 = scalar_lea.vmem [#allocation3], 32
  %1134 = vst [vmem:[%s1133] sm:$0xff] %v1131
  %1135 = vst [vmem:[%s1133 + $0x8] sm:$0xff] %v1132
  %v1136 = vpack.c.bf16 %v1132, %v1131
  %1137 = vmatprep.subr.bf16.mxu0 %v814
  %1138 = vmatpush1.bf16.msra.mxu0 %v813
  %1139 = vmatprep.subr.bf16.mxu0 %v817
  %1140 = vmatpush1.bf16.msra.mxu0 %v816
  %1141 = vmatprep.subr.bf16.mxu0 %v820
  %1142 = vmatpush1.bf16.msra.mxu0 %v819
  %1143 = vmatprep.subr.bf16.mxu0 %v823
  %1144 = vmatpush1.bf16.msra.mxu0 %v822
  %1145 = vmatprep.subr.bf16.mxu0 %v826
  %1146 = vmatpush1.bf16.msra.mxu0 %v825
  %1147 = vmatprep.subr.bf16.mxu0 %v829
  %1148 = vmatpush1.bf16.msra.mxu0 %v828
  %1149 = vmatprep.subr.bf16.mxu0 %v832
  %1150 = vmatpush1.bf16.msra.mxu0 %v831
  %1151 = vmatprep.subr.bf16.mxu0 %v835
  %1152 = vmatpush1.bf16.msra.mxu0 %v834
  %1153 = vmatprep.subr.bf16.mxu0 0
  %1154 = vmatpush1.bf16.msra.mxu0 0
  %1155 = vmatprep.subr.bf16.mxu0 0
  %1156 = vmatpush1.bf16.msra.mxu0 0
  %1157 = vmatprep.subr.bf16.mxu0 0
  %1158 = vmatpush1.bf16.msra.mxu0 0
  %1159 = vmatprep.subr.bf16.mxu0 0
  %1160 = vmatpush1.bf16.msra.mxu0 0
  %1161 = vmatprep.subr.bf16.mxu0 0
  %1162 = vmatpush1.bf16.msra.mxu0 0
  %1163 = vmatprep.subr.bf16.mxu0 0
  %1164 = vmatpush1.bf16.msra.mxu0 0
  %1165 = vmatprep.subr.bf16.mxu0 0
  %1166 = vmatpush1.bf16.msra.mxu0 0
  %1167 = vmatprep.subr.bf16.mxu0 0
  %1168 = vmatpush1.bf16.msra.mxu0 0
  %1169 = vmatprep.mubr.bf16.mxu0 0
  %1170 = vmatmul.mubr.bf16.gmra.mrb[0].mxu0 %v1136
  %v1171 = vpop.f32.mrb[0].mxu0
  %v1172 = vadd.f32 0.0, %v1171
  %v1173 = vpop.f32.mrb[0].mxu0
  %v1174 = vadd.f32 0.0, %v1173
  %v1175 = vpop.f32.mrb[0].mxu0
  %v1176 = vadd.f32 0.0, %v1175
  %v1177 = vpop.f32.mrb[0].mxu0
  %v1178 = vadd.f32 0.0, %v1177
  %1179 = vdwg.mxu0
  %1180 = vmatprep.subr.bf16.mxu0 0
  %1181 = vmatpush1.bf16.msra.mxu0 %v815
  %1182 = vmatprep.subr.bf16.mxu0 0
  %1183 = vmatpush1.bf16.msra.mxu0 %v818
  %1184 = vmatprep.subr.bf16.mxu0 0
  %1185 = vmatpush1.bf16.msra.mxu0 %v821
  %1186 = vmatprep.subr.bf16.mxu0 0
  %1187 = vmatpush1.bf16.msra.mxu0 %v824
  %1188 = vmatprep.subr.bf16.mxu0 0
  %1189 = vmatpush1.bf16.msra.mxu0 %v827
  %1190 = vmatprep.subr.bf16.mxu0 0
  %1191 = vmatpush1.bf16.msra.mxu0 %v830
  %1192 = vmatprep.subr.bf16.mxu0 0
  %1193 = vmatpush1.bf16.msra.mxu0 %v833
  %1194 = vmatprep.subr.bf16.mxu0 0
  %1195 = vmatpush1.bf16.msra.mxu0 %v836
  %1196 = vmatprep.subr.bf16.mxu0 0
  %1197 = vmatpush1.bf16.msra.mxu0 0
  %1198 = vmatprep.subr.bf16.mxu0 0
  %1199 = vmatpush1.bf16.msra.mxu0 0
  %1200 = vmatprep.subr.bf16.mxu0 0
  %1201 = vmatpush1.bf16.msra.mxu0 0
  %1202 = vmatprep.subr.bf16.mxu0 0
  %1203 = vmatpush1.bf16.msra.mxu0 0
  %1204 = vmatprep.subr.bf16.mxu0 0
  %1205 = vmatpush1.bf16.msra.mxu0 0
  %1206 = vmatprep.subr.bf16.mxu0 0
  %1207 = vmatpush1.bf16.msra.mxu0 0
  %1208 = vmatprep.subr.bf16.mxu0 0
  %1209 = vmatpush1.bf16.msra.mxu0 0
  %1210 = vmatprep.subr.bf16.mxu0 0
  %1211 = vmatpush1.bf16.msra.mxu0 0
  %1212 = vmatprep.mubr.bf16.mxu0 0
  %1213 = vmatmul.mubr.bf16.gmra.mrb[0].mxu0 %v1136
  %v1214 = vpop.f32.mrb[0].mxu0
  %v1215 = vadd.f32 0.0, %v1214
  %v1216 = vpop.f32.mrb[0].mxu0
  %v1217 = vpop.f32.mrb[0].mxu0
  %v1218 = vadd.f32 0.0, %v1217
  %v1219 = vpop.f32.mrb[0].mxu0
  %1220 = vdwg.mxu0
  %v1221 = vld [vmem:[%s613] sm:$0xff]
  %v1222 = vld [vmem:[%s613 + $0x18] sm:$0xff]
  %v1223 = vadd.f32 %v1221, %v1172
  %v1224 = vadd.f32 %v1222, %v1176
  %v1225 = vxor.u32 %v1223, 2147483648
  %v1226 = vxor.u32 %v1224, 2147483648
  %v1227 = vmul.f32 %v1225, 1.442695
  %v1228 = vpow.pop %v1227
  %v1229 = vmul.f32 %v1226, 1.442695
  %v1230 = vpow.pop %v1229
  %v1231 = vadd.f32 %v1228, 1.0
  %v1232 = vadd.f32 %v1230, 1.0
  %v1233 = vrcp.pop %v1231
  %v1234 = vmul.f32 1.0, %v1233
  %v1235 = vrcp.pop %v1232
  %v1236 = vmul.f32 1.0, %v1235
  %v1237 = vld [vmem:[%s613 + $0x8] sm:$0xff]
  %v1238 = vld [vmem:[%s613 + $0x20] sm:$0xff]
  %v1239 = vadd.f32 %v1237, %v1174
  %v1240 = vadd.f32 %v1238, %v1178
  %v1241 = vxor.u32 %v1239, 2147483648
  %v1242 = vxor.u32 %v1240, 2147483648
  %v1243 = vmul.f32 %v1241, 1.442695
  %v1244 = vpow.pop %v1243
  %v1245 = vmul.f32 %v1242, 1.442695
  %v1246 = vpow.pop %v1245
  %v1247 = vadd.f32 %v1244, 1.0
  %v1248 = vadd.f32 %v1246, 1.0
  %v1249 = vrcp.pop %v1247
  %v1250 = vmul.f32 1.0, %v1249
  %v1251 = vrcp.pop %v1248
  %v1252 = vmul.f32 1.0, %v1251
  %v1253 = vld [vmem:[%s613 + $0x10] sm:$0xff]
  %v1254 = vld [vmem:[%s613 + $0x28] sm:$0xff]
  %v1255 = vadd.f32 %v1215, %v688
  %v1256 = vadd.f32 %v1218, %v688
  %v1257 = vmul.f32 %v1234, %v1255
  %v1258 = vmul.f32 %v1236, %v1256
  %v1259 = vadd.f32 %v1253, %v1257
  %v1260 = vadd.f32 %v1254, %v1258
  %v1261 = vtanh.pop %v1259
  %v1262 = vtanh.pop %v1260
  %v1263 = vsub.f32 1.0, %v1250
  %v1264 = vsub.f32 1.0, %v1252
  %v1265 = vmul.f32 %v1263, %v1261
  %v1266 = vmul.f32 %v1264, %v1262
  %v1267 = vmul.f32 %v1250, %v1131
  %v1268 = vmul.f32 %v1252, %v1132
  %v1269 = vadd.f32 %v1265, %v1267
  %v1270 = vadd.f32 %v1266, %v1268
  %s1271 = scalar_lea.vmem [#allocation3], 48
  %1272 = vst [vmem:[%s1271] sm:$0xff] %v1269
  %1273 = vst [vmem:[%s1271 + $0x8] sm:$0xff] %v1270
  %v1274 = vpack.c.bf16 %v1270, %v1269
  %1275 = vmatprep.subr.bf16.mxu0 %v814
  %1276 = vmatpush1.bf16.msra.mxu0 %v813
  %1277 = vmatprep.subr.bf16.mxu0 %v817
  %1278 = vmatpush1.bf16.msra.mxu0 %v816
  %1279 = vmatprep.subr.bf16.mxu0 %v820
  %1280 = vmatpush1.bf16.msra.mxu0 %v819
  %1281 = vmatprep.subr.bf16.mxu0 %v823
  %1282 = vmatpush1.bf16.msra.mxu0 %v822
  %1283 = vmatprep.subr.bf16.mxu0 %v826
  %1284 = vmatpush1.bf16.msra.mxu0 %v825
  %1285 = vmatprep.subr.bf16.mxu0 %v829
  %1286 = vmatpush1.bf16.msra.mxu0 %v828
  %1287 = vmatprep.subr.bf16.mxu0 %v832
  %1288 = vmatpush1.bf16.msra.mxu0 %v831
  %1289 = vmatprep.subr.bf16.mxu0 %v835
  %1290 = vmatpush1.bf16.msra.mxu0 %v834
  %1291 = vmatprep.subr.bf16.mxu0 0
  %1292 = vmatpush1.bf16.msra.mxu0 0
  %1293 = vmatprep.subr.bf16.mxu0 0
  %1294 = vmatpush1.bf16.msra.mxu0 0
  %1295 = vmatprep.subr.bf16.mxu0 0
  %1296 = vmatpush1.bf16.msra.mxu0 0
  %1297 = vmatprep.subr.bf16.mxu0 0
  %1298 = vmatpush1.bf16.msra.mxu0 0
  %1299 = vmatprep.subr.bf16.mxu0 0
  %1300 = vmatpush1.bf16.msra.mxu0 0
  %1301 = vmatprep.subr.bf16.mxu0 0
  %1302 = vmatpush1.bf16.msra.mxu0 0
  %1303 = vmatprep.subr.bf16.mxu0 0
  %1304 = vmatpush1.bf16.msra.mxu0 0
  %1305 = vmatprep.subr.bf16.mxu0 0
  %1306 = vmatpush1.bf16.msra.mxu0 0
  %1307 = vmatprep.mubr.bf16.mxu0 0
  %1308 = vmatmul.mubr.bf16.gmra.mrb[0].mxu0 %v1274
  %v1309 = vpop.f32.mrb[0].mxu0
  %v1310 = vadd.f32 0.0, %v1309
  %v1311 = vpop.f32.mrb[0].mxu0
  %v1312 = vadd.f32 0.0, %v1311
  %v1313 = vpop.f32.mrb[0].mxu0
  %v1314 = vadd.f32 0.0, %v1313
  %v1315 = vpop.f32.mrb[0].mxu0
  %v1316 = vadd.f32 0.0, %v1315
  %1317 = vdwg.mxu0
  %1318 = vmatprep.subr.bf16.mxu0 0
  %1319 = vmatpush1.bf16.msra.mxu0 %v815
  %1320 = vmatprep.subr.bf16.mxu0 0
  %1321 = vmatpush1.bf16.msra.mxu0 %v818
  %1322 = vmatprep.subr.bf16.mxu0 0
  %1323 = vmatpush1.bf16.msra.mxu0 %v821
  %1324 = vmatprep.subr.bf16.mxu0 0
  %1325 = vmatpush1.bf16.msra.mxu0 %v824
  %1326 = vmatprep.subr.bf16.mxu0 0
  %1327 = vmatpush1.bf16.msra.mxu0 %v827
  %1328 = vmatprep.subr.bf16.mxu0 0
  %1329 = vmatpush1.bf16.msra.mxu0 %v830
  %1330 = vmatprep.subr.bf16.mxu0 0
  %1331 = vmatpush1.bf16.msra.mxu0 %v833
  %1332 = vmatprep.subr.bf16.mxu0 0
  %1333 = vmatpush1.bf16.msra.mxu0 %v836
  %1334 = vmatprep.subr.bf16.mxu0 0
  %1335 = vmatpush1.bf16.msra.mxu0 0
  %1336 = vmatprep.subr.bf16.mxu0 0
  %1337 = vmatpush1.bf16.msra.mxu0 0
  %1338 = vmatprep.subr.bf16.mxu0 0
  %1339 = vmatpush1.bf16.msra.mxu0 0
  %1340 = vmatprep.subr.bf16.mxu0 0
  %1341 = vmatpush1.bf16.msra.mxu0 0
  %1342 = vmatprep.subr.bf16.mxu0 0
  %1343 = vmatpush1.bf16.msra.mxu0 0
  %1344 = vmatprep.subr.bf16.mxu0 0
  %1345 = vmatpush1.bf16.msra.mxu0 0
  %1346 = vmatprep.subr.bf16.mxu0 0
  %1347 = vmatpush1.bf16.msra.mxu0 0
  %1348 = vmatprep.subr.bf16.mxu0 0
  %1349 = vmatpush1.bf16.msra.mxu0 0
  %1350 = vmatprep.mubr.bf16.mxu0 0
  %1351 = vmatmul.mubr.bf16.gmra.mrb[0].mxu0 %v1274
  %v1352 = vpop.f32.mrb[0].mxu0
  %v1353 = vadd.f32 0.0, %v1352
  %v1354 = vpop.f32.mrb[0].mxu0
  %v1355 = vpop.f32.mrb[0].mxu0
  %v1356 = vadd.f32 0.0, %v1355
  %v1357 = vpop.f32.mrb[0].mxu0
  %1358 = vdwg.mxu0
  %v1359 = vld [vmem:[%s620] sm:$0xff]
  %v1360 = vld [vmem:[%s620 + $0x18] sm:$0xff]
  %v1361 = vadd.f32 %v1359, %v1310
  %v1362 = vadd.f32 %v1360, %v1314
  %v1363 = vxor.u32 %v1361, 2147483648
  %v1364 = vxor.u32 %v1362, 2147483648
  %v1365 = vmul.f32 %v1363, 1.442695
  %v1366 = vpow.pop %v1365
  %v1367 = vmul.f32 %v1364, 1.442695
  %v1368 = vpow.pop %v1367
  %v1369 = vadd.f32 %v1366, 1.0
  %v1370 = vadd.f32 %v1368, 1.0
  %v1371 = vrcp.pop %v1369
  %v1372 = vmul.f32 1.0, %v1371
  %v1373 = vrcp.pop %v1370
  %v1374 = vmul.f32 1.0, %v1373
  %v1375 = vld [vmem:[%s620 + $0x8] sm:$0xff]
  %v1376 = vld [vmem:[%s620 + $0x20] sm:$0xff]
  %v1377 = vadd.f32 %v1375, %v1312
  %v1378 = vadd.f32 %v1376, %v1316
  %v1379 = vxor.u32 %v1377, 2147483648
  %v1380 = vxor.u32 %v1378, 2147483648
  %v1381 = vmul.f32 %v1379, 1.442695
  %v1382 = vpow.pop %v1381
  %v1383 = vmul.f32 %v1380, 1.442695
  %v1384 = vpow.pop %v1383
  %v1385 = vadd.f32 %v1382, 1.0
  %v1386 = vadd.f32 %v1384, 1.0
  %v1387 = vrcp.pop %v1385
  %v1388 = vmul.f32 1.0, %v1387
  %v1389 = vrcp.pop %v1386
  %v1390 = vmul.f32 1.0, %v1389
  %v1391 = vld [vmem:[%s620 + $0x10] sm:$0xff]
  %v1392 = vld [vmem:[%s620 + $0x28] sm:$0xff]
  %v1393 = vadd.f32 %v1353, %v688
  %v1394 = vadd.f32 %v1356, %v688
  %v1395 = vmul.f32 %v1372, %v1393
  %v1396 = vmul.f32 %v1374, %v1394
  %v1397 = vadd.f32 %v1391, %v1395
  %v1398 = vadd.f32 %v1392, %v1396
  %v1399 = vtanh.pop %v1397
  %v1400 = vtanh.pop %v1398
  %v1401 = vsub.f32 1.0, %v1388
  %v1402 = vsub.f32 1.0, %v1390
  %v1403 = vmul.f32 %v1401, %v1399
  %v1404 = vmul.f32 %v1402, %v1400
  %v1405 = vmul.f32 %v1388, %v1269
  %v1406 = vmul.f32 %v1390, %v1270
  %v1407 = vadd.f32 %v1403, %v1405
  %v1408 = vadd.f32 %v1404, %v1406
  %s1409 = scalar_lea.vmem [#allocation3], 64
  %1410 = vst [vmem:[%s1409] sm:$0xff] %v1407
  %1411 = vst [vmem:[%s1409 + $0x8] sm:$0xff] %v1408
  %v1412 = vpack.c.bf16 %v1408, %v1407
  %1413 = vmatprep.subr.bf16.mxu0 %v814
  %1414 = vmatpush1.bf16.msra.mxu0 %v813
  %1415 = vmatprep.subr.bf16.mxu0 %v817
  %1416 = vmatpush1.bf16.msra.mxu0 %v816
  %1417 = vmatprep.subr.bf16.mxu0 %v820
  %1418 = vmatpush1.bf16.msra.mxu0 %v819
  %1419 = vmatprep.subr.bf16.mxu0 %v823
  %1420 = vmatpush1.bf16.msra.mxu0 %v822
  %1421 = vmatprep.subr.bf16.mxu0 %v826
  %1422 = vmatpush1.bf16.msra.mxu0 %v825
  %1423 = vmatprep.subr.bf16.mxu0 %v829
  %1424 = vmatpush1.bf16.msra.mxu0 %v828
  %1425 = vmatprep.subr.bf16.mxu0 %v832
  %1426 = vmatpush1.bf16.msra.mxu0 %v831
  %1427 = vmatprep.subr.bf16.mxu0 %v835
  %1428 = vmatpush1.bf16.msra.mxu0 %v834
  %1429 = vmatprep.subr.bf16.mxu0 0
  %1430 = vmatpush1.bf16.msra.mxu0 0
  %1431 = vmatprep.subr.bf16.mxu0 0
  %1432 = vmatpush1.bf16.msra.mxu0 0
  %1433 = vmatprep.subr.bf16.mxu0 0
  %1434 = vmatpush1.bf16.msra.mxu0 0
  %1435 = vmatprep.subr.bf16.mxu0 0
  %1436 = vmatpush1.bf16.msra.mxu0 0
  %1437 = vmatprep.subr.bf16.mxu0 0
  %1438 = vmatpush1.bf16.msra.mxu0 0
  %1439 = vmatprep.subr.bf16.mxu0 0
  %1440 = vmatpush1.bf16.msra.mxu0 0
  %1441 = vmatprep.subr.bf16.mxu0 0
  %1442 = vmatpush1.bf16.msra.mxu0 0
  %1443 = vmatprep.subr.bf16.mxu0 0
  %1444 = vmatpush1.bf16.msra.mxu0 0
  %1445 = vmatprep.mubr.bf16.mxu0 0
  %1446 = vmatmul.mubr.bf16.gmra.mrb[0].mxu0 %v1412
  %v1447 = vpop.f32.mrb[0].mxu0
  %v1448 = vadd.f32 0.0, %v1447
  %v1449 = vpop.f32.mrb[0].mxu0
  %v1450 = vadd.f32 0.0, %v1449
  %v1451 = vpop.f32.mrb[0].mxu0
  %v1452 = vadd.f32 0.0, %v1451
  %v1453 = vpop.f32.mrb[0].mxu0
  %v1454 = vadd.f32 0.0, %v1453
  %1455 = vdwg.mxu0
  %1456 = vmatprep.subr.bf16.mxu0 0
  %1457 = vmatpush1.bf16.msra.mxu0 %v815
  %1458 = vmatprep.subr.bf16.mxu0 0
  %1459 = vmatpush1.bf16.msra.mxu0 %v818
  %1460 = vmatprep.subr.bf16.mxu0 0
  %1461 = vmatpush1.bf16.msra.mxu0 %v821
  %1462 = vmatprep.subr.bf16.mxu0 0
  %1463 = vmatpush1.bf16.msra.mxu0 %v824
  %1464 = vmatprep.subr.bf16.mxu0 0
  %1465 = vmatpush1.bf16.msra.mxu0 %v827
  %1466 = vmatprep.subr.bf16.mxu0 0
  %1467 = vmatpush1.bf16.msra.mxu0 %v830
  %1468 = vmatprep.subr.bf16.mxu0 0
  %1469 = vmatpush1.bf16.msra.mxu0 %v833
  %1470 = vmatprep.subr.bf16.mxu0 0
  %1471 = vmatpush1.bf16.msra.mxu0 %v836
  %1472 = vmatprep.subr.bf16.mxu0 0
  %1473 = vmatpush1.bf16.msra.mxu0 0
  %1474 = vmatprep.subr.bf16.mxu0 0
  %1475 = vmatpush1.bf16.msra.mxu0 0
  %1476 = vmatprep.subr.bf16.mxu0 0
  %1477 = vmatpush1.bf16.msra.mxu0 0
  %1478 = vmatprep.subr.bf16.mxu0 0
  %1479 = vmatpush1.bf16.msra.mxu0 0
  %1480 = vmatprep.subr.bf16.mxu0 0
  %1481 = vmatpush1.bf16.msra.mxu0 0
  %1482 = vmatprep.subr.bf16.mxu0 0
  %1483 = vmatpush1.bf16.msra.mxu0 0
  %1484 = vmatprep.subr.bf16.mxu0 0
  %1485 = vmatpush1.bf16.msra.mxu0 0
  %1486 = vmatprep.subr.bf16.mxu0 0
  %1487 = vmatpush1.bf16.msra.mxu0 0
  %1488 = vmatprep.mubr.bf16.mxu0 0
  %1489 = vmatmul.mubr.bf16.gmra.mrb[0].mxu0 %v1412
  %v1490 = vpop.f32.mrb[0].mxu0
  %v1491 = vadd.f32 0.0, %v1490
  %v1492 = vpop.f32.mrb[0].mxu0
  %v1493 = vpop.f32.mrb[0].mxu0
  %v1494 = vadd.f32 0.0, %v1493
  %v1495 = vpop.f32.mrb[0].mxu0
  %1496 = vdwg.mxu0
  %v1497 = vld [vmem:[%s582] sm:$0xff]
  %v1498 = vld [vmem:[%s582 + $0x18] sm:$0xff]
  %v1499 = vadd.f32 %v1497, %v1448
  %v1500 = vadd.f32 %v1498, %v1452
  %v1501 = vxor.u32 %v1499, 2147483648
  %v1502 = vxor.u32 %v1500, 2147483648
  %v1503 = vmul.f32 %v1501, 1.442695
  %v1504 = vpow.pop %v1503
  %v1505 = vmul.f32 %v1502, 1.442695
  %v1506 = vpow.pop %v1505
  %v1507 = vadd.f32 %v1504, 1.0
  %v1508 = vadd.f32 %v1506, 1.0
  %v1509 = vrcp.pop %v1507
  %v1510 = vmul.f32 1.0, %v1509
  %v1511 = vrcp.pop %v1508
  %v1512 = vmul.f32 1.0, %v1511
  %v1513 = vld [vmem:[%s582 + $0x8] sm:$0xff]
  %v1514 = vld [vmem:[%s582 + $0x20] sm:$0xff]
  %v1515 = vadd.f32 %v1513, %v1450
  %v1516 = vadd.f32 %v1514, %v1454
  %v1517 = vxor.u32 %v1515, 2147483648
  %v1518 = vxor.u32 %v1516, 2147483648
  %v1519 = vmul.f32 %v1517, 1.442695
  %v1520 = vpow.pop %v1519
  %v1521 = vmul.f32 %v1518, 1.442695
  %v1522 = vpow.pop %v1521
  %v1523 = vadd.f32 %v1520, 1.0
  %v1524 = vadd.f32 %v1522, 1.0
  %v1525 = vrcp.pop %v1523
  %v1526 = vmul.f32 1.0, %v1525
  %v1527 = vrcp.pop %v1524
  %v1528 = vmul.f32 1.0, %v1527
  %v1529 = vld [vmem:[%s582 + $0x10] sm:$0xff]
  %v1530 = vld [vmem:[%s582 + $0x28] sm:$0xff]
  %v1531 = vadd.f32 %v1491, %v688
  %v1532 = vadd.f32 %v1494, %v688
  %v1533 = vmul.f32 %v1510, %v1531
  %v1534 = vmul.f32 %v1512, %v1532
  %v1535 = vadd.f32 %v1529, %v1533
  %v1536 = vadd.f32 %v1530, %v1534
  %v1537 = vtanh.pop %v1535
  %v1538 = vtanh.pop %v1536
  %v1539 = vsub.f32 1.0, %v1526
  %v1540 = vsub.f32 1.0, %v1528
  %v1541 = vmul.f32 %v1539, %v1537
  %v1542 = vmul.f32 %v1540, %v1538
  %v1543 = vmul.f32 %v1526, %v1407
  %v1544 = vmul.f32 %v1528, %v1408
  %v1545 = vadd.f32 %v1541, %v1543
  %v1546 = vadd.f32 %v1542, %v1544
  %s1547 = scalar_lea.vmem [#allocation3], 80
  %1548 = vst [vmem:[%s1547] sm:$0xff] %v1545
  %1549 = vst [vmem:[%s1547 + $0x8] sm:$0xff] %v1546
  %v1550 = vpack.c.bf16 %v1546, %v1545
  %1551 = vmatprep.subr.bf16.mxu0 %v814
  %1552 = vmatpush1.bf16.msra.mxu0 %v813
  %1553 = vmatprep.subr.bf16.mxu0 %v817
  %1554 = vmatpush1.bf16.msra.mxu0 %v816
  %1555 = vmatprep.subr.bf16.mxu0 %v820
  %1556 = vmatpush1.bf16.msra.mxu0 %v819
  %1557 = vmatprep.subr.bf16.mxu0 %v823
  %1558 = vmatpush1.bf16.msra.mxu0 %v822
  %1559 = vmatprep.subr.bf16.mxu0 %v826
  %1560 = vmatpush1.bf16.msra.mxu0 %v825
  %1561 = vmatprep.subr.bf16.mxu0 %v829
  %1562 = vmatpush1.bf16.msra.mxu0 %v828
  %1563 = vmatprep.subr.bf16.mxu0 %v832
  %1564 = vmatpush1.bf16.msra.mxu0 %v831
  %1565 = vmatprep.subr.bf16.mxu0 %v835
  %1566 = vmatpush1.bf16.msra.mxu0 %v834
  %1567 = vmatprep.subr.bf16.mxu0 0
  %1568 = vmatpush1.bf16.msra.mxu0 0
  %1569 = vmatprep.subr.bf16.mxu0 0
  %1570 = vmatpush1.bf16.msra.mxu0 0
  %1571 = vmatprep.subr.bf16.mxu0 0
  %1572 = vmatpush1.bf16.msra.mxu0 0
  %1573 = vmatprep.subr.bf16.mxu0 0
  %1574 = vmatpush1.bf16.msra.mxu0 0
  %1575 = vmatprep.subr.bf16.mxu0 0
  %1576 = vmatpush1.bf16.msra.mxu0 0
  %1577 = vmatprep.subr.bf16.mxu0 0
  %1578 = vmatpush1.bf16.msra.mxu0 0
  %1579 = vmatprep.subr.bf16.mxu0 0
  %1580 = vmatpush1.bf16.msra.mxu0 0
  %1581 = vmatprep.subr.bf16.mxu0 0
  %1582 = vmatpush1.bf16.msra.mxu0 0
  %1583 = vmatprep.mubr.bf16.mxu0 0
  %1584 = vmatmul.mubr.bf16.gmra.mrb[0].mxu0 %v1550
  %v1585 = vpop.f32.mrb[0].mxu0
  %v1586 = vadd.f32 0.0, %v1585
  %v1587 = vpop.f32.mrb[0].mxu0
  %v1588 = vadd.f32 0.0, %v1587
  %v1589 = vpop.f32.mrb[0].mxu0
  %v1590 = vadd.f32 0.0, %v1589
  %v1591 = vpop.f32.mrb[0].mxu0
  %v1592 = vadd.f32 0.0, %v1591
  %1593 = vdwg.mxu0
  %1594 = vmatprep.subr.bf16.mxu0 0
  %1595 = vmatpush1.bf16.msra.mxu0 %v815
  %1596 = vmatprep.subr.bf16.mxu0 0
  %1597 = vmatpush1.bf16.msra.mxu0 %v818
  %1598 = vmatprep.subr.bf16.mxu0 0
  %1599 = vmatpush1.bf16.msra.mxu0 %v821
  %1600 = vmatprep.subr.bf16.mxu0 0
  %1601 = vmatpush1.bf16.msra.mxu0 %v824
  %1602 = vmatprep.subr.bf16.mxu0 0
  %1603 = vmatpush1.bf16.msra.mxu0 %v827
  %1604 = vmatprep.subr.bf16.mxu0 0
  %1605 = vmatpush1.bf16.msra.mxu0 %v830
  %1606 = vmatprep.subr.bf16.mxu0 0
  %1607 = vmatpush1.bf16.msra.mxu0 %v833
  %1608 = vmatprep.subr.bf16.mxu0 0
  %1609 = vmatpush1.bf16.msra.mxu0 %v836
  %1610 = vmatprep.subr.bf16.mxu0 0
  %1611 = vmatpush1.bf16.msra.mxu0 0
  %1612 = vmatprep.subr.bf16.mxu0 0
  %1613 = vmatpush1.bf16.msra.mxu0 0
  %1614 = vmatprep.subr.bf16.mxu0 0
  %1615 = vmatpush1.bf16.msra.mxu0 0
  %1616 = vmatprep.subr.bf16.mxu0 0
  %1617 = vmatpush1.bf16.msra.mxu0 0
  %1618 = vmatprep.subr.bf16.mxu0 0
  %1619 = vmatpush1.bf16.msra.mxu0 0
  %1620 = vmatprep.subr.bf16.mxu0 0
  %1621 = vmatpush1.bf16.msra.mxu0 0
  %1622 = vmatprep.subr.bf16.mxu0 0
  %1623 = vmatpush1.bf16.msra.mxu0 0
  %1624 = vmatprep.subr.bf16.mxu0 0
  %1625 = vmatpush1.bf16.msra.mxu0 0
  %1626 = vmatprep.mubr.bf16.mxu0 0
  %1627 = vmatmul.mubr.bf16.gmra.mrb[0].mxu0 %v1550
  %v1628 = vpop.f32.mrb[0].mxu0
  %v1629 = vadd.f32 0.0, %v1628
  %v1630 = vpop.f32.mrb[0].mxu0
  %v1631 = vpop.f32.mrb[0].mxu0
  %v1632 = vadd.f32 0.0, %v1631
  %v1633 = vpop.f32.mrb[0].mxu0
  %1634 = vdwg.mxu0
  %v1635 = vld [vmem:[%s544] sm:$0xff]
  %v1636 = vld [vmem:[%s544 + $0x18] sm:$0xff]
  %v1637 = vadd.f32 %v1635, %v1586
  %v1638 = vadd.f32 %v1636, %v1590
  %v1639 = vxor.u32 %v1637, 2147483648
  %v1640 = vxor.u32 %v1638, 2147483648
  %v1641 = vmul.f32 %v1639, 1.442695
  %v1642 = vpow.pop %v1641
  %v1643 = vmul.f32 %v1640, 1.442695
  %v1644 = vpow.pop %v1643
  %v1645 = vadd.f32 %v1642, 1.0
  %v1646 = vadd.f32 %v1644, 1.0
  %v1647 = vrcp.pop %v1645
  %v1648 = vmul.f32 1.0, %v1647
  %v1649 = vrcp.pop %v1646
  %v1650 = vmul.f32 1.0, %v1649
  %v1651 = vld [vmem:[%s544 + $0x8] sm:$0xff]
  %v1652 = vld [vmem:[%s544 + $0x20] sm:$0xff]
  %v1653 = vadd.f32 %v1651, %v1588
  %v1654 = vadd.f32 %v1652, %v1592
  %v1655 = vxor.u32 %v1653, 2147483648
  %v1656 = vxor.u32 %v1654, 2147483648
  %v1657 = vmul.f32 %v1655, 1.442695
  %v1658 = vpow.pop %v1657
  %v1659 = vmul.f32 %v1656, 1.442695
  %v1660 = vpow.pop %v1659
  %v1661 = vadd.f32 %v1658, 1.0
  %v1662 = vadd.f32 %v1660, 1.0
  %v1663 = vrcp.pop %v1661
  %v1664 = vmul.f32 1.0, %v1663
  %v1665 = vrcp.pop %v1662
  %v1666 = vmul.f32 1.0, %v1665
  %v1667 = vld [vmem:[%s544 + $0x10] sm:$0xff]
  %v1668 = vld [vmem:[%s544 + $0x28] sm:$0xff]
  %v1669 = vadd.f32 %v1629, %v688
  %v1670 = vadd.f32 %v1632, %v688
  %v1671 = vmul.f32 %v1648, %v1669
  %v1672 = vmul.f32 %v1650, %v1670
  %v1673 = vadd.f32 %v1667, %v1671
  %v1674 = vadd.f32 %v1668, %v1672
  %v1675 = vtanh.pop %v1673
  %v1676 = vtanh.pop %v1674
  %v1677 = vsub.f32 1.0, %v1664
  %v1678 = vsub.f32 1.0, %v1666
  %v1679 = vmul.f32 %v1677, %v1675
  %v1680 = vmul.f32 %v1678, %v1676
  %v1681 = vmul.f32 %v1664, %v1545
  %v1682 = vmul.f32 %v1666, %v1546
  %v1683 = vadd.f32 %v1679, %v1681
  %v1684 = vadd.f32 %v1680, %v1682
  %s1685 = scalar_lea.vmem [#allocation3], 96
  %1686 = vst [vmem:[%s1685] sm:$0xff] %v1683
  %1687 = vst [vmem:[%s1685 + $0x8] sm:$0xff] %v1684
  %v1688 = vpack.c.bf16 %v1684, %v1683
  %1689 = vmatprep.subr.bf16.mxu0 %v814
  %1690 = vmatpush1.bf16.msra.mxu0 %v813
  %1691 = vmatprep.subr.bf16.mxu0 %v817
  %1692 = vmatpush1.bf16.msra.mxu0 %v816
  %1693 = vmatprep.subr.bf16.mxu0 %v820
  %1694 = vmatpush1.bf16.msra.mxu0 %v819
  %1695 = vmatprep.subr.bf16.mxu0 %v823
  %1696 = vmatpush1.bf16.msra.mxu0 %v822
  %1697 = vmatprep.subr.bf16.mxu0 %v826
  %1698 = vmatpush1.bf16.msra.mxu0 %v825
  %1699 = vmatprep.subr.bf16.mxu0 %v829
  %1700 = vmatpush1.bf16.msra.mxu0 %v828
  %1701 = vmatprep.subr.bf16.mxu0 %v832
  %1702 = vmatpush1.bf16.msra.mxu0 %v831
  %1703 = vmatprep.subr.bf16.mxu0 %v835
  %1704 = vmatpush1.bf16.msra.mxu0 %v834
  %1705 = vmatprep.subr.bf16.mxu0 0
  %1706 = vmatpush1.bf16.msra.mxu0 0
  %1707 = vmatprep.subr.bf16.mxu0 0
  %1708 = vmatpush1.bf16.msra.mxu0 0
  %1709 = vmatprep.subr.bf16.mxu0 0
  %1710 = vmatpush1.bf16.msra.mxu0 0
  %1711 = vmatprep.subr.bf16.mxu0 0
  %1712 = vmatpush1.bf16.msra.mxu0 0
  %1713 = vmatprep.subr.bf16.mxu0 0
  %1714 = vmatpush1.bf16.msra.mxu0 0
  %1715 = vmatprep.subr.bf16.mxu0 0
  %1716 = vmatpush1.bf16.msra.mxu0 0
  %1717 = vmatprep.subr.bf16.mxu0 0
  %1718 = vmatpush1.bf16.msra.mxu0 0
  %1719 = vmatprep.subr.bf16.mxu0 0
  %1720 = vmatpush1.bf16.msra.mxu0 0
  %1721 = vmatprep.mubr.bf16.mxu0 0
  %1722 = vmatmul.mubr.bf16.gmra.mrb[0].mxu0 %v1688
  %v1723 = vpop.f32.mrb[0].mxu0
  %v1724 = vadd.f32 0.0, %v1723
  %v1725 = vpop.f32.mrb[0].mxu0
  %v1726 = vadd.f32 0.0, %v1725
  %v1727 = vpop.f32.mrb[0].mxu0
  %v1728 = vadd.f32 0.0, %v1727
  %v1729 = vpop.f32.mrb[0].mxu0
  %v1730 = vadd.f32 0.0, %v1729
  %1731 = vdwg.mxu0
  %1732 = vmatprep.subr.bf16.mxu0 0
  %1733 = vmatpush1.bf16.msra.mxu0 %v815
  %1734 = vmatprep.subr.bf16.mxu0 0
  %1735 = vmatpush1.bf16.msra.mxu0 %v818
  %1736 = vmatprep.subr.bf16.mxu0 0
  %1737 = vmatpush1.bf16.msra.mxu0 %v821
  %1738 = vmatprep.subr.bf16.mxu0 0
  %1739 = vmatpush1.bf16.msra.mxu0 %v824
  %1740 = vmatprep.subr.bf16.mxu0 0
  %1741 = vmatpush1.bf16.msra.mxu0 %v827
  %1742 = vmatprep.subr.bf16.mxu0 0
  %1743 = vmatpush1.bf16.msra.mxu0 %v830
  %1744 = vmatprep.subr.bf16.mxu0 0
  %1745 = vmatpush1.bf16.msra.mxu0 %v833
  %1746 = vmatprep.subr.bf16.mxu0 0
  %1747 = vmatpush1.bf16.msra.mxu0 %v836
  %1748 = vmatprep.subr.bf16.mxu0 0
  %1749 = vmatpush1.bf16.msra.mxu0 0
  %1750 = vmatprep.subr.bf16.mxu0 0
  %1751 = vmatpush1.bf16.msra.mxu0 0
  %1752 = vmatprep.subr.bf16.mxu0 0
  %1753 = vmatpush1.bf16.msra.mxu0 0
  %1754 = vmatprep.subr.bf16.mxu0 0
  %1755 = vmatpush1.bf16.msra.mxu0 0
  %1756 = vmatprep.subr.bf16.mxu0 0
  %1757 = vmatpush1.bf16.msra.mxu0 0
  %1758 = vmatprep.subr.bf16.mxu0 0
  %1759 = vmatpush1.bf16.msra.mxu0 0
  %1760 = vmatprep.subr.bf16.mxu0 0
  %1761 = vmatpush1.bf16.msra.mxu0 0
  %1762 = vmatprep.subr.bf16.mxu0 0
  %1763 = vmatpush1.bf16.msra.mxu0 0
  %1764 = vmatprep.mubr.bf16.mxu0 0
  %1765 = vmatmul.mubr.bf16.gmra.mrb[0].mxu0 %v1688
  %v1766 = vpop.f32.mrb[0].mxu0
  %v1767 = vadd.f32 0.0, %v1766
  %v1768 = vpop.f32.mrb[0].mxu0
  %v1769 = vpop.f32.mrb[0].mxu0
  %v1770 = vadd.f32 0.0, %v1769
  %v1771 = vpop.f32.mrb[0].mxu0
  %1772 = vdwg.mxu0
  %v1773 = vld [vmem:[%s506] sm:$0xff]
  %v1774 = vld [vmem:[%s506 + $0x18] sm:$0xff]
  %v1775 = vadd.f32 %v1773, %v1724
  %v1776 = vadd.f32 %v1774, %v1728
  %v1777 = vxor.u32 %v1775, 2147483648
  %v1778 = vxor.u32 %v1776, 2147483648
  %v1779 = vmul.f32 %v1777, 1.442695
  %v1780 = vpow.pop %v1779
  %v1781 = vmul.f32 %v1778, 1.442695
  %v1782 = vpow.pop %v1781
  %v1783 = vadd.f32 %v1780, 1.0
  %v1784 = vadd.f32 %v1782, 1.0
  %v1785 = vrcp.pop %v1783
  %v1786 = vmul.f32 1.0, %v1785
  %v1787 = vrcp.pop %v1784
  %v1788 = vmul.f32 1.0, %v1787
  %v1789 = vld [vmem:[%s506 + $0x8] sm:$0xff]
  %v1790 = vld [vmem:[%s506 + $0x20] sm:$0xff]
  %v1791 = vadd.f32 %v1789, %v1726
  %v1792 = vadd.f32 %v1790, %v1730
  %v1793 = vxor.u32 %v1791, 2147483648
  %v1794 = vxor.u32 %v1792, 2147483648
  %v1795 = vmul.f32 %v1793, 1.442695
  %v1796 = vpow.pop %v1795
  %v1797 = vmul.f32 %v1794, 1.442695
  %v1798 = vpow.pop %v1797
  %v1799 = vadd.f32 %v1796, 1.0
  %v1800 = vadd.f32 %v1798, 1.0
  %v1801 = vrcp.pop %v1799
  %v1802 = vmul.f32 1.0, %v1801
  %v1803 = vrcp.pop %v1800
  %v1804 = vmul.f32 1.0, %v1803
  %v1805 = vld [vmem:[%s506 + $0x10] sm:$0xff]
  %v1806 = vld [vmem:[%s506 + $0x28] sm:$0xff]
  %v1807 = vadd.f32 %v1767, %v688
  %v1808 = vadd.f32 %v1770, %v688
  %v1809 = vmul.f32 %v1786, %v1807
  %v1810 = vmul.f32 %v1788, %v1808
  %v1811 = vadd.f32 %v1805, %v1809
  %v1812 = vadd.f32 %v1806, %v1810
  %v1813 = vtanh.pop %v1811
  %v1814 = vtanh.pop %v1812
  %v1815 = vsub.f32 1.0, %v1802
  %v1816 = vsub.f32 1.0, %v1804
  %v1817 = vmul.f32 %v1815, %v1813
  %v1818 = vmul.f32 %v1816, %v1814
  %v1819 = vmul.f32 %v1802, %v1683
  %v1820 = vmul.f32 %v1804, %v1684
  %v1821 = vadd.f32 %v1817, %v1819
  %v1822 = vadd.f32 %v1818, %v1820
  %s1823 = scalar_lea.vmem [#allocation3], 112
  %1824 = vst [vmem:[%s1823] sm:$0xff] %v1821
  %1825 = vst [vmem:[%s1823 + $0x8] sm:$0xff] %v1822
  %vm1826 = vcmp.lt.s32.totalorder %v458, 64
  %v1827 = vld [vmem:[#allocation3] sm:$0xff]
  %v1828 = vld [vmem:[#allocation3 + $0x8] sm:$0xff]
  %v1829 = vld [vmem:[%s1823] sm:$0xff]
  %v1830 = vld [vmem:[%s1823 + $0x8] sm:$0xff]
  %v1831 = vsel %vm1826, %v1827, %v1829
  %v1832 = vsel %vm1826, %v1828, %v1830
  %v1833 = vpack.c.bf16 %v1832, %v1831
  %v1835 = vunpack.c.l.b16 %v1833
  %v1836 = vunpack.c.h.b16 %v1833
  %v1837 = vpack.c.b16 %v1835, %v1835
  %v1838 = vpack.c.b16 %v1836, %v1836
  %1841 = vst [vmem:[%s5] sm:$0xf] %v1837
  %1842 = vst [vmem:[%s5 + $0x4] sm:$0xf] %v1838
  %v1843 = vld [vmem:[%s995] sm:$0xff]
  %v1844 = vld [vmem:[%s995 + $0x8] sm:$0xff]
  %v1845 = vld [vmem:[%s1685] sm:$0xff]
  %v1846 = vld [vmem:[%s1685 + $0x8] sm:$0xff]
  %v1847 = vsel %vm1826, %v1843, %v1845
  %v1848 = vsel %vm1826, %v1844, %v1846
  %v1849 = vpack.c.bf16 %v1848, %v1847
  %v1851 = vunpack.c.l.b16 %v1849
  %v1852 = vunpack.c.h.b16 %v1849
  %v1853 = vpack.c.b16 %v1851, %v1851
  %v1854 = vpack.c.b16 %v1852, %v1852
  %s1857 = scalar_lea.vmem %s5, 8
  %1858 = vst [vmem:[%s1857] sm:$0xf] %v1853
  %1859 = vst [vmem:[%s1857 + $0x4] sm:$0xf] %v1854
  %v1860 = vld [vmem:[%s1133] sm:$0xff]
  %v1861 = vld [vmem:[%s1133 + $0x8] sm:$0xff]
  %v1862 = vld [vmem:[%s1547] sm:$0xff]
  %v1863 = vld [vmem:[%s1547 + $0x8] sm:$0xff]
  %v1864 = vsel %vm1826, %v1860, %v1862
  %v1865 = vsel %vm1826, %v1861, %v1863
  %v1866 = vpack.c.bf16 %v1865, %v1864
  %v1868 = vunpack.c.l.b16 %v1866
  %v1869 = vunpack.c.h.b16 %v1866
  %v1870 = vpack.c.b16 %v1868, %v1868
  %v1871 = vpack.c.b16 %v1869, %v1869
  %s1874 = scalar_lea.vmem %s5, 16
  %1875 = vst [vmem:[%s1874] sm:$0xf] %v1870
  %1876 = vst [vmem:[%s1874 + $0x4] sm:$0xf] %v1871
  %v1877 = vld [vmem:[%s1271] sm:$0xff]
  %v1878 = vld [vmem:[%s1271 + $0x8] sm:$0xff]
  %v1879 = vld [vmem:[%s1409] sm:$0xff]
  %v1880 = vld [vmem:[%s1409 + $0x8] sm:$0xff]
  %v1881 = vsel %vm1826, %v1877, %v1879
  %v1882 = vsel %vm1826, %v1878, %v1880
  %v1883 = vpack.c.bf16 %v1882, %v1881
  %v1885 = vunpack.c.l.b16 %v1883
  %v1886 = vunpack.c.h.b16 %v1883
  %v1887 = vpack.c.b16 %v1885, %v1885
  %v1888 = vpack.c.b16 %v1886, %v1886
  %s1891 = scalar_lea.vmem %s5, 24
  %1892 = vst [vmem:[%s1891] sm:$0xf] %v1887
  %1893 = vst [vmem:[%s1891 + $0x4] sm:$0xf] %v1888
  %v1894 = vld [vmem:[%s1409] sm:$0xff]
  %v1895 = vld [vmem:[%s1409 + $0x8] sm:$0xff]
  %v1896 = vld [vmem:[%s1271] sm:$0xff]
  %v1897 = vld [vmem:[%s1271 + $0x8] sm:$0xff]
  %v1898 = vsel %vm1826, %v1894, %v1896
  %v1899 = vsel %vm1826, %v1895, %v1897
  %v1900 = vpack.c.bf16 %v1899, %v1898
  %v1902 = vunpack.c.l.b16 %v1900
  %v1903 = vunpack.c.h.b16 %v1900
  %v1904 = vpack.c.b16 %v1902, %v1902
  %v1905 = vpack.c.b16 %v1903, %v1903
  %s1908 = scalar_lea.vmem %s5, 32
  %1909 = vst [vmem:[%s1908] sm:$0xf] %v1904
  %1910 = vst [vmem:[%s1908 + $0x4] sm:$0xf] %v1905
  %v1911 = vld [vmem:[%s1547] sm:$0xff]
  %v1912 = vld [vmem:[%s1547 + $0x8] sm:$0xff]
  %v1913 = vld [vmem:[%s1133] sm:$0xff]
  %v1914 = vld [vmem:[%s1133 + $0x8] sm:$0xff]
  %v1915 = vsel %vm1826, %v1911, %v1913
  %v1916 = vsel %vm1826, %v1912, %v1914
  %v1917 = vpack.c.bf16 %v1916, %v1915
  %v1919 = vunpack.c.l.b16 %v1917
  %v1920 = vunpack.c.h.b16 %v1917
  %v1921 = vpack.c.b16 %v1919, %v1919
  %v1922 = vpack.c.b16 %v1920, %v1920
  %s1925 = scalar_lea.vmem %s5, 40
  %1926 = vst [vmem:[%s1925] sm:$0xf] %v1921
  %1927 = vst [vmem:[%s1925 + $0x4] sm:$0xf] %v1922
  %v1928 = vld [vmem:[%s1685] sm:$0xff]
  %v1929 = vld [vmem:[%s1685 + $0x8] sm:$0xff]
  %v1930 = vld [vmem:[%s995] sm:$0xff]
  %v1931 = vld [vmem:[%s995 + $0x8] sm:$0xff]
  %v1932 = vsel %vm1826, %v1928, %v1930
  %v1933 = vsel %vm1826, %v1929, %v1931
  %v1934 = vpack.c.bf16 %v1933, %v1932
  %v1936 = vunpack.c.l.b16 %v1934
  %v1937 = vunpack.c.h.b16 %v1934
  %v1938 = vpack.c.b16 %v1936, %v1936
  %v1939 = vpack.c.b16 %v1937, %v1937
  %s1942 = scalar_lea.vmem %s5, 48
  %1943 = vst [vmem:[%s1942] sm:$0xf] %v1938
  %1944 = vst [vmem:[%s1942 + $0x4] sm:$0xf] %v1939
  %v1945 = vld [vmem:[%s1823] sm:$0xff]
  %v1946 = vld [vmem:[%s1823 + $0x8] sm:$0xff]
  %v1947 = vld [vmem:[#allocation3] sm:$0xff]
  %v1948 = vld [vmem:[#allocation3 + $0x8] sm:$0xff]
  %v1949 = vsel %vm1826, %v1945, %v1947
  %v1950 = vsel %vm1826, %v1946, %v1948
  %v1951 = vpack.c.bf16 %v1950, %v1949
  %v1953 = vunpack.c.l.b16 %v1951
  %v1954 = vunpack.c.h.b16 %v1951
  %v1955 = vpack.c.b16 %v1953, %v1953
  %v1956 = vpack.c.b16 %v1954, %v1954
  %s1959 = scalar_lea.vmem %s5, 56
  %1960 = vst [vmem:[%s1959] sm:$0xf] %v1955
  %1961 = vst [vmem:[%s1959 + $0x4] sm:$0xf] %v1956
  // Predicated region
  $region22: #{action_history_encoder.2} parent=0 // pred_check
    _
  $region23: #{action_history_encoder.2} parent=0 // pred_check_branch
    %1963 = sbr.rel (0) target = $region25
  $region24: #{action_history_encoder.2} parent=0 // pred_region
    _
  $region25: #{action_history_encoder.2} parent=0 // pred_fallthru
    _
  // Predicated region
  $region26: #{action_history_encoder.2} parent=0 // pred_check
    _
  $region27: #{action_history_encoder.2} parent=0 // pred_check_branch
    %1965 = sbr.rel (0) target = $region29
  $region28: #{action_history_encoder.2} parent=0 // pred_region
    _
  $region29: #{action_history_encoder.2} parent=0 // pred_fallthru
    _

</llo_original>
